<compile_context>
chip_gen: v6e
topology: v6e:2x2x1
jax: 0.10.0
libtpu: 0.0.40
codegen_flags: <defaults>
</compile_context>

<pallas_src>
import functools

import jax
import jax.numpy as jnp
from jax.experimental import pallas as pl
from jax.experimental.pallas import tpu as pltpu

# ----------------------------- model constants -----------------------------
POS_DIM = 3
KDIM = 32                       # kernel_dim == feats_dim
MDIM = 32                       # m_dim
FOURIER = 32                    # fourier_features
INPUT_DIM = 9                   # sum(properties == 'y')
N_KERNELS = 5
MLP_DIM = 256
N_OUTPUTS = 1
EDGE_IN = 2 * FOURIER + KDIM + 1 + 2 * KDIM          # 161
EDGE_HID = 2 * EDGE_IN                               # 322 (true hidden width)
EH_PAD = 384                                         # padded to a multiple of 128
NODE_HID = 2 * KDIM                                  # 64
GEO_PAD = 31                                         # pad so the static block is 128 wide
STA_DIM = 2 * FOURIER + 1 + GEO_PAD + KDIM           # 128 = [sin|cos|d|0pad|efeat]
FNN_IN = KDIM * (N_KERNELS + 1)                      # 192
LN_EPS = 1e-5

# MXU-operand dtype: bf16 on a real TPU backend, f32 otherwise (CPU / interpret
# execution does not support bf16 x bf16 -> f32 dots).
_ON_TPU = jax.default_backend() == "tpu"
_CDT = jnp.bfloat16 if _ON_TPU else jnp.float32


def _layer_norm(x, gamma, beta):
    mu = jnp.mean(x, axis=-1, keepdims=True)
    var = jnp.mean(jnp.square(x - mu), axis=-1, keepdims=True)
    return (x - mu) * jax.lax.rsqrt(var + LN_EPS) * gamma + beta


# ----------------------------- fused Pallas kernel --------------------------
def egnn_ncp_kernel(
    # streamed over edge tiles
    src_ref, dst_ref, esta_ref,
    # resident node-axis arrays
    feats0_ref, inv_deg_ref, pool_ref, inv_gc_ref,
    # per-layer weights (blocked over the layer grid axis)
    w1d_ref, w1s_ref, eb1_ref, ew2_ref, eb2_ref,
    en1g_ref, en1b_ref, nn1g_ref, nn1b_ref, nn2g_ref, nn2b_ref,
    nw1_ref, nb1_ref, nw2_ref, nb2_ref,
    # FNN head (resident)
    hw0_ref, hb0_ref, hw1_ref, hb1_ref, hw2_ref, hb2_ref, hwo_ref, hbo_ref,
    # output
    out_ref,
    # persistent scratch
    feats_sc, m_acc, fblk,
):
    f32 = jnp.float32
    cdt = _CDT
    l = pl.program_id(0)
    t = pl.program_id(1)
    n_t = pl.num_programs(1)

    @pl.when((l == 0) & (t == 0))
    def _init():
        feats_sc[...] = feats0_ref[...]
        fblk[0] = feats0_ref[...]

    @pl.when(t == 0)
    def _zero():
        m_acc[...] = jnp.zeros_like(m_acc)

    feats = feats_sc[...]                                   # (N, 32) f32
    feats_c = feats.astype(cdt)
    dst = dst_ref[...]                                      # (tE, N) one-hot of edge_index[1]

    # node feature gathers via the streamed one-hot tiles (MXU)
    x_i = jnp.dot(dst, feats_c, preferred_element_type=f32)             # target feats
    x_j = jnp.dot(src_ref[...], feats_c, preferred_element_type=f32)    # source feats
    xij = jnp.concatenate([x_i, x_j], axis=-1).astype(cdt)              # (tE, 64)

    # --- edge MLP: K=64 dynamic + K=128 static matmuls into (tE, 384) ---
    h = (jnp.dot(xij, w1d_ref[0], preferred_element_type=f32)
         + jnp.dot(esta_ref[...], w1s_ref[0], preferred_element_type=f32)
         + eb1_ref[0])
    h = jax.nn.silu(h.astype(cdt))                          # dropout == identity (eval)
    m_ij = jax.nn.silu(
        jnp.dot(h, ew2_ref[0], preferred_element_type=f32) + eb2_ref[0])
    m_ij = _layer_norm(m_ij, en1g_ref[0], en1b_ref[0])      # edge_norm1   (tE, 32) f32

    # --- scatter-add into target nodes: transposed contraction over the edge axis ---
    m_acc[...] += jax.lax.dot_general(
        dst, m_ij.astype(cdt),
        dimension_numbers=(((0,), (0,)), ((), ())),
        preferred_element_type=f32)                          # (N, 32) f32 accumulate

    @pl.when(t == n_t - 1)
    def _node_update():
        m_i = m_acc[...] * inv_deg_ref[...]                  # exact f32 mean aggregation
        m_i = _layer_norm(m_i, en1g_ref[0], en1b_ref[0])     # edge_norm1 (applied again)

        hidden = _layer_norm(feats, nn1g_ref[0], nn1b_ref[0])     # node_norm1
        node_in = jnp.concatenate([hidden, m_i], axis=-1).astype(cdt)   # (N, 64)
        nh = jax.nn.silu(
            jnp.dot(node_in, nw1_ref[0], preferred_element_type=f32) + nb1_ref[0])
        upd = (jnp.dot(nh.astype(cdt), nw2_ref[0], preferred_element_type=f32)
               + nb2_ref[0])
        upd = _layer_norm(upd, nn2g_ref[0], nn2b_ref[0])     # node_norm2
        new_feats = feats + upd                              # residual

        feats_sc[...] = new_feats
        fblk[l + 1] = new_feats

        @pl.when(l == pl.num_programs(0) - 1)
        def _head():
            x = jnp.concatenate([fblk[i] for i in range(N_KERNELS + 1)], axis=-1)
            x = jax.nn.silu(x).astype(cdt)                   # (N, 192)
            x = jax.nn.silu((jnp.dot(x, hw0_ref[...], preferred_element_type=f32)
                             + hb0_ref[...]).astype(cdt))
            x = jax.nn.silu((jnp.dot(x, hw1_ref[...], preferred_element_type=f32)
                             + hb1_ref[...]).astype(cdt))
            x = jax.nn.silu((jnp.dot(x, hw2_ref[...], preferred_element_type=f32)
                             + hb2_ref[...]).astype(cdt))
            pooled = jnp.dot(pool_ref[...], x,
                             preferred_element_type=f32) * inv_gc_ref[...]   # (B, 256)
            out_ref[...] = (jnp.dot(pooled.astype(cdt), hwo_ref[...],
                                    preferred_element_type=f32) + hbo_ref[...])


# ----------------------------- parameter init ------------------------------
def xavier_uniform(key, shape):
    fan_in, fan_out = shape
    a = (6.0 / (fan_in + fan_out)) ** 0.5
    return jax.random.uniform(key, shape, jnp.float32, -a, a)


def init_params(key):
    ks = iter(jax.random.split(key, 64))
    f32 = jnp.float32
    p = {
        "w_emb": xavier_uniform(next(ks), (INPUT_DIM, KDIM)),     # node embedding (f32, wrapper)
        "b_emb": jnp.zeros((KDIM,), f32),
        "w_eemb": xavier_uniform(next(ks), (INPUT_DIM, KDIM)),    # edge embedding (f32, wrapper)
        "b_eemb": jnp.zeros((KDIM,), f32),
    }

    w1d, w1s, eb1, ew2, eb2 = [], [], [], [], []
    en1g, en1b, nn1g, nn1b, nn2g, nn2b = [], [], [], [], [], []
    nw1, nb1, nw2, nb2 = [], [], [], []
    for _ in range(N_KERNELS):
        # edge_mlp Linear1 rows: [x_i(32)|x_j(32)|sin(32)|cos(32)|d(1)|efeat(32)]
        w1 = xavier_uniform(next(ks), (EDGE_IN, EDGE_HID))
        w1 = jnp.pad(w1, ((0, 0), (0, EH_PAD - EDGE_HID)))             # pad hidden -> 384 (exact)
        w1d.append(w1[: 2 * KDIM])                                     # (64, 384) dynamic rows
        w1s.append(jnp.concatenate(                                    # (128, 384) static rows
            [w1[2 * KDIM: 2 * KDIM + 2 * FOURIER + 1],                 #   sin|cos|d
             jnp.zeros((GEO_PAD, EH_PAD), f32),                        #   zero pad rows
             w1[2 * KDIM + 2 * FOURIER + 1:]], axis=0))                #   efeat
        eb1.append(jnp.zeros((1, EH_PAD), f32))
        ew2.append(jnp.pad(xavier_uniform(next(ks), (EDGE_HID, MDIM)),
                           ((0, EH_PAD - EDGE_HID), (0, 0))))          # (384, 32), pad rows = 0
        eb2.append(jnp.zeros((1, MDIM), f32))
        en1g.append(jnp.ones((1, MDIM), f32)); en1b.append(jnp.zeros((1, MDIM), f32))
        nn1g.append(jnp.ones((1, KDIM), f32)); nn1b.append(jnp.zeros((1, KDIM), f32))
        nn2g.append(jnp.ones((1, KDIM), f32)); nn2b.append(jnp.zeros((1, KDIM), f32))
        nw1.append(xavier_uniform(next(ks), (KDIM + MDIM, NODE_HID)))
        nb1.append(jnp.zeros((1, NODE_HID), f32))
        nw2.append(xavier_uniform(next(ks), (NODE_HID, KDIM)))
        nb2.append(jnp.zeros((1, KDIM), f32))

    stk = lambda xs, dt=f32: jnp.stack(xs).astype(dt)
    p["layers"] = dict(
        w1d=stk(w1d, _CDT), w1s=stk(w1s, _CDT), eb1=stk(eb1),
        ew2=stk(ew2, _CDT), eb2=stk(eb2),
        en1g=stk(en1g), en1b=stk(en1b),
        nn1g=stk(nn1g), nn1b=stk(nn1b), nn2g=stk(nn2g), nn2b=stk(nn2b),
        nw1=stk(nw1, _CDT), nb1=stk(nb1), nw2=stk(nw2, _CDT), nb2=stk(nb2),
    )
    p["fnn"] = dict(
        w0=xavier_uniform(next(ks), (FNN_IN, MLP_DIM)).astype(_CDT),
        b0=jnp.zeros((1, MLP_DIM), jnp.float32),
        w1=xavier_uniform(next(ks), (MLP_DIM, MLP_DIM)).astype(_CDT),
        b1=jnp.zeros((1, MLP_DIM), jnp.float32),
        w2=xavier_uniform(next(ks), (MLP_DIM, MLP_DIM)).astype(_CDT),
        b2=jnp.zeros((1, MLP_DIM), jnp.float32),
        wo=xavier_uniform(next(ks), (MLP_DIM, N_OUTPUTS)).astype(_CDT),
        bo=jnp.zeros((1, N_OUTPUTS), jnp.float32),
    )
    return p


# ----------------------------- helpers --------------------------------------
def _round_up(x, m):
    return (x + m - 1) // m * m


def _vmem_limit_bytes(n_pad, te, b, cbytes):
    # double-buffered streamed edge tiles (src, dst one-hots + static block)
    stream = 2 * te * (2 * n_pad + STA_DIM) * cbytes
    # per-layer weight block (double-buffered) + resident FNN head weights
    wl = (64 + STA_DIM + MDIM) * EH_PAD + NODE_HID * NODE_HID + NODE_HID * KDIM
    wf = FNN_IN * MLP_DIM + 2 * MLP_DIM * MLP_DIM + MLP_DIM * N_OUTPUTS
    weights = cbytes * (2 * wl + wf) + 4 * (4 * EH_PAD + 16 * KDIM)
    # resident node-axis arrays + persistent scratch (f32)
    node_res = 4 * n_pad * (KDIM + 1) + cbytes * b * n_pad + 8 * b
    scratch = 4 * n_pad * KDIM * (N_KERNELS + 3)
    # in-kernel temporaries (h tile etc.)
    tmp = 8 * te * EH_PAD * 4
    est = stream + weights + node_res + scratch + tmp + (8 << 20)
    cap = 128 << 20
    if _ON_TPU:
        try:
            cap = int(pltpu.get_tpu_info().vmem_capacity_bytes)
        except Exception:
            pass
    return int(min(max(est, 32 << 20), int(cap * 0.9)))


# ----------------------------- full forward --------------------------------
@functools.partial(jax.jit, static_argnames=("num_graphs", "tile_e"))
def egnn_ncp_forward(params, node_props, edge_props, coords, edge_index, batch,
                     *, num_graphs, tile_e=512):
    f32 = jnp.float32
    N = node_props.shape[0]
    E = edge_index.shape[1]
    B = num_graphs
    src_idx, dst_idx = edge_index[0], edge_index[1]

    n_pad = _round_up(N, 8)
    te = min(_round_up(tile_e, 8), _round_up(E, 8))
    e_pad = _round_up(E, te)
    n_et = e_pad // te
    pad_e = e_pad - E

    # --- embeddings (tiny 9->32 linears; once, f32, plain XLA) ---
    feats0 = node_props.astype(f32) @ params["w_emb"] + params["b_emb"]      # (N, 32)
    efeat = edge_props.astype(f32) @ params["w_eemb"] + params["b_eemb"]     # (E, 32)

    # --- layer-invariant static edge block [sin|cos|d^2|0pad|efeat] -> (E, 128) ---
    rel = coords[src_idx] - coords[dst_idx]
    rel_dist = jnp.sum(rel * rel, axis=-1, keepdims=True)                    # squared dist
    inv_scales = jnp.exp2(-jnp.arange(FOURIER, dtype=f32))[None, :]
    xs = rel_dist * inv_scales
    edge_static = jnp.concatenate(
        [jnp.sin(xs), jnp.cos(xs), rel_dist,
         jnp.zeros((E, GEO_PAD), f32), efeat], axis=-1)                      # (E, 128)
    edge_static = jnp.pad(edge_static, ((0, pad_e), (0, 0))).astype(_CDT)

    # --- dense graph structure (padded rows/cols are exactly zero) ---
    src_p = jnp.concatenate([src_idx, jnp.full((pad_e,), n_pad, src_idx.dtype)])
    dst_p = jnp.concatenate([dst_idx, jnp.full((pad_e,), n_pad, dst_idx.dtype)])
    src_oh = jax.nn.one_hot(src_p, n_pad, dtype=_CDT)                        # (E_pad, N_pad)
    dst_oh = jax.nn.one_hot(dst_p, n_pad, dtype=_CDT)

    deg = jnp.zeros((n_pad,), f32).at[dst_idx].add(1.0)
    inv_deg = (1.0 / jnp.maximum(deg, 1.0)).reshape(n_pad, 1)                # f32 exact mean

    batch_p = jnp.concatenate([batch, jnp.full((n_pad - N,), B, batch.dtype)])
    pool_oh = jax.nn.one_hot(batch_p, B, dtype=_CDT).T                       # (B, N_pad)
    gcnt = jnp.zeros((B,), f32).at[batch].add(1.0)
    inv_gc = (1.0 / jnp.maximum(gcnt, 1.0)).reshape(B, 1)

    feats0 = jnp.pad(feats0, ((0, n_pad - N), (0, 0)))                       # (N_pad, 32)

    L, F = params["layers"], params["fnn"]
    args = (
        src_oh, dst_oh, edge_static,
        feats0, inv_deg, pool_oh, inv_gc,
        L["w1d"], L["w1s"], L["eb1"], L["ew2"], L["eb2"],
        L["en1g"], L["en1b"], L["nn1g"], L["nn1b"], L["nn2g"], L["nn2b"],
        L["nw1"], L["nb1"], L["nw2"], L["nb2"],
        F["w0"], F["b0"], F["w1"], F["b1"], F["w2"], F["b2"], F["wo"], F["bo"],
    )

    edge_spec = lambda lanes: pl.BlockSpec((te, lanes), lambda l, t: (t, 0))
    full2 = lambda a: pl.BlockSpec(a.shape, lambda l, t: (0, 0))
    layer3 = lambda a: pl.BlockSpec((1,) + a.shape[1:], lambda l, t: (l, 0, 0))

    in_specs = (
        [edge_spec(n_pad), edge_spec(n_pad), edge_spec(STA_DIM),
         full2(feats0), full2(inv_deg), full2(pool_oh), full2(inv_gc)]
        + [layer3(L[k]) for k in ("w1d", "w1s", "eb1", "ew2", "eb2",
                                  "en1g", "en1b", "nn1g", "nn1b", "nn2g", "nn2b",
                                  "nw1", "nb1", "nw2", "nb2")]
        + [full2(F[k]) for k in ("w0", "b0", "w1", "b1", "w2", "b2", "wo", "bo")]
    )

    return pl.pallas_call(
        egnn_ncp_kernel,
        grid=(N_KERNELS, n_et),
        in_specs=in_specs,
        out_specs=pl.BlockSpec((B, N_OUTPUTS), lambda l, t: (0, 0)),
        out_shape=jax.ShapeDtypeStruct((B, N_OUTPUTS), f32),
        scratch_shapes=[
            pltpu.VMEM((n_pad, KDIM), f32),                      # current node feats
            pltpu.VMEM((n_pad, MDIM), f32),                      # message accumulator
            pltpu.VMEM((N_KERNELS + 1, n_pad, KDIM), f32),       # stacked feature blocks
        ],
        compiler_params=pltpu.CompilerParams(
            dimension_semantics=("arbitrary", "arbitrary"),
            vmem_limit_bytes=_vmem_limit_bytes(n_pad, te, B, 2 if _ON_TPU else 4),
        ),
    )(*args)


# --------------------------------- main -------------------------------------
if __name__ == "__main__":
    key = jax.random.PRNGKey(0)
    k_par, k_np, k_ep, k_co, k_s0, k_d0, k_s1, k_d1 = jax.random.split(key, 8)

    N, E, B = 16, 32, 2                       # 2 graphs of 8 nodes, 16 edges each
    node_props = jax.random.normal(k_np, (N, INPUT_DIM), jnp.float32)
    edge_props = jax.random.normal(k_ep, (E, INPUT_DIM), jnp.float32)
    coords = jax.random.normal(k_co, (N, POS_DIM), jnp.float32)

    src0 = jax.random.randint(k_s0, (E // 2,), 0, N // 2)
    dst0 = jax.random.randint(k_d0, (E // 2,), 0, N // 2)
    src1 = jax.random.randint(k_s1, (E // 2,), N // 2, N)
    dst1 = jax.random.randint(k_d1, (E // 2,), N // 2, N)
    edge_index = jnp.stack(
        [jnp.concatenate([src0, src1]), jnp.concatenate([dst0, dst1])]
    ).astype(jnp.int32)
    batch = jnp.concatenate(
        [jnp.zeros((N // 2,), jnp.int32), jnp.ones((N // 2,), jnp.int32)]
    )

    params = init_params(k_par)

    # tile_e=16 -> two edge tiles, exercising the accumulated scatter path.
    out = egnn_ncp_forward(params, node_props, edge_props, coords, edge_index,
                           batch, num_graphs=B, tile_e=16)
    out = jax.block_until_ready(out)
    assert out.shape == (B, N_OUTPUTS)
    assert bool(jnp.all(jnp.isfinite(out)))
    print("KERNEL_OK")
</pallas_src>

<mosaic_0001>
module attributes {stable_mosaic.version = 11 : i64} {
  func.func private @main(%arg0: i32) attributes {dimension_semantics = [#tpu.dimension_semantics<core_parallel>], iteration_bounds = array<i64: 2>, tpu.core_type = #tpu.core_type<sc_scalar_subcore>, window_params = []} {
    return
  }
}

module attributes {stable_mosaic.version = 11 : i64} {
  func.func private @main(%arg0: i32) attributes {dimension_semantics = [#tpu.dimension_semantics<core_parallel>], iteration_bounds = array<i64: 2>, tpu.core_type = #tpu.core_type<sc_scalar_subcore>, window_params = []} {
    return
  }
}

module attributes {stable_mosaic.version = 11 : i64} {
  func.func @egnn_ncp_kernel(%arg0: i32, %arg1: i32, %arg2: memref<16x16xf32, #tpu.memory_space<vmem>>, %arg3: memref<16x16xf32, #tpu.memory_space<vmem>>, %arg4: memref<16x128xf32, #tpu.memory_space<vmem>>, %arg5: memref<16x32xf32, #tpu.memory_space<vmem>>, %arg6: memref<16x1xf32, #tpu.memory_space<vmem>>, %arg7: memref<2x16xf32, #tpu.memory_space<vmem>>, %arg8: memref<2x1xf32, #tpu.memory_space<vmem>>, %arg9: memref<1x64x384xf32, #tpu.memory_space<vmem>>, %arg10: memref<1x128x384xf32, #tpu.memory_space<vmem>>, %arg11: memref<1x1x384xf32, #tpu.memory_space<vmem>>, %arg12: memref<1x384x32xf32, #tpu.memory_space<vmem>>, %arg13: memref<1x1x32xf32, #tpu.memory_space<vmem>>, %arg14: memref<1x1x32xf32, #tpu.memory_space<vmem>>, %arg15: memref<1x1x32xf32, #tpu.memory_space<vmem>>, %arg16: memref<1x1x32xf32, #tpu.memory_space<vmem>>, %arg17: memref<1x1x32xf32, #tpu.memory_space<vmem>>, %arg18: memref<1x1x32xf32, #tpu.memory_space<vmem>>, %arg19: memref<1x1x32xf32, #tpu.memory_space<vmem>>, %arg20: memref<1x64x64xf32, #tpu.memory_space<vmem>>, %arg21: memref<1x1x64xf32, #tpu.memory_space<vmem>>, %arg22: memref<1x64x32xf32, #tpu.memory_space<vmem>>, %arg23: memref<1x1x32xf32, #tpu.memory_space<vmem>>, %arg24: memref<192x256xf32, #tpu.memory_space<vmem>>, %arg25: memref<1x256xf32, #tpu.memory_space<vmem>>, %arg26: memref<256x256xf32, #tpu.memory_space<vmem>>, %arg27: memref<1x256xf32, #tpu.memory_space<vmem>>, %arg28: memref<256x256xf32, #tpu.memory_space<vmem>>, %arg29: memref<1x256xf32, #tpu.memory_space<vmem>>, %arg30: memref<256x1xf32, #tpu.memory_space<vmem>>, %arg31: memref<1x1xf32, #tpu.memory_space<vmem>>, %arg32: memref<2x1xf32, #tpu.memory_space<vmem>>, %arg33: memref<16x32xf32, #tpu.memory_space<vmem>>, %arg34: memref<16x32xf32, #tpu.memory_space<vmem>>, %arg35: memref<6x16x32xf32, #tpu.memory_space<vmem>>) attributes {dimension_semantics = [#tpu.dimension_semantics<arbitrary>, #tpu.dimension_semantics<arbitrary>], iteration_bounds = array<i64: 5, 2>, scalar_prefetch = 0 : i64, scratch_operands = 3 : i64, tpu.core_type = #tpu.core_type<tc>, window_params = [{transform_indices = @transform_0, window_bounds = array<i64: 16, 16>}, {transform_indices = @transform_1, window_bounds = array<i64: 16, 16>}, {transform_indices = @transform_2, window_bounds = array<i64: 16, 128>}, {pipeline_mode = #tpu.pipeline_mode<synchronous>, transform_indices = @transform_3, window_bounds = array<i64: 16, 32>}, {pipeline_mode = #tpu.pipeline_mode<synchronous>, transform_indices = @transform_4, window_bounds = array<i64: 16, 1>}, {pipeline_mode = #tpu.pipeline_mode<synchronous>, transform_indices = @transform_5, window_bounds = array<i64: 2, 16>}, {pipeline_mode = #tpu.pipeline_mode<synchronous>, transform_indices = @transform_6, window_bounds = array<i64: 2, 1>}, {transform_indices = @transform_7, window_bounds = array<i64: 1, 64, 384>}, {transform_indices = @transform_8, window_bounds = array<i64: 1, 128, 384>}, {transform_indices = @transform_9, window_bounds = array<i64: 1, 1, 384>}, {transform_indices = @transform_10, window_bounds = array<i64: 1, 384, 32>}, {transform_indices = @transform_11, window_bounds = array<i64: 1, 1, 32>}, {transform_indices = @transform_12, window_bounds = array<i64: 1, 1, 32>}, {transform_indices = @transform_13, window_bounds = array<i64: 1, 1, 32>}, {transform_indices = @transform_14, window_bounds = array<i64: 1, 1, 32>}, {transform_indices = @transform_15, window_bounds = array<i64: 1, 1, 32>}, {transform_indices = @transform_16, window_bounds = array<i64: 1, 1, 32>}, {transform_indices = @transform_17, window_bounds = array<i64: 1, 1, 32>}, {transform_indices = @transform_18, window_bounds = array<i64: 1, 64, 64>}, {transform_indices = @transform_19, window_bounds = array<i64: 1, 1, 64>}, {transform_indices = @transform_20, window_bounds = array<i64: 1, 64, 32>}, {transform_indices = @transform_21, window_bounds = array<i64: 1, 1, 32>}, {pipeline_mode = #tpu.pipeline_mode<synchronous>, transform_indices = @transform_22, window_bounds = array<i64: 192, 256>}, {pipeline_mode = #tpu.pipeline_mode<synchronous>, transform_indices = @transform_23, window_bounds = array<i64: 1, 256>}, {pipeline_mode = #tpu.pipeline_mode<synchronous>, transform_indices = @transform_24, window_bounds = array<i64: 256, 256>}, {pipeline_mode = #tpu.pipeline_mode<synchronous>, transform_indices = @transform_25, window_bounds = array<i64: 1, 256>}, {pipeline_mode = #tpu.pipeline_mode<synchronous>, transform_indices = @transform_26, window_bounds = array<i64: 256, 256>}, {pipeline_mode = #tpu.pipeline_mode<synchronous>, transform_indices = @transform_27, window_bounds = array<i64: 1, 256>}, {pipeline_mode = #tpu.pipeline_mode<synchronous>, transform_indices = @transform_28, window_bounds = array<i64: 256, 1>}, {pipeline_mode = #tpu.pipeline_mode<synchronous>, transform_indices = @transform_29, window_bounds = array<i64: 1, 1>}, {pipeline_mode = #tpu.pipeline_mode<synchronous>, transform_indices = @transform_30, window_bounds = array<i64: 2, 1>}]} {
    %c0_i32 = arith.constant 0 : i32
    %0 = arith.cmpi eq, %arg0, %c0_i32 : i32
    %c0_i32_0 = arith.constant 0 : i32
    %1 = arith.cmpi eq, %arg1, %c0_i32_0 : i32
    %2 = arith.andi %0, %1 : i1
    %3 = arith.extui %2 : i1 to i32
    %c0_i32_1 = arith.constant 0 : i32
    %4 = arith.cmpi ne, %3, %c0_i32_1 : i32
    scf.if %4 {
      %c0_49 = arith.constant 0 : index
      %c0_50 = arith.constant 0 : index
      %78 = vector.load %arg5[%c0_49, %c0_50] : memref<16x32xf32, #tpu.memory_space<vmem>>, vector<16x32xf32>
      %c0_51 = arith.constant 0 : index
      %c0_52 = arith.constant 0 : index
      %79 = vector.load %arg33[%c0_51, %c0_52] : memref<16x32xf32, #tpu.memory_space<vmem>>, vector<16x32xf32>
      tpu.vector_store %arg33[%c0_51, %c0_52], %78 {strides = array<i32>} : memref<16x32xf32, #tpu.memory_space<vmem>>, vector<16x32xf32>,
      %c0_53 = arith.constant 0 : index
      %c0_54 = arith.constant 0 : index
      %80 = vector.load %arg5[%c0_53, %c0_54] : memref<16x32xf32, #tpu.memory_space<vmem>>, vector<16x32xf32>
      %c0_55 = arith.constant 0 : index
      %c0_56 = arith.constant 0 : index
      %c0_57 = arith.constant 0 : index
      %81 = vector.load %arg35[%c0_55, %c0_56, %c0_57] : memref<6x16x32xf32, #tpu.memory_space<vmem>>, vector<1x16x32xf32>
      %82 = vector.shape_cast %81 : vector<1x16x32xf32> to vector<16x32xf32>
      %83 = vector.shape_cast %80 : vector<16x32xf32> to vector<1x16x32xf32>
      tpu.vector_store %arg35[%c0_55, %c0_56, %c0_57], %83 {strides = array<i32>} : memref<6x16x32xf32, #tpu.memory_space<vmem>>, vector<1x16x32xf32>,
    } else {
    }
    %c0_i32_2 = arith.constant 0 : i32
    %5 = arith.cmpi eq, %arg1, %c0_i32_2 : i32
    %6 = arith.extui %5 : i1 to i32
    %c0_i32_3 = arith.constant 0 : i32
    %7 = arith.cmpi ne, %6, %c0_i32_3 : i32
    scf.if %7 {
      %cst_49 = arith.constant 0.000000e+00 : f32
      %78 = vector.broadcast %cst_49 : f32 to vector<16x32xf32>
      %c0_50 = arith.constant 0 : index
      %c0_51 = arith.constant 0 : index
      %79 = vector.load %arg34[%c0_50, %c0_51] : memref<16x32xf32, #tpu.memory_space<vmem>>, vector<16x32xf32>
      tpu.vector_store %arg34[%c0_50, %c0_51], %78 {strides = array<i32>} : memref<16x32xf32, #tpu.memory_space<vmem>>, vector<16x32xf32>,
    } else {
    }
    %c0 = arith.constant 0 : index
    %c0_4 = arith.constant 0 : index
    %8 = vector.load %arg33[%c0, %c0_4] : memref<16x32xf32, #tpu.memory_space<vmem>>, vector<16x32xf32>
    %c0_5 = arith.constant 0 : index
    %c0_6 = arith.constant 0 : index
    %9 = vector.load %arg3[%c0_5, %c0_6] : memref<16x16xf32, #tpu.memory_space<vmem>>, vector<16x16xf32>
    %cst = arith.constant dense<0.000000e+00> : vector<16x32xf32>
    %10 = tpu.matmul %9, %8, %cst {dimension_numbers = #tpu.dot_dimension_numbers<[1], [0], [0], [1], [0, 0, 1, 1], [], []>} : vector<16x16xf32>, vector<16x32xf32>, vector<16x32xf32> -> vector<16x32xf32>
    %c0_7 = arith.constant 0 : index
    %c0_8 = arith.constant 0 : index
    %11 = vector.load %arg2[%c0_7, %c0_8] : memref<16x16xf32, #tpu.memory_space<vmem>>, vector<16x16xf32>
    %cst_9 = arith.constant dense<0.000000e+00> : vector<16x32xf32>
    %12 = tpu.matmul %11, %8, %cst_9 {dimension_numbers = #tpu.dot_dimension_numbers<[1], [0], [0], [1], [0, 0, 1, 1], [], []>} : vector<16x16xf32>, vector<16x32xf32>, vector<16x32xf32> -> vector<16x32xf32>
    %13 = tpu.concatenate %10, %12 in 1 : vector<16x32xf32>, vector<16x32xf32> -> vector<16x64xf32>
    %c0_10 = arith.constant 0 : index
    %c0_11 = arith.constant 0 : index
    %c0_12 = arith.constant 0 : index
    %14 = vector.load %arg9[%c0_10, %c0_11, %c0_12] : memref<1x64x384xf32, #tpu.memory_space<vmem>>, vector<1x64x384xf32>
    %15 = vector.shape_cast %14 : vector<1x64x384xf32> to vector<64x384xf32>
    %cst_13 = arith.constant dense<0.000000e+00> : vector<16x384xf32>
    %16 = tpu.matmul %13, %15, %cst_13 {dimension_numbers = #tpu.dot_dimension_numbers<[1], [0], [0], [1], [0, 0, 1, 1], [], []>} : vector<16x64xf32>, vector<64x384xf32>, vector<16x384xf32> -> vector<16x384xf32>
    %c0_14 = arith.constant 0 : index
    %c0_15 = arith.constant 0 : index
    %17 = vector.load %arg4[%c0_14, %c0_15] : memref<16x128xf32, #tpu.memory_space<vmem>>, vector<16x128xf32>
    %c0_16 = arith.constant 0 : index
    %c0_17 = arith.constant 0 : index
    %c0_18 = arith.constant 0 : index
    %18 = vector.load %arg10[%c0_16, %c0_17, %c0_18] : memref<1x128x384xf32, #tpu.memory_space<vmem>>, vector<1x128x384xf32>
    %19 = vector.shape_cast %18 : vector<1x128x384xf32> to vector<128x384xf32>
    %cst_19 = arith.constant dense<0.000000e+00> : vector<16x384xf32>
    %20 = tpu.matmul %17, %19, %cst_19 {dimension_numbers = #tpu.dot_dimension_numbers<[1], [0], [0], [1], [0, 0, 1, 1], [], []>} : vector<16x128xf32>, vector<128x384xf32>, vector<16x384xf32> -> vector<16x384xf32>
    %21 = arith.addf %16, %20 : vector<16x384xf32>
    %c0_20 = arith.constant 0 : index
    %c0_21 = arith.constant 0 : index
    %c0_22 = arith.constant 0 : index
    %22 = vector.load %arg11[%c0_20, %c0_21, %c0_22] : memref<1x1x384xf32, #tpu.memory_space<vmem>>, vector<1x1x384xf32>
    %23 = vector.shape_cast %22 : vector<1x1x384xf32> to vector<1x384xf32>
    %24 = vector.broadcast %23 : vector<1x384xf32> to vector<16x384xf32>
    %25 = arith.addf %21, %24 : vector<16x384xf32>
    %26 = arith.negf %25 : vector<16x384xf32>
    %27 = math.exp %26 : vector<16x384xf32>
    %cst_23 = arith.constant 1.000000e+00 : f32
    %28 = vector.broadcast %cst_23 : f32 to vector<16x384xf32>
    %29 = arith.addf %28, %27 : vector<16x384xf32>
    %30 = arith.divf %28, %29 : vector<16x384xf32>
    %31 = arith.mulf %25, %30 : vector<16x384xf32>
    %c0_24 = arith.constant 0 : index
    %c0_25 = arith.constant 0 : index
    %c0_26 = arith.constant 0 : index
    %32 = vector.load %arg12[%c0_24, %c0_25, %c0_26] : memref<1x384x32xf32, #tpu.memory_space<vmem>>, vector<1x384x32xf32>
    %33 = vector.shape_cast %32 : vector<1x384x32xf32> to vector<384x32xf32>
    %cst_27 = arith.constant dense<0.000000e+00> : vector<16x32xf32>
    %34 = tpu.matmul %31, %33, %cst_27 {dimension_numbers = #tpu.dot_dimension_numbers<[1], [0], [0], [1], [0, 0, 1, 1], [], []>} : vector<16x384xf32>, vector<384x32xf32>, vector<16x32xf32> -> vector<16x32xf32>
    %c0_28 = arith.constant 0 : index
    %c0_29 = arith.constant 0 : index
    %c0_30 = arith.constant 0 : index
    %35 = vector.load %arg13[%c0_28, %c0_29, %c0_30] : memref<1x1x32xf32, #tpu.memory_space<vmem>>, vector<1x1x32xf32>
    %36 = vector.shape_cast %35 : vector<1x1x32xf32> to vector<1x32xf32>
    %37 = vector.broadcast %36 : vector<1x32xf32> to vector<16x32xf32>
    %38 = arith.addf %34, %37 : vector<16x32xf32>
    %39 = arith.negf %38 : vector<16x32xf32>
    %40 = math.exp %39 : vector<16x32xf32>
    %cst_31 = arith.constant 1.000000e+00 : f32
    %41 = vector.broadcast %cst_31 : f32 to vector<16x32xf32>
    %42 = arith.addf %41, %40 : vector<16x32xf32>
    %43 = arith.divf %41, %42 : vector<16x32xf32>
    %44 = arith.mulf %38, %43 : vector<16x32xf32>
    %c0_32 = arith.constant 0 : index
    %c0_33 = arith.constant 0 : index
    %c0_34 = arith.constant 0 : index
    %45 = vector.load %arg14[%c0_32, %c0_33, %c0_34] : memref<1x1x32xf32, #tpu.memory_space<vmem>>, vector<1x1x32xf32>
    %46 = vector.shape_cast %45 : vector<1x1x32xf32> to vector<1x32xf32>
    %c0_35 = arith.constant 0 : index
    %c0_36 = arith.constant 0 : index
    %c0_37 = arith.constant 0 : index
    %47 = vector.load %arg15[%c0_35, %c0_36, %c0_37] : memref<1x1x32xf32, #tpu.memory_space<vmem>>, vector<1x1x32xf32>
    %48 = vector.shape_cast %47 : vector<1x1x32xf32> to vector<1x32xf32>
    %cst_38 = arith.constant dense<0.000000e+00> : vector<16xf32>
    %49 = vector.multi_reduction <add>, %44, %cst_38 [1] : vector<16x32xf32> to vector<16xf32>
    %50 = vector.shape_cast %49 : vector<16xf32> to vector<16x1xf32>
    %cst_39 = arith.constant 3.200000e+01 : f32
    %51 = vector.broadcast %cst_39 : f32 to vector<16x1xf32>
    %52 = arith.divf %50, %51 : vector<16x1xf32>
    %53 = vector.broadcast %52 : vector<16x1xf32> to vector<16x32xf32>
    %54 = arith.subf %44, %53 : vector<16x32xf32>
    %55 = arith.mulf %54, %54 : vector<16x32xf32>
    %cst_40 = arith.constant dense<0.000000e+00> : vector<16xf32>
    %56 = vector.multi_reduction <add>, %55, %cst_40 [1] : vector<16x32xf32> to vector<16xf32>
    %57 = vector.shape_cast %56 : vector<16xf32> to vector<16x1xf32>
    %cst_41 = arith.constant 3.200000e+01 : f32
    %58 = vector.broadcast %cst_41 : f32 to vector<16x1xf32>
    %59 = arith.divf %57, %58 : vector<16x1xf32>
    %60 = vector.broadcast %52 : vector<16x1xf32> to vector<16x32xf32>
    %61 = arith.subf %44, %60 : vector<16x32xf32>
    %cst_42 = arith.constant 9.99999974E-6 : f32
    %62 = vector.broadcast %cst_42 : f32 to vector<16x1xf32>
    %63 = arith.addf %59, %62 : vector<16x1xf32>
    %64 = math.rsqrt %63 : vector<16x1xf32>
    %65 = vector.broadcast %64 : vector<16x1xf32> to vector<16x32xf32>
    %66 = arith.mulf %61, %65 : vector<16x32xf32>
    %67 = vector.broadcast %46 : vector<1x32xf32> to vector<16x32xf32>
    %68 = arith.mulf %66, %67 : vector<16x32xf32>
    %69 = vector.broadcast %48 : vector<1x32xf32> to vector<16x32xf32>
    %70 = arith.addf %68, %69 : vector<16x32xf32>
    %c0_43 = arith.constant 0 : index
    %c0_44 = arith.constant 0 : index
    %71 = vector.load %arg34[%c0_43, %c0_44] : memref<16x32xf32, #tpu.memory_space<vmem>>, vector<16x32xf32>
    %cst_45 = arith.constant dense<0.000000e+00> : vector<16x32xf32>
    %72 = tpu.matmul %9, %70, %cst_45 {dimension_numbers = #tpu.dot_dimension_numbers<[0], [0], [1], [1], [0, 1, 1, 1], [], []>} : vector<16x16xf32>, vector<16x32xf32>, vector<16x32xf32> -> vector<16x32xf32>
    %73 = arith.addf %71, %72 : vector<16x32xf32>
    %c0_46 = arith.constant 0 : index
    %c0_47 = arith.constant 0 : index
    %74 = vector.load %arg34[%c0_46, %c0_47] : memref<16x32xf32, #tpu.memory_space<vmem>>, vector<16x32xf32>
    tpu.vector_store %arg34[%c0_46, %c0_47], %73 {strides = array<i32>} : memref<16x32xf32, #tpu.memory_space<vmem>>, vector<16x32xf32>,
    %c1_i32 = arith.constant 1 : i32
    %75 = arith.cmpi eq, %arg1, %c1_i32 : i32
    %76 = arith.extui %75 : i1 to i32
    %c0_i32_48 = arith.constant 0 : i32
    %77 = arith.cmpi ne, %76, %c0_i32_48 : i32
    scf.if %77 {
      %c0_49 = arith.constant 0 : index
      %c0_50 = arith.constant 0 : index
      %78 = vector.load %arg34[%c0_49, %c0_50] : memref<16x32xf32, #tpu.memory_space<vmem>>, vector<16x32xf32>
      %c0_51 = arith.constant 0 : index
      %c0_52 = arith.constant 0 : index
      %79 = vector.load %arg6[%c0_51, %c0_52] : memref<16x1xf32, #tpu.memory_space<vmem>>, vector<16x1xf32>
      %80 = vector.broadcast %79 : vector<16x1xf32> to vector<16x32xf32>
      %81 = arith.mulf %78, %80 : vector<16x32xf32>
      %c0_53 = arith.constant 0 : index
      %c0_54 = arith.constant 0 : index
      %c0_55 = arith.constant 0 : index
      %82 = vector.load %arg14[%c0_53, %c0_54, %c0_55] : memref<1x1x32xf32, #tpu.memory_space<vmem>>, vector<1x1x32xf32>
      %83 = vector.shape_cast %82 : vector<1x1x32xf32> to vector<1x32xf32>
      %c0_56 = arith.constant 0 : index
      %c0_57 = arith.constant 0 : index
      %c0_58 = arith.constant 0 : index
      %84 = vector.load %arg15[%c0_56, %c0_57, %c0_58] : memref<1x1x32xf32, #tpu.memory_space<vmem>>, vector<1x1x32xf32>
      %85 = vector.shape_cast %84 : vector<1x1x32xf32> to vector<1x32xf32>
      %cst_59 = arith.constant dense<0.000000e+00> : vector<16xf32>
      %86 = vector.multi_reduction <add>, %81, %cst_59 [1] : vector<16x32xf32> to vector<16xf32>
      %87 = vector.shape_cast %86 : vector<16xf32> to vector<16x1xf32>
      %cst_60 = arith.constant 3.200000e+01 : f32
      %88 = vector.broadcast %cst_60 : f32 to vector<16x1xf32>
      %89 = arith.divf %87, %88 : vector<16x1xf32>
      %90 = vector.broadcast %89 : vector<16x1xf32> to vector<16x32xf32>
      %91 = arith.subf %81, %90 : vector<16x32xf32>
      %92 = arith.mulf %91, %91 : vector<16x32xf32>
      %cst_61 = arith.constant dense<0.000000e+00> : vector<16xf32>
      %93 = vector.multi_reduction <add>, %92, %cst_61 [1] : vector<16x32xf32> to vector<16xf32>
      %94 = vector.shape_cast %93 : vector<16xf32> to vector<16x1xf32>
      %cst_62 = arith.constant 3.200000e+01 : f32
      %95 = vector.broadcast %cst_62 : f32 to vector<16x1xf32>
      %96 = arith.divf %94, %95 : vector<16x1xf32>
      %97 = vector.broadcast %89 : vector<16x1xf32> to vector<16x32xf32>
      %98 = arith.subf %81, %97 : vector<16x32xf32>
      %cst_63 = arith.constant 9.99999974E-6 : f32
      %99 = vector.broadcast %cst_63 : f32 to vector<16x1xf32>
      %100 = arith.addf %96, %99 : vector<16x1xf32>
      %101 = math.rsqrt %100 : vector<16x1xf32>
      %102 = vector.broadcast %101 : vector<16x1xf32> to vector<16x32xf32>
      %103 = arith.mulf %98, %102 : vector<16x32xf32>
      %104 = vector.broadcast %83 : vector<1x32xf32> to vector<16x32xf32>
      %105 = arith.mulf %103, %104 : vector<16x32xf32>
      %106 = vector.broadcast %85 : vector<1x32xf32> to vector<16x32xf32>
      %107 = arith.addf %105, %106 : vector<16x32xf32>
      %c0_64 = arith.constant 0 : index
      %c0_65 = arith.constant 0 : index
      %c0_66 = arith.constant 0 : index
      %108 = vector.load %arg16[%c0_64, %c0_65, %c0_66] : memref<1x1x32xf32, #tpu.memory_space<vmem>>, vector<1x1x32xf32>
      %109 = vector.shape_cast %108 : vector<1x1x32xf32> to vector<1x32xf32>
      %c0_67 = arith.constant 0 : index
      %c0_68 = arith.constant 0 : index
      %c0_69 = arith.constant 0 : index
      %110 = vector.load %arg17[%c0_67, %c0_68, %c0_69] : memref<1x1x32xf32, #tpu.memory_space<vmem>>, vector<1x1x32xf32>
      %111 = vector.shape_cast %110 : vector<1x1x32xf32> to vector<1x32xf32>
      %cst_70 = arith.constant dense<0.000000e+00> : vector<16xf32>
      %112 = vector.multi_reduction <add>, %8, %cst_70 [1] : vector<16x32xf32> to vector<16xf32>
      %113 = vector.shape_cast %112 : vector<16xf32> to vector<16x1xf32>
      %cst_71 = arith.constant 3.200000e+01 : f32
      %114 = vector.broadcast %cst_71 : f32 to vector<16x1xf32>
      %115 = arith.divf %113, %114 : vector<16x1xf32>
      %116 = vector.broadcast %115 : vector<16x1xf32> to vector<16x32xf32>
      %117 = arith.subf %8, %116 : vector<16x32xf32>
      %118 = arith.mulf %117, %117 : vector<16x32xf32>
      %cst_72 = arith.constant dense<0.000000e+00> : vector<16xf32>
      %119 = vector.multi_reduction <add>, %118, %cst_72 [1] : vector<16x32xf32> to vector<16xf32>
      %120 = vector.shape_cast %119 : vector<16xf32> to vector<16x1xf32>
      %cst_73 = arith.constant 3.200000e+01 : f32
      %121 = vector.broadcast %cst_73 : f32 to vector<16x1xf32>
      %122 = arith.divf %120, %121 : vector<16x1xf32>
      %123 = vector.broadcast %115 : vector<16x1xf32> to vector<16x32xf32>
      %124 = arith.subf %8, %123 : vector<16x32xf32>
      %cst_74 = arith.constant 9.99999974E-6 : f32
      %125 = vector.broadcast %cst_74 : f32 to vector<16x1xf32>
      %126 = arith.addf %122, %125 : vector<16x1xf32>
      %127 = math.rsqrt %126 : vector<16x1xf32>
      %128 = vector.broadcast %127 : vector<16x1xf32> to vector<16x32xf32>
      %129 = arith.mulf %124, %128 : vector<16x32xf32>
      %130 = vector.broadcast %109 : vector<1x32xf32> to vector<16x32xf32>
      %131 = arith.mulf %129, %130 : vector<16x32xf32>
      %132 = vector.broadcast %111 : vector<1x32xf32> to vector<16x32xf32>
      %133 = arith.addf %131, %132 : vector<16x32xf32>
      %134 = tpu.concatenate %133, %107 in 1 : vector<16x32xf32>, vector<16x32xf32> -> vector<16x64xf32>
      %c0_75 = arith.constant 0 : index
      %c0_76 = arith.constant 0 : index
      %c0_77 = arith.constant 0 : index
      %135 = vector.load %arg20[%c0_75, %c0_76, %c0_77] : memref<1x64x64xf32, #tpu.memory_space<vmem>>, vector<1x64x64xf32>
      %136 = vector.shape_cast %135 : vector<1x64x64xf32> to vector<64x64xf32>
      %cst_78 = arith.constant dense<0.000000e+00> : vector<16x64xf32>
      %137 = tpu.matmul %134, %136, %cst_78 {dimension_numbers = #tpu.dot_dimension_numbers<[1], [0], [0], [1], [0, 0, 1, 1], [], []>} : vector<16x64xf32>, vector<64x64xf32>, vector<16x64xf32> -> vector<16x64xf32>
      %c0_79 = arith.constant 0 : index
      %c0_80 = arith.constant 0 : index
      %c0_81 = arith.constant 0 : index
      %138 = vector.load %arg21[%c0_79, %c0_80, %c0_81] : memref<1x1x64xf32, #tpu.memory_space<vmem>>, vector<1x1x64xf32>
      %139 = vector.shape_cast %138 : vector<1x1x64xf32> to vector<1x64xf32>
      %140 = vector.broadcast %139 : vector<1x64xf32> to vector<16x64xf32>
      %141 = arith.addf %137, %140 : vector<16x64xf32>
      %142 = arith.negf %141 : vector<16x64xf32>
      %143 = math.exp %142 : vector<16x64xf32>
      %cst_82 = arith.constant 1.000000e+00 : f32
      %144 = vector.broadcast %cst_82 : f32 to vector<16x64xf32>
      %145 = arith.addf %144, %143 : vector<16x64xf32>
      %146 = arith.divf %144, %145 : vector<16x64xf32>
      %147 = arith.mulf %141, %146 : vector<16x64xf32>
      %c0_83 = arith.constant 0 : index
      %c0_84 = arith.constant 0 : index
      %c0_85 = arith.constant 0 : index
      %148 = vector.load %arg22[%c0_83, %c0_84, %c0_85] : memref<1x64x32xf32, #tpu.memory_space<vmem>>, vector<1x64x32xf32>
      %149 = vector.shape_cast %148 : vector<1x64x32xf32> to vector<64x32xf32>
      %cst_86 = arith.constant dense<0.000000e+00> : vector<16x32xf32>
      %150 = tpu.matmul %147, %149, %cst_86 {dimension_numbers = #tpu.dot_dimension_numbers<[1], [0], [0], [1], [0, 0, 1, 1], [], []>} : vector<16x64xf32>, vector<64x32xf32>, vector<16x32xf32> -> vector<16x32xf32>
      %c0_87 = arith.constant 0 : index
      %c0_88 = arith.constant 0 : index
      %c0_89 = arith.constant 0 : index
      %151 = vector.load %arg23[%c0_87, %c0_88, %c0_89] : memref<1x1x32xf32, #tpu.memory_space<vmem>>, vector<1x1x32xf32>
      %152 = vector.shape_cast %151 : vector<1x1x32xf32> to vector<1x32xf32>
      %153 = vector.broadcast %152 : vector<1x32xf32> to vector<16x32xf32>
      %154 = arith.addf %150, %153 : vector<16x32xf32>
      %c0_90 = arith.constant 0 : index
      %c0_91 = arith.constant 0 : index
      %c0_92 = arith.constant 0 : index
      %155 = vector.load %arg18[%c0_90, %c0_91, %c0_92] : memref<1x1x32xf32, #tpu.memory_space<vmem>>, vector<1x1x32xf32>
      %156 = vector.shape_cast %155 : vector<1x1x32xf32> to vector<1x32xf32>
      %c0_93 = arith.constant 0 : index
      %c0_94 = arith.constant 0 : index
      %c0_95 = arith.constant 0 : index
      %157 = vector.load %arg19[%c0_93, %c0_94, %c0_95] : memref<1x1x32xf32, #tpu.memory_space<vmem>>, vector<1x1x32xf32>
      %158 = vector.shape_cast %157 : vector<1x1x32xf32> to vector<1x32xf32>
      %cst_96 = arith.constant dense<0.000000e+00> : vector<16xf32>
      %159 = vector.multi_reduction <add>, %154, %cst_96 [1] : vector<16x32xf32> to vector<16xf32>
      %160 = vector.shape_cast %159 : vector<16xf32> to vector<16x1xf32>
      %cst_97 = arith.constant 3.200000e+01 : f32
      %161 = vector.broadcast %cst_97 : f32 to vector<16x1xf32>
      %162 = arith.divf %160, %161 : vector<16x1xf32>
      %163 = vector.broadcast %162 : vector<16x1xf32> to vector<16x32xf32>
      %164 = arith.subf %154, %163 : vector<16x32xf32>
      %165 = arith.mulf %164, %164 : vector<16x32xf32>
      %cst_98 = arith.constant dense<0.000000e+00> : vector<16xf32>
      %166 = vector.multi_reduction <add>, %165, %cst_98 [1] : vector<16x32xf32> to vector<16xf32>
      %167 = vector.shape_cast %166 : vector<16xf32> to vector<16x1xf32>
      %cst_99 = arith.constant 3.200000e+01 : f32
      %168 = vector.broadcast %cst_99 : f32 to vector<16x1xf32>
      %169 = arith.divf %167, %168 : vector<16x1xf32>
      %170 = vector.broadcast %162 : vector<16x1xf32> to vector<16x32xf32>
      %171 = arith.subf %154, %170 : vector<16x32xf32>
      %cst_100 = arith.constant 9.99999974E-6 : f32
      %172 = vector.broadcast %cst_100 : f32 to vector<16x1xf32>
      %173 = arith.addf %169, %172 : vector<16x1xf32>
      %174 = math.rsqrt %173 : vector<16x1xf32>
      %175 = vector.broadcast %174 : vector<16x1xf32> to vector<16x32xf32>
      %176 = arith.mulf %171, %175 : vector<16x32xf32>
      %177 = vector.broadcast %156 : vector<1x32xf32> to vector<16x32xf32>
      %178 = arith.mulf %176, %177 : vector<16x32xf32>
      %179 = vector.broadcast %158 : vector<1x32xf32> to vector<16x32xf32>
      %180 = arith.addf %178, %179 : vector<16x32xf32>
      %181 = arith.addf %8, %180 : vector<16x32xf32>
      %c0_101 = arith.constant 0 : index
      %c0_102 = arith.constant 0 : index
      %182 = vector.load %arg33[%c0_101, %c0_102] : memref<16x32xf32, #tpu.memory_space<vmem>>, vector<16x32xf32>
      tpu.vector_store %arg33[%c0_101, %c0_102], %181 {strides = array<i32>} : memref<16x32xf32, #tpu.memory_space<vmem>>, vector<16x32xf32>,
      %c1_i32_103 = arith.constant 1 : i32
      %183 = arith.addi %arg0, %c1_i32_103 : i32
      %184 = arith.index_cast %183 : i32 to index
      %c0_104 = arith.constant 0 : index
      %c0_105 = arith.constant 0 : index
      %185 = vector.load %arg35[%184, %c0_104, %c0_105] : memref<6x16x32xf32, #tpu.memory_space<vmem>>, vector<1x16x32xf32>
      %186 = vector.shape_cast %185 : vector<1x16x32xf32> to vector<16x32xf32>
      %187 = vector.shape_cast %181 : vector<16x32xf32> to vector<1x16x32xf32>
      tpu.vector_store %arg35[%184, %c0_104, %c0_105], %187 {strides = array<i32>} : memref<6x16x32xf32, #tpu.memory_space<vmem>>, vector<1x16x32xf32>,
      %c4_i32 = arith.constant 4 : i32
      %188 = arith.cmpi eq, %arg0, %c4_i32 : i32
      %189 = arith.extui %188 : i1 to i32
      %c0_i32_106 = arith.constant 0 : i32
      %190 = arith.cmpi ne, %189, %c0_i32_106 : i32
      scf.if %190 {
        %c0_107 = arith.constant 0 : index
        %c0_108 = arith.constant 0 : index
        %c0_109 = arith.constant 0 : index
        %191 = vector.load %arg35[%c0_107, %c0_108, %c0_109] : memref<6x16x32xf32, #tpu.memory_space<vmem>>, vector<1x16x32xf32>
        %192 = vector.shape_cast %191 : vector<1x16x32xf32> to vector<16x32xf32>
        %c1 = arith.constant 1 : index
        %c0_110 = arith.constant 0 : index
        %c0_111 = arith.constant 0 : index
        %193 = vector.load %arg35[%c1, %c0_110, %c0_111] : memref<6x16x32xf32, #tpu.memory_space<vmem>>, vector<1x16x32xf32>
        %194 = vector.shape_cast %193 : vector<1x16x32xf32> to vector<16x32xf32>
        %c2 = arith.constant 2 : index
        %c0_112 = arith.constant 0 : index
        %c0_113 = arith.constant 0 : index
        %195 = vector.load %arg35[%c2, %c0_112, %c0_113] : memref<6x16x32xf32, #tpu.memory_space<vmem>>, vector<1x16x32xf32>
        %196 = vector.shape_cast %195 : vector<1x16x32xf32> to vector<16x32xf32>
        %c3 = arith.constant 3 : index
        %c0_114 = arith.constant 0 : index
        %c0_115 = arith.constant 0 : index
        %197 = vector.load %arg35[%c3, %c0_114, %c0_115] : memref<6x16x32xf32, #tpu.memory_space<vmem>>, vector<1x16x32xf32>
        %198 = vector.shape_cast %197 : vector<1x16x32xf32> to vector<16x32xf32>
        %c4 = arith.constant 4 : index
        %c0_116 = arith.constant 0 : index
        %c0_117 = arith.constant 0 : index
        %199 = vector.load %arg35[%c4, %c0_116, %c0_117] : memref<6x16x32xf32, #tpu.memory_space<vmem>>, vector<1x16x32xf32>
        %200 = vector.shape_cast %199 : vector<1x16x32xf32> to vector<16x32xf32>
        %c5 = arith.constant 5 : index
        %c0_118 = arith.constant 0 : index
        %c0_119 = arith.constant 0 : index
        %201 = vector.load %arg35[%c5, %c0_118, %c0_119] : memref<6x16x32xf32, #tpu.memory_space<vmem>>, vector<1x16x32xf32>
        %202 = vector.shape_cast %201 : vector<1x16x32xf32> to vector<16x32xf32>
        %203 = tpu.concatenate %192, %194, %196, %198, %200, %202 in 1 : vector<16x32xf32>, vector<16x32xf32>, vector<16x32xf32>, vector<16x32xf32>, vector<16x32xf32>, vector<16x32xf32> -> vector<16x192xf32>
        %204 = arith.negf %203 : vector<16x192xf32>
        %205 = math.exp %204 : vector<16x192xf32>
        %cst_120 = arith.constant 1.000000e+00 : f32
        %206 = vector.broadcast %cst_120 : f32 to vector<16x192xf32>
        %207 = arith.addf %206, %205 : vector<16x192xf32>
        %208 = arith.divf %206, %207 : vector<16x192xf32>
        %209 = arith.mulf %203, %208 : vector<16x192xf32>
        %c0_121 = arith.constant 0 : index
        %c0_122 = arith.constant 0 : index
        %210 = vector.load %arg24[%c0_121, %c0_122] : memref<192x256xf32, #tpu.memory_space<vmem>>, vector<192x256xf32>
        %cst_123 = arith.constant dense<0.000000e+00> : vector<16x256xf32>
        %211 = tpu.matmul %209, %210, %cst_123 {dimension_numbers = #tpu.dot_dimension_numbers<[1], [0], [0], [1], [0, 0, 1, 1], [], []>} : vector<16x192xf32>, vector<192x256xf32>, vector<16x256xf32> -> vector<16x256xf32>
        %c0_124 = arith.constant 0 : index
        %c0_125 = arith.constant 0 : index
        %212 = vector.load %arg25[%c0_124, %c0_125] : memref<1x256xf32, #tpu.memory_space<vmem>>, vector<1x256xf32>
        %213 = vector.broadcast %212 : vector<1x256xf32> to vector<16x256xf32>
        %214 = arith.addf %211, %213 : vector<16x256xf32>
        %215 = arith.negf %214 : vector<16x256xf32>
        %216 = math.exp %215 : vector<16x256xf32>
        %cst_126 = arith.constant 1.000000e+00 : f32
        %217 = vector.broadcast %cst_126 : f32 to vector<16x256xf32>
        %218 = arith.addf %217, %216 : vector<16x256xf32>
        %219 = arith.divf %217, %218 : vector<16x256xf32>
        %220 = arith.mulf %214, %219 : vector<16x256xf32>
        %c0_127 = arith.constant 0 : index
        %c0_128 = arith.constant 0 : index
        %221 = vector.load %arg26[%c0_127, %c0_128] : memref<256x256xf32, #tpu.memory_space<vmem>>, vector<256x256xf32>
        %cst_129 = arith.constant dense<0.000000e+00> : vector<16x256xf32>
        %222 = tpu.matmul %220, %221, %cst_129 {dimension_numbers = #tpu.dot_dimension_numbers<[1], [0], [0], [1], [0, 0, 1, 1], [], []>} : vector<16x256xf32>, vector<256x256xf32>, vector<16x256xf32> -> vector<16x256xf32>
        %c0_130 = arith.constant 0 : index
        %c0_131 = arith.constant 0 : index
        %223 = vector.load %arg27[%c0_130, %c0_131] : memref<1x256xf32, #tpu.memory_space<vmem>>, vector<1x256xf32>
        %224 = vector.broadcast %223 : vector<1x256xf32> to vector<16x256xf32>
        %225 = arith.addf %222, %224 : vector<16x256xf32>
        %226 = arith.negf %225 : vector<16x256xf32>
        %227 = math.exp %226 : vector<16x256xf32>
        %cst_132 = arith.constant 1.000000e+00 : f32
        %228 = vector.broadcast %cst_132 : f32 to vector<16x256xf32>
        %229 = arith.addf %228, %227 : vector<16x256xf32>
        %230 = arith.divf %228, %229 : vector<16x256xf32>
        %231 = arith.mulf %225, %230 : vector<16x256xf32>
        %c0_133 = arith.constant 0 : index
        %c0_134 = arith.constant 0 : index
        %232 = vector.load %arg28[%c0_133, %c0_134] : memref<256x256xf32, #tpu.memory_space<vmem>>, vector<256x256xf32>
        %cst_135 = arith.constant dense<0.000000e+00> : vector<16x256xf32>
        %233 = tpu.matmul %231, %232, %cst_135 {dimension_numbers = #tpu.dot_dimension_numbers<[1], [0], [0], [1], [0, 0, 1, 1], [], []>} : vector<16x256xf32>, vector<256x256xf32>, vector<16x256xf32> -> vector<16x256xf32>
        %c0_136 = arith.constant 0 : index
        %c0_137 = arith.constant 0 : index
        %234 = vector.load %arg29[%c0_136, %c0_137] : memref<1x256xf32, #tpu.memory_space<vmem>>, vector<1x256xf32>
        %235 = vector.broadcast %234 : vector<1x256xf32> to vector<16x256xf32>
        %236 = arith.addf %233, %235 : vector<16x256xf32>
        %237 = arith.negf %236 : vector<16x256xf32>
        %238 = math.exp %237 : vector<16x256xf32>
        %cst_138 = arith.constant 1.000000e+00 : f32
        %239 = vector.broadcast %cst_138 : f32 to vector<16x256xf32>
        %240 = arith.addf %239, %238 : vector<16x256xf32>
        %241 = arith.divf %239, %240 : vector<16x256xf32>
        %242 = arith.mulf %236, %241 : vector<16x256xf32>
        %c0_139 = arith.constant 0 : index
        %c0_140 = arith.constant 0 : index
        %243 = vector.load %arg7[%c0_139, %c0_140] : memref<2x16xf32, #tpu.memory_space<vmem>>, vector<2x16xf32>
        %cst_141 = arith.constant dense<0.000000e+00> : vector<2x256xf32>
        %244 = tpu.matmul %243, %242, %cst_141 {dimension_numbers = #tpu.dot_dimension_numbers<[1], [0], [0], [1], [0, 0, 1, 1], [], []>} : vector<2x16xf32>, vector<16x256xf32>, vector<2x256xf32> -> vector<2x256xf32>
        %c0_142 = arith.constant 0 : index
        %c0_143 = arith.constant 0 : index
        %245 = vector.load %arg8[%c0_142, %c0_143] : memref<2x1xf32, #tpu.memory_space<vmem>>, vector<2x1xf32>
        %246 = vector.broadcast %245 : vector<2x1xf32> to vector<2x256xf32>
        %247 = arith.mulf %244, %246 : vector<2x256xf32>
        %c0_144 = arith.constant 0 : index
        %c0_145 = arith.constant 0 : index
        %248 = vector.load %arg30[%c0_144, %c0_145] : memref<256x1xf32, #tpu.memory_space<vmem>>, vector<256x1xf32>
        %cst_146 = arith.constant dense<0.000000e+00> : vector<2x1xf32>
        %249 = tpu.matmul %247, %248, %cst_146 {dimension_numbers = #tpu.dot_dimension_numbers<[1], [0], [0], [1], [0, 0, 1, 1], [], []>} : vector<2x256xf32>, vector<256x1xf32>, vector<2x1xf32> -> vector<2x1xf32>
        %c0_147 = arith.constant 0 : index
        %c0_148 = arith.constant 0 : index
        %250 = vector.load %arg31[%c0_147, %c0_148] : memref<1x1xf32, #tpu.memory_space<vmem>>, vector<1x1xf32>
        %251 = vector.broadcast %250 : vector<1x1xf32> to vector<2x1xf32>
        %252 = arith.addf %249, %251 : vector<2x1xf32>
        %c0_149 = arith.constant 0 : index
        %c0_150 = arith.constant 0 : index
        %253 = vector.load %arg32[%c0_149, %c0_150] : memref<2x1xf32, #tpu.memory_space<vmem>>, vector<2x1xf32>
        tpu.vector_store %arg32[%c0_149, %c0_150], %252 {strides = array<i32>} : memref<2x1xf32, #tpu.memory_space<vmem>>, vector<2x1xf32>,
      } else {
      }
    } else {
    }
    return
  }
  func.func @transform_0(%arg0: i32, %arg1: i32) -> (i32, i32) {
    %c0_i32 = arith.constant 0 : i32
    %c0_i32_0 = arith.constant 0 : i32
    return %arg1, %c0_i32 : i32, i32
  }
  func.func @transform_1(%arg0: i32, %arg1: i32) -> (i32, i32) {
    %c0_i32 = arith.constant 0 : i32
    %c0_i32_0 = arith.constant 0 : i32
    return %arg1, %c0_i32 : i32, i32
  }
  func.func @transform_2(%arg0: i32, %arg1: i32) -> (i32, i32) {
    %c0_i32 = arith.constant 0 : i32
    %c0_i32_0 = arith.constant 0 : i32
    return %arg1, %c0_i32 : i32, i32
  }
  func.func @transform_3(%arg0: i32, %arg1: i32) -> (i32, i32) {
    %c0_i32 = arith.constant 0 : i32
    %c0_i32_0 = arith.constant 0 : i32
    %c0_i32_1 = arith.constant 0 : i32
    return %c0_i32, %c0_i32_0 : i32, i32
  }
  func.func @transform_4(%arg0: i32, %arg1: i32) -> (i32, i32) {
    %c0_i32 = arith.constant 0 : i32
    %c0_i32_0 = arith.constant 0 : i32
    %c0_i32_1 = arith.constant 0 : i32
    return %c0_i32, %c0_i32_0 : i32, i32
  }
  func.func @transform_5(%arg0: i32, %arg1: i32) -> (i32, i32) {
    %c0_i32 = arith.constant 0 : i32
    %c0_i32_0 = arith.constant 0 : i32
    %c0_i32_1 = arith.constant 0 : i32
    return %c0_i32, %c0_i32_0 : i32, i32
  }
  func.func @transform_6(%arg0: i32, %arg1: i32) -> (i32, i32) {
    %c0_i32 = arith.constant 0 : i32
    %c0_i32_0 = arith.constant 0 : i32
    %c0_i32_1 = arith.constant 0 : i32
    return %c0_i32, %c0_i32_0 : i32, i32
  }
  func.func @transform_7(%arg0: i32, %arg1: i32) -> (i32, i32, i32) {
    %c0_i32 = arith.constant 0 : i32
    %c0_i32_0 = arith.constant 0 : i32
    %c0_i32_1 = arith.constant 0 : i32
    return %arg0, %c0_i32, %c0_i32_0 : i32, i32, i32
  }
  func.func @transform_8(%arg0: i32, %arg1: i32) -> (i32, i32, i32) {
    %c0_i32 = arith.constant 0 : i32
    %c0_i32_0 = arith.constant 0 : i32
    %c0_i32_1 = arith.constant 0 : i32
    return %arg0, %c0_i32, %c0_i32_0 : i32, i32, i32
  }
  func.func @transform_9(%arg0: i32, %arg1: i32) -> (i32, i32, i32) {
    %c0_i32 = arith.constant 0 : i32
    %c0_i32_0 = arith.constant 0 : i32
    %c0_i32_1 = arith.constant 0 : i32
    return %arg0, %c0_i32, %c0_i32_0 : i32, i32, i32
  }
  func.func @transform_10(%arg0: i32, %arg1: i32) -> (i32, i32, i32) {
    %c0_i32 = arith.constant 0 : i32
    %c0_i32_0 = arith.constant 0 : i32
    %c0_i32_1 = arith.constant 0 : i32
    return %arg0, %c0_i32, %c0_i32_0 : i32, i32, i32
  }
  func.func @transform_11(%arg0: i32, %arg1: i32) -> (i32, i32, i32) {
    %c0_i32 = arith.constant 0 : i32
    %c0_i32_0 = arith.constant 0 : i32
    %c0_i32_1 = arith.constant 0 : i32
    return %arg0, %c0_i32, %c0_i32_0 : i32, i32, i32
  }
  func.func @transform_12(%arg0: i32, %arg1: i32) -> (i32, i32, i32) {
    %c0_i32 = arith.constant 0 : i32
    %c0_i32_0 = arith.constant 0 : i32
    %c0_i32_1 = arith.constant 0 : i32
    return %arg0, %c0_i32, %c0_i32_0 : i32, i32, i32
  }
  func.func @transform_13(%arg0: i32, %arg1: i32) -> (i32, i32, i32) {
    %c0_i32 = arith.constant 0 : i32
    %c0_i32_0 = arith.constant 0 : i32
    %c0_i32_1 = arith.constant 0 : i32
    return %arg0, %c0_i32, %c0_i32_0 : i32, i32, i32
  }
  func.func @transform_14(%arg0: i32, %arg1: i32) -> (i32, i32, i32) {
    %c0_i32 = arith.constant 0 : i32
    %c0_i32_0 = arith.constant 0 : i32
    %c0_i32_1 = arith.constant 0 : i32
    return %arg0, %c0_i32, %c0_i32_0 : i32, i32, i32
  }
  func.func @transform_15(%arg0: i32, %arg1: i32) -> (i32, i32, i32) {
    %c0_i32 = arith.constant 0 : i32
    %c0_i32_0 = arith.constant 0 : i32
    %c0_i32_1 = arith.constant 0 : i32
    return %arg0, %c0_i32, %c0_i32_0 : i32, i32, i32
  }
  func.func @transform_16(%arg0: i32, %arg1: i32) -> (i32, i32, i32) {
    %c0_i32 = arith.constant 0 : i32
    %c0_i32_0 = arith.constant 0 : i32
    %c0_i32_1 = arith.constant 0 : i32
    return %arg0, %c0_i32, %c0_i32_0 : i32, i32, i32
  }
  func.func @transform_17(%arg0: i32, %arg1: i32) -> (i32, i32, i32) {
    %c0_i32 = arith.constant 0 : i32
    %c0_i32_0 = arith.constant 0 : i32
    %c0_i32_1 = arith.constant 0 : i32
    return %arg0, %c0_i32, %c0_i32_0 : i32, i32, i32
  }
  func.func @transform_18(%arg0: i32, %arg1: i32) -> (i32, i32, i32) {
    %c0_i32 = arith.constant 0 : i32
    %c0_i32_0 = arith.constant 0 : i32
    %c0_i32_1 = arith.constant 0 : i32
    return %arg0, %c0_i32, %c0_i32_0 : i32, i32, i32
  }
  func.func @transform_19(%arg0: i32, %arg1: i32) -> (i32, i32, i32) {
    %c0_i32 = arith.constant 0 : i32
    %c0_i32_0 = arith.constant 0 : i32
    %c0_i32_1 = arith.constant 0 : i32
    return %arg0, %c0_i32, %c0_i32_0 : i32, i32, i32
  }
  func.func @transform_20(%arg0: i32, %arg1: i32) -> (i32, i32, i32) {
    %c0_i32 = arith.constant 0 : i32
    %c0_i32_0 = arith.constant 0 : i32
    %c0_i32_1 = arith.constant 0 : i32
    return %arg0, %c0_i32, %c0_i32_0 : i32, i32, i32
  }
  func.func @transform_21(%arg0: i32, %arg1: i32) -> (i32, i32, i32) {
    %c0_i32 = arith.constant 0 : i32
    %c0_i32_0 = arith.constant 0 : i32
    %c0_i32_1 = arith.constant 0 : i32
    return %arg0, %c0_i32, %c0_i32_0 : i32, i32, i32
  }
  func.func @transform_22(%arg0: i32, %arg1: i32) -> (i32, i32) {
    %c0_i32 = arith.constant 0 : i32
    %c0_i32_0 = arith.constant 0 : i32
    %c0_i32_1 = arith.constant 0 : i32
    return %c0_i32, %c0_i32_0 : i32, i32
  }
  func.func @transform_23(%arg0: i32, %arg1: i32) -> (i32, i32) {
    %c0_i32 = arith.constant 0 : i32
    %c0_i32_0 = arith.constant 0 : i32
    %c0_i32_1 = arith.constant 0 : i32
    return %c0_i32, %c0_i32_0 : i32, i32
  }
  func.func @transform_24(%arg0: i32, %arg1: i32) -> (i32, i32) {
    %c0_i32 = arith.constant 0 : i32
    %c0_i32_0 = arith.constant 0 : i32
    %c0_i32_1 = arith.constant 0 : i32
    return %c0_i32, %c0_i32_0 : i32, i32
  }
  func.func @transform_25(%arg0: i32, %arg1: i32) -> (i32, i32) {
    %c0_i32 = arith.constant 0 : i32
    %c0_i32_0 = arith.constant 0 : i32
    %c0_i32_1 = arith.constant 0 : i32
    return %c0_i32, %c0_i32_0 : i32, i32
  }
  func.func @transform_26(%arg0: i32, %arg1: i32) -> (i32, i32) {
    %c0_i32 = arith.constant 0 : i32
    %c0_i32_0 = arith.constant 0 : i32
    %c0_i32_1 = arith.constant 0 : i32
    return %c0_i32, %c0_i32_0 : i32, i32
  }
  func.func @transform_27(%arg0: i32, %arg1: i32) -> (i32, i32) {
    %c0_i32 = arith.constant 0 : i32
    %c0_i32_0 = arith.constant 0 : i32
    %c0_i32_1 = arith.constant 0 : i32
    return %c0_i32, %c0_i32_0 : i32, i32
  }
  func.func @transform_28(%arg0: i32, %arg1: i32) -> (i32, i32) {
    %c0_i32 = arith.constant 0 : i32
    %c0_i32_0 = arith.constant 0 : i32
    %c0_i32_1 = arith.constant 0 : i32
    return %c0_i32, %c0_i32_0 : i32, i32
  }
  func.func @transform_29(%arg0: i32, %arg1: i32) -> (i32, i32) {
    %c0_i32 = arith.constant 0 : i32
    %c0_i32_0 = arith.constant 0 : i32
    %c0_i32_1 = arith.constant 0 : i32
    return %c0_i32, %c0_i32_0 : i32, i32
  }
  func.func @transform_30(%arg0: i32, %arg1: i32) -> (i32, i32) {
    %c0_i32 = arith.constant 0 : i32
    %c0_i32_0 = arith.constant 0 : i32
    %c0_i32_1 = arith.constant 0 : i32
    return %c0_i32, %c0_i32_0 : i32, i32
  }
}

</mosaic_0001>

<llo_original>
// kernel: egnn_ncp_forward.1
$region0: #{egnn_ncp_forward.1}
  #allocation0 [shape = 'u32[]', space=smem, size = 0x4, offset = 0x4, fixed_abs, tag = 'smem constant byte address 0x4 - core index']
  #allocation1 [shape = 'u32[144,128]{1,0:T(1,128)}', space=vmem, size = 0x12000, scoped, tag = 'internal scratch']
  #allocation2 [shape = 'f32[16,32]{1,0:T(8,128)}', space=vmem, size = 0x2000, scoped, tag = 'scratch operand']
  #allocation3 [shape = 'f32[16,32]{1,0:T(8,128)}', space=vmem, size = 0x2000, scoped, tag = 'scratch operand']
  #allocation4 [shape = 'f32[6,16,32]{2,1,0:T(8,128)}', space=vmem, size = 0xc000, scoped, tag = 'scratch operand']
  #allocation5 [shape = 'f32[1,1]{1,0:T(1,128)S(1)}', space=vmem, size = 0x200, scoped, tag = 'scoped memory for egnn_ncp_forward.1']
  %s0 = inlined_call_operand.smem [shape: u32[31], index: -1, kind: input, shape index: {}]
  %s1 = sld [smem:[%s0]]
  %s2 = scalar_lea.smem %s0, 1
  %s3 = sld [smem:[%s2]]
  %s4 = scalar_lea.smem %s0, 2
  %s5 = sld [smem:[%s4]]
  %s6 = scalar_lea.smem %s0, 3
  %s7 = sld [smem:[%s6]]
  %s8 = scalar_lea.smem %s0, 4
  %s9 = sld [smem:[%s8]]
  %s10 = scalar_lea.smem %s0, 5
  %s11 = sld [smem:[%s10]]
  %s12 = scalar_lea.smem %s0, 6
  %s13 = sld [smem:[%s12]]
  %s14 = scalar_lea.smem %s0, 7
  %s15 = sld [smem:[%s14]]
  %s16 = scalar_lea.smem %s0, 8
  %s17 = sld [smem:[%s16]]
  %s18 = scalar_lea.smem %s0, 9
  %s19 = sld [smem:[%s18]]
  %s20 = scalar_lea.smem %s0, 10
  %s21 = sld [smem:[%s20]]
  %s22 = scalar_lea.smem %s0, 11
  %s23 = sld [smem:[%s22]]
  %s24 = scalar_lea.smem %s0, 12
  %s25 = sld [smem:[%s24]]
  %s26 = scalar_lea.smem %s0, 13
  %s27 = sld [smem:[%s26]]
  %s28 = scalar_lea.smem %s0, 14
  %s29 = sld [smem:[%s28]]
  %s30 = scalar_lea.smem %s0, 15
  %s31 = sld [smem:[%s30]]
  %s32 = scalar_lea.smem %s0, 16
  %s33 = sld [smem:[%s32]]
  %s34 = scalar_lea.smem %s0, 17
  %s35 = sld [smem:[%s34]]
  %s36 = scalar_lea.smem %s0, 18
  %s37 = sld [smem:[%s36]]
  %s38 = scalar_lea.smem %s0, 19
  %s39 = sld [smem:[%s38]]
  %s40 = scalar_lea.smem %s0, 20
  %s41 = sld [smem:[%s40]]
  %s42 = scalar_lea.smem %s0, 21
  %s43 = sld [smem:[%s42]]
  %s44 = scalar_lea.smem %s0, 22
  %s45 = sld [smem:[%s44]]
  %s46 = scalar_lea.smem %s0, 23
  %s47 = sld [smem:[%s46]]
  %s48 = scalar_lea.smem %s0, 24
  %s49 = sld [smem:[%s48]]
  %s50 = scalar_lea.smem %s0, 25
  %s51 = sld [smem:[%s50]]
  %s52 = scalar_lea.smem %s0, 26
  %s53 = sld [smem:[%s52]]
  %s54 = scalar_lea.smem %s0, 27
  %s55 = sld [smem:[%s54]]
  %s56 = scalar_lea.smem %s0, 28
  %s57 = sld [smem:[%s56]]
  %s58 = scalar_lea.smem %s0, 29
  %s59 = sld [smem:[%s58]]
  %s60 = scalar_lea.smem %s0, 30
  %s61 = sld [smem:[%s60]]
  %s62 = sld [smem:[#allocation0]]
  $region169: #{egnn_ncp_forward.1} parent=0
    _
  %s64 = ssub.s32 1, %s62
  %s65 = scalar_select 0, %s64, %s62
  %v66 = vstv %s59
  %67 = vst [vmem:[#allocation5] sm:$0x1] %v66
  loop: start=0, step=1, limit=12
  $region2: #{egnn_ncp_forward.1} parent=0 // loop_pre_header
    _
  $region3: #{egnn_ncp_forward.1} parent=0 // loop_header
    %s69 = sphi 0, %s73
    %p70 = scmp.ge.s32.totalorder %s69, 12
    %s76 = sphi 0, %s88
    %s77 = sphi 0, %s84
    %s78 = sphi 0, %s76
    %s79 = sphi 0, %s77
    %s80 = sphi 0, %s78
    %s81 = sphi 0, %s79
    %s91 = sphi 0, %s93
    %s94 = sphi 0, %s91
    %s95 = sphi 0, %s94
    %s111 = sphi 0, %s95
    %s117 = sphi 0, %s119
    %s120 = sphi 0, %s117
    %s121 = sphi 0, %s120
    %s137 = sphi 0, %s121
    %s143 = sphi 0, %s145
    %s146 = sphi 0, %s143
    %s147 = sphi 0, %s146
    %s163 = sphi 0, %s147
    %s167 = sphi 0, %s167
    %s169 = sphi 0, %s167
    %s170 = sphi 0, %s169
    %s184 = sphi 0, %s170
    %s188 = sphi 0, %s188
    %s190 = sphi 0, %s188
    %s191 = sphi 0, %s190
    %s205 = sphi 0, %s191
    %s209 = sphi 0, %s209
    %s211 = sphi 0, %s209
    %s212 = sphi 0, %s211
    %s226 = sphi 0, %s212
    %s230 = sphi 0, %s230
    %s232 = sphi 0, %s230
    %s233 = sphi 0, %s232
    %s247 = sphi 0, %s233
    %s253 = sphi 0, %s255
    %s256 = sphi 0, %s253
    %s257 = sphi 0, %s256
    %s273 = sphi 0, %s257
    %s279 = sphi 0, %s281
    %s282 = sphi 0, %s279
    %s283 = sphi 0, %s282
    %s299 = sphi 0, %s283
    %s305 = sphi 0, %s307
    %s308 = sphi 0, %s305
    %s309 = sphi 0, %s308
    %s325 = sphi 0, %s309
    %s331 = sphi 0, %s333
    %s334 = sphi 0, %s331
    %s335 = sphi 0, %s334
    %s351 = sphi 0, %s335
    %s357 = sphi 0, %s359
    %s360 = sphi 0, %s357
    %s361 = sphi 0, %s360
    %s377 = sphi 0, %s361
    %s383 = sphi 0, %s385
    %s386 = sphi 0, %s383
    %s387 = sphi 0, %s386
    %s403 = sphi 0, %s387
    %s409 = sphi 0, %s411
    %s412 = sphi 0, %s409
    %s413 = sphi 0, %s412
    %s429 = sphi 0, %s413
    %s435 = sphi 0, %s437
    %s438 = sphi 0, %s435
    %s439 = sphi 0, %s438
    %s455 = sphi 0, %s439
    %s461 = sphi 0, %s463
    %s464 = sphi 0, %s461
    %s465 = sphi 0, %s464
    %s481 = sphi 0, %s465
    %s487 = sphi 0, %s489
    %s490 = sphi 0, %s487
    %s491 = sphi 0, %s490
    %s507 = sphi 0, %s491
    %s513 = sphi 0, %s515
    %s516 = sphi 0, %s513
    %s517 = sphi 0, %s516
    %s533 = sphi 0, %s517
    %s539 = sphi 0, %s541
    %s542 = sphi 0, %s539
    %s543 = sphi 0, %s542
    %s559 = sphi 0, %s543
    %s565 = sphi 0, %s567
    %s568 = sphi 0, %s565
    %s569 = sphi 0, %s568
    %s585 = sphi 0, %s569
    %s591 = sphi 0, %s593
    %s594 = sphi 0, %s591
    %s595 = sphi 0, %s594
    %s611 = sphi 0, %s595
    %s617 = sphi 0, %s619
    %s620 = sphi 0, %s617
    %s621 = sphi 0, %s620
    %s637 = sphi 0, %s621
    %s641 = sphi 0, %s641
    %s643 = sphi 0, %s641
    %s644 = sphi 0, %s643
    %s658 = sphi 0, %s644
    %s662 = sphi 0, %s662
    %s664 = sphi 0, %s662
    %s665 = sphi 0, %s664
    %s679 = sphi 0, %s665
    %s683 = sphi 0, %s683
    %s685 = sphi 0, %s683
    %s686 = sphi 0, %s685
    %s700 = sphi 0, %s686
    %s704 = sphi 0, %s704
    %s706 = sphi 0, %s704
    %s707 = sphi 0, %s706
    %s721 = sphi 0, %s707
    %s725 = sphi 0, %s725
    %s727 = sphi 0, %s725
    %s728 = sphi 0, %s727
    %s742 = sphi 0, %s728
    %s746 = sphi 0, %s746
    %s748 = sphi 0, %s746
    %s749 = sphi 0, %s748
    %s763 = sphi 0, %s749
    %s767 = sphi 0, %s767
    %s769 = sphi 0, %s767
    %s770 = sphi 0, %s769
    %s784 = sphi 0, %s770
    %s788 = sphi 0, %s788
    %s790 = sphi 0, %s788
    %s791 = sphi 0, %s790
    %s805 = sphi 0, %s791
    %s809 = sphi 0, %s809
    %s811 = sphi 0, %s809
    %s812 = sphi 0, %s811
    %s826 = sphi 0, %s812
  $region4: #{egnn_ncp_forward.1} parent=0 // loop_header_branch
    %72 = sbr.rel (%p70) target = $region8
  $region5: #{egnn_ncp_forward.1} parent=0 // loop_body
    %s74 = ssub.s32 %s69, 1
    %s75 = ssub.s32 %s69, 2
    %s82 = sadd.s32 1, %s77
    %p83 = scmp.ge.s32.totalorder %s82, 2
    %s84 = scalar_select %p83, 0, %s82
    %s85 = sadd.s32 1, %s76
    %s86 = scalar_select %p83, %s85, %s76
    %p87 = scmp.ge.s32.totalorder %s86, 5
    %s88 = scalar_select %p87, 0, %s86
    %s89 = ssub.s32 %s77, %s84
    %p90 = scmp.eq.s32.totalorder %s89, 0
    %s92 = sadd.s32 %s91, 1
    %s93 = scalar_select %p90, %s91, %s92
    %p96 = pneg %p90
    %p97 = scmp.eq.s32.totalorder %s69, 9
    %p98 = por %p96, %p97
    %p99 = scmp.ne.s32.totalorder %s91, %s94
    %p100 = scmp.eq.s32.totalorder %s69, 0
    %p101 = por %p99, %p100
    %p102 = scmp.ne.s32.totalorder %s91, %s94
    %p103 = scmp.eq.s32.totalorder %s74, 9
    %p104 = por %p102, %p103
    %p105 = scmp.ne.s32.totalorder %s94, %s95
    %p106 = scmp.eq.s32.totalorder %s74, 0
    %p107 = por %p105, %p106
    %p108 = scmp.ne.s32.totalorder %s94, %s95
    %p109 = scmp.eq.s32.totalorder %s75, 9
    %p110 = por %p108, %p109
    %p112 = scmp.ne.s32.totalorder %s95, %s111
    %p113 = scmp.eq.s32.totalorder %s75, 0
    %p114 = por %p112, %p113
    %s115 = ssub.s32 %s77, %s84
    %p116 = scmp.eq.s32.totalorder %s115, 0
    %s118 = sadd.s32 %s117, 1
    %s119 = scalar_select %p116, %s117, %s118
    %p122 = pneg %p116
    %p123 = scmp.eq.s32.totalorder %s69, 9
    %p124 = por %p122, %p123
    %p125 = scmp.ne.s32.totalorder %s117, %s120
    %p126 = scmp.eq.s32.totalorder %s69, 0
    %p127 = por %p125, %p126
    %p128 = scmp.ne.s32.totalorder %s117, %s120
    %p129 = scmp.eq.s32.totalorder %s74, 9
    %p130 = por %p128, %p129
    %p131 = scmp.ne.s32.totalorder %s120, %s121
    %p132 = scmp.eq.s32.totalorder %s74, 0
    %p133 = por %p131, %p132
    %p134 = scmp.ne.s32.totalorder %s120, %s121
    %p135 = scmp.eq.s32.totalorder %s75, 9
    %p136 = por %p134, %p135
    %p138 = scmp.ne.s32.totalorder %s121, %s137
    %p139 = scmp.eq.s32.totalorder %s75, 0
    %p140 = por %p138, %p139
    %s141 = ssub.s32 %s77, %s84
    %p142 = scmp.eq.s32.totalorder %s141, 0
    %s144 = sadd.s32 %s143, 1
    %s145 = scalar_select %p142, %s143, %s144
    %p148 = pneg %p142
    %p149 = scmp.eq.s32.totalorder %s69, 9
    %p150 = por %p148, %p149
    %p151 = scmp.ne.s32.totalorder %s143, %s146
    %p152 = scmp.eq.s32.totalorder %s69, 0
    %p153 = por %p151, %p152
    %p154 = scmp.ne.s32.totalorder %s143, %s146
    %p155 = scmp.eq.s32.totalorder %s74, 9
    %p156 = por %p154, %p155
    %p157 = scmp.ne.s32.totalorder %s146, %s147
    %p158 = scmp.eq.s32.totalorder %s74, 0
    %p159 = por %p157, %p158
    %p160 = scmp.ne.s32.totalorder %s146, %s147
    %p161 = scmp.eq.s32.totalorder %s75, 9
    %p162 = por %p160, %p161
    %p164 = scmp.ne.s32.totalorder %s147, %s163
    %p165 = scmp.eq.s32.totalorder %s75, 0
    %p166 = por %p164, %p165
    %s168 = sadd.s32 %s167, 1
    %p171 = scmp.eq.s32.totalorder %s69, 9
    %p172 = scmp.ne.s32.totalorder %s167, %s169
    %p173 = scmp.eq.s32.totalorder %s69, 0
    %p174 = por %p172, %p173
    %p175 = scmp.ne.s32.totalorder %s167, %s169
    %p176 = scmp.eq.s32.totalorder %s74, 9
    %p177 = por %p175, %p176
    %p178 = scmp.ne.s32.totalorder %s169, %s170
    %p179 = scmp.eq.s32.totalorder %s74, 0
    %p180 = por %p178, %p179
    %p181 = scmp.ne.s32.totalorder %s169, %s170
    %p182 = scmp.eq.s32.totalorder %s75, 9
    %p183 = por %p181, %p182
    %p185 = scmp.ne.s32.totalorder %s170, %s184
    %p186 = scmp.eq.s32.totalorder %s75, 0
    %p187 = por %p185, %p186
    %s189 = sadd.s32 %s188, 1
    %p192 = scmp.eq.s32.totalorder %s69, 9
    %p193 = scmp.ne.s32.totalorder %s188, %s190
    %p194 = scmp.eq.s32.totalorder %s69, 0
    %p195 = por %p193, %p194
    %p196 = scmp.ne.s32.totalorder %s188, %s190
    %p197 = scmp.eq.s32.totalorder %s74, 9
    %p198 = por %p196, %p197
    %p199 = scmp.ne.s32.totalorder %s190, %s191
    %p200 = scmp.eq.s32.totalorder %s74, 0
    %p201 = por %p199, %p200
    %p202 = scmp.ne.s32.totalorder %s190, %s191
    %p203 = scmp.eq.s32.totalorder %s75, 9
    %p204 = por %p202, %p203
    %p206 = scmp.ne.s32.totalorder %s191, %s205
    %p207 = scmp.eq.s32.totalorder %s75, 0
    %p208 = por %p206, %p207
    %s210 = sadd.s32 %s209, 1
    %p213 = scmp.eq.s32.totalorder %s69, 9
    %p214 = scmp.ne.s32.totalorder %s209, %s211
    %p215 = scmp.eq.s32.totalorder %s69, 0
    %p216 = por %p214, %p215
    %p217 = scmp.ne.s32.totalorder %s209, %s211
    %p218 = scmp.eq.s32.totalorder %s74, 9
    %p219 = por %p217, %p218
    %p220 = scmp.ne.s32.totalorder %s211, %s212
    %p221 = scmp.eq.s32.totalorder %s74, 0
    %p222 = por %p220, %p221
    %p223 = scmp.ne.s32.totalorder %s211, %s212
    %p224 = scmp.eq.s32.totalorder %s75, 9
    %p225 = por %p223, %p224
    %p227 = scmp.ne.s32.totalorder %s212, %s226
    %p228 = scmp.eq.s32.totalorder %s75, 0
    %p229 = por %p227, %p228
    %s231 = sadd.s32 %s230, 1
    %p234 = scmp.eq.s32.totalorder %s69, 9
    %p235 = scmp.ne.s32.totalorder %s230, %s232
    %p236 = scmp.eq.s32.totalorder %s69, 0
    %p237 = por %p235, %p236
    %p238 = scmp.ne.s32.totalorder %s230, %s232
    %p239 = scmp.eq.s32.totalorder %s74, 9
    %p240 = por %p238, %p239
    %p241 = scmp.ne.s32.totalorder %s232, %s233
    %p242 = scmp.eq.s32.totalorder %s74, 0
    %p243 = por %p241, %p242
    %p244 = scmp.ne.s32.totalorder %s232, %s233
    %p245 = scmp.eq.s32.totalorder %s75, 9
    %p246 = por %p244, %p245
    %p248 = scmp.ne.s32.totalorder %s233, %s247
    %p249 = scmp.eq.s32.totalorder %s75, 0
    %p250 = por %p248, %p249
    %s251 = ssub.s32 %s76, %s88
    %p252 = scmp.eq.s32.totalorder %s251, 0
    %s254 = sadd.s32 %s253, 1
    %s255 = scalar_select %p252, %s253, %s254
    %p258 = pneg %p252
    %p259 = scmp.eq.s32.totalorder %s69, 9
    %p260 = por %p258, %p259
    %p261 = scmp.ne.s32.totalorder %s253, %s256
    %p262 = scmp.eq.s32.totalorder %s69, 0
    %p263 = por %p261, %p262
    %p264 = scmp.ne.s32.totalorder %s253, %s256
    %p265 = scmp.eq.s32.totalorder %s74, 9
    %p266 = por %p264, %p265
    %p267 = scmp.ne.s32.totalorder %s256, %s257
    %p268 = scmp.eq.s32.totalorder %s74, 0
    %p269 = por %p267, %p268
    %p270 = scmp.ne.s32.totalorder %s256, %s257
    %p271 = scmp.eq.s32.totalorder %s75, 9
    %p272 = por %p270, %p271
    %p274 = scmp.ne.s32.totalorder %s257, %s273
    %p275 = scmp.eq.s32.totalorder %s75, 0
    %p276 = por %p274, %p275
    %s277 = ssub.s32 %s76, %s88
    %p278 = scmp.eq.s32.totalorder %s277, 0
    %s280 = sadd.s32 %s279, 1
    %s281 = scalar_select %p278, %s279, %s280
    %p284 = pneg %p278
    %p285 = scmp.eq.s32.totalorder %s69, 9
    %p286 = por %p284, %p285
    %p287 = scmp.ne.s32.totalorder %s279, %s282
    %p288 = scmp.eq.s32.totalorder %s69, 0
    %p289 = por %p287, %p288
    %p290 = scmp.ne.s32.totalorder %s279, %s282
    %p291 = scmp.eq.s32.totalorder %s74, 9
    %p292 = por %p290, %p291
    %p293 = scmp.ne.s32.totalorder %s282, %s283
    %p294 = scmp.eq.s32.totalorder %s74, 0
    %p295 = por %p293, %p294
    %p296 = scmp.ne.s32.totalorder %s282, %s283
    %p297 = scmp.eq.s32.totalorder %s75, 9
    %p298 = por %p296, %p297
    %p300 = scmp.ne.s32.totalorder %s283, %s299
    %p301 = scmp.eq.s32.totalorder %s75, 0
    %p302 = por %p300, %p301
    %s303 = ssub.s32 %s76, %s88
    %p304 = scmp.eq.s32.totalorder %s303, 0
    %s306 = sadd.s32 %s305, 1
    %s307 = scalar_select %p304, %s305, %s306
    %p310 = pneg %p304
    %p311 = scmp.eq.s32.totalorder %s69, 9
    %p312 = por %p310, %p311
    %p313 = scmp.ne.s32.totalorder %s305, %s308
    %p314 = scmp.eq.s32.totalorder %s69, 0
    %p315 = por %p313, %p314
    %p316 = scmp.ne.s32.totalorder %s305, %s308
    %p317 = scmp.eq.s32.totalorder %s74, 9
    %p318 = por %p316, %p317
    %p319 = scmp.ne.s32.totalorder %s308, %s309
    %p320 = scmp.eq.s32.totalorder %s74, 0
    %p321 = por %p319, %p320
    %p322 = scmp.ne.s32.totalorder %s308, %s309
    %p323 = scmp.eq.s32.totalorder %s75, 9
    %p324 = por %p322, %p323
    %p326 = scmp.ne.s32.totalorder %s309, %s325
    %p327 = scmp.eq.s32.totalorder %s75, 0
    %p328 = por %p326, %p327
    %s329 = ssub.s32 %s76, %s88
    %p330 = scmp.eq.s32.totalorder %s329, 0
    %s332 = sadd.s32 %s331, 1
    %s333 = scalar_select %p330, %s331, %s332
    %p336 = pneg %p330
    %p337 = scmp.eq.s32.totalorder %s69, 9
    %p338 = por %p336, %p337
    %p339 = scmp.ne.s32.totalorder %s331, %s334
    %p340 = scmp.eq.s32.totalorder %s69, 0
    %p341 = por %p339, %p340
    %p342 = scmp.ne.s32.totalorder %s331, %s334
    %p343 = scmp.eq.s32.totalorder %s74, 9
    %p344 = por %p342, %p343
    %p345 = scmp.ne.s32.totalorder %s334, %s335
    %p346 = scmp.eq.s32.totalorder %s74, 0
    %p347 = por %p345, %p346
    %p348 = scmp.ne.s32.totalorder %s334, %s335
    %p349 = scmp.eq.s32.totalorder %s75, 9
    %p350 = por %p348, %p349
    %p352 = scmp.ne.s32.totalorder %s335, %s351
    %p353 = scmp.eq.s32.totalorder %s75, 0
    %p354 = por %p352, %p353
    %s355 = ssub.s32 %s76, %s88
    %p356 = scmp.eq.s32.totalorder %s355, 0
    %s358 = sadd.s32 %s357, 1
    %s359 = scalar_select %p356, %s357, %s358
    %p362 = pneg %p356
    %p363 = scmp.eq.s32.totalorder %s69, 9
    %p364 = por %p362, %p363
    %p365 = scmp.ne.s32.totalorder %s357, %s360
    %p366 = scmp.eq.s32.totalorder %s69, 0
    %p367 = por %p365, %p366
    %p368 = scmp.ne.s32.totalorder %s357, %s360
    %p369 = scmp.eq.s32.totalorder %s74, 9
    %p370 = por %p368, %p369
    %p371 = scmp.ne.s32.totalorder %s360, %s361
    %p372 = scmp.eq.s32.totalorder %s74, 0
    %p373 = por %p371, %p372
    %p374 = scmp.ne.s32.totalorder %s360, %s361
    %p375 = scmp.eq.s32.totalorder %s75, 9
    %p376 = por %p374, %p375
    %p378 = scmp.ne.s32.totalorder %s361, %s377
    %p379 = scmp.eq.s32.totalorder %s75, 0
    %p380 = por %p378, %p379
    %s381 = ssub.s32 %s76, %s88
    %p382 = scmp.eq.s32.totalorder %s381, 0
    %s384 = sadd.s32 %s383, 1
    %s385 = scalar_select %p382, %s383, %s384
    %p388 = pneg %p382
    %p389 = scmp.eq.s32.totalorder %s69, 9
    %p390 = por %p388, %p389
    %p391 = scmp.ne.s32.totalorder %s383, %s386
    %p392 = scmp.eq.s32.totalorder %s69, 0
    %p393 = por %p391, %p392
    %p394 = scmp.ne.s32.totalorder %s383, %s386
    %p395 = scmp.eq.s32.totalorder %s74, 9
    %p396 = por %p394, %p395
    %p397 = scmp.ne.s32.totalorder %s386, %s387
    %p398 = scmp.eq.s32.totalorder %s74, 0
    %p399 = por %p397, %p398
    %p400 = scmp.ne.s32.totalorder %s386, %s387
    %p401 = scmp.eq.s32.totalorder %s75, 9
    %p402 = por %p400, %p401
    %p404 = scmp.ne.s32.totalorder %s387, %s403
    %p405 = scmp.eq.s32.totalorder %s75, 0
    %p406 = por %p404, %p405
    %s407 = ssub.s32 %s76, %s88
    %p408 = scmp.eq.s32.totalorder %s407, 0
    %s410 = sadd.s32 %s409, 1
    %s411 = scalar_select %p408, %s409, %s410
    %p414 = pneg %p408
    %p415 = scmp.eq.s32.totalorder %s69, 9
    %p416 = por %p414, %p415
    %p417 = scmp.ne.s32.totalorder %s409, %s412
    %p418 = scmp.eq.s32.totalorder %s69, 0
    %p419 = por %p417, %p418
    %p420 = scmp.ne.s32.totalorder %s409, %s412
    %p421 = scmp.eq.s32.totalorder %s74, 9
    %p422 = por %p420, %p421
    %p423 = scmp.ne.s32.totalorder %s412, %s413
    %p424 = scmp.eq.s32.totalorder %s74, 0
    %p425 = por %p423, %p424
    %p426 = scmp.ne.s32.totalorder %s412, %s413
    %p427 = scmp.eq.s32.totalorder %s75, 9
    %p428 = por %p426, %p427
    %p430 = scmp.ne.s32.totalorder %s413, %s429
    %p431 = scmp.eq.s32.totalorder %s75, 0
    %p432 = por %p430, %p431
    %s433 = ssub.s32 %s76, %s88
    %p434 = scmp.eq.s32.totalorder %s433, 0
    %s436 = sadd.s32 %s435, 1
    %s437 = scalar_select %p434, %s435, %s436
    %p440 = pneg %p434
    %p441 = scmp.eq.s32.totalorder %s69, 9
    %p442 = por %p440, %p441
    %p443 = scmp.ne.s32.totalorder %s435, %s438
    %p444 = scmp.eq.s32.totalorder %s69, 0
    %p445 = por %p443, %p444
    %p446 = scmp.ne.s32.totalorder %s435, %s438
    %p447 = scmp.eq.s32.totalorder %s74, 9
    %p448 = por %p446, %p447
    %p449 = scmp.ne.s32.totalorder %s438, %s439
    %p450 = scmp.eq.s32.totalorder %s74, 0
    %p451 = por %p449, %p450
    %p452 = scmp.ne.s32.totalorder %s438, %s439
    %p453 = scmp.eq.s32.totalorder %s75, 9
    %p454 = por %p452, %p453
    %p456 = scmp.ne.s32.totalorder %s439, %s455
    %p457 = scmp.eq.s32.totalorder %s75, 0
    %p458 = por %p456, %p457
    %s459 = ssub.s32 %s76, %s88
    %p460 = scmp.eq.s32.totalorder %s459, 0
    %s462 = sadd.s32 %s461, 1
    %s463 = scalar_select %p460, %s461, %s462
    %p466 = pneg %p460
    %p467 = scmp.eq.s32.totalorder %s69, 9
    %p468 = por %p466, %p467
    %p469 = scmp.ne.s32.totalorder %s461, %s464
    %p470 = scmp.eq.s32.totalorder %s69, 0
    %p471 = por %p469, %p470
    %p472 = scmp.ne.s32.totalorder %s461, %s464
    %p473 = scmp.eq.s32.totalorder %s74, 9
    %p474 = por %p472, %p473
    %p475 = scmp.ne.s32.totalorder %s464, %s465
    %p476 = scmp.eq.s32.totalorder %s74, 0
    %p477 = por %p475, %p476
    %p478 = scmp.ne.s32.totalorder %s464, %s465
    %p479 = scmp.eq.s32.totalorder %s75, 9
    %p480 = por %p478, %p479
    %p482 = scmp.ne.s32.totalorder %s465, %s481
    %p483 = scmp.eq.s32.totalorder %s75, 0
    %p484 = por %p482, %p483
    %s485 = ssub.s32 %s76, %s88
    %p486 = scmp.eq.s32.totalorder %s485, 0
    %s488 = sadd.s32 %s487, 1
    %s489 = scalar_select %p486, %s487, %s488
    %p492 = pneg %p486
    %p493 = scmp.eq.s32.totalorder %s69, 9
    %p494 = por %p492, %p493
    %p495 = scmp.ne.s32.totalorder %s487, %s490
    %p496 = scmp.eq.s32.totalorder %s69, 0
    %p497 = por %p495, %p496
    %p498 = scmp.ne.s32.totalorder %s487, %s490
    %p499 = scmp.eq.s32.totalorder %s74, 9
    %p500 = por %p498, %p499
    %p501 = scmp.ne.s32.totalorder %s490, %s491
    %p502 = scmp.eq.s32.totalorder %s74, 0
    %p503 = por %p501, %p502
    %p504 = scmp.ne.s32.totalorder %s490, %s491
    %p505 = scmp.eq.s32.totalorder %s75, 9
    %p506 = por %p504, %p505
    %p508 = scmp.ne.s32.totalorder %s491, %s507
    %p509 = scmp.eq.s32.totalorder %s75, 0
    %p510 = por %p508, %p509
    %s511 = ssub.s32 %s76, %s88
    %p512 = scmp.eq.s32.totalorder %s511, 0
    %s514 = sadd.s32 %s513, 1
    %s515 = scalar_select %p512, %s513, %s514
    %p518 = pneg %p512
    %p519 = scmp.eq.s32.totalorder %s69, 9
    %p520 = por %p518, %p519
    %p521 = scmp.ne.s32.totalorder %s513, %s516
    %p522 = scmp.eq.s32.totalorder %s69, 0
    %p523 = por %p521, %p522
    %p524 = scmp.ne.s32.totalorder %s513, %s516
    %p525 = scmp.eq.s32.totalorder %s74, 9
    %p526 = por %p524, %p525
    %p527 = scmp.ne.s32.totalorder %s516, %s517
    %p528 = scmp.eq.s32.totalorder %s74, 0
    %p529 = por %p527, %p528
    %p530 = scmp.ne.s32.totalorder %s516, %s517
    %p531 = scmp.eq.s32.totalorder %s75, 9
    %p532 = por %p530, %p531
    %p534 = scmp.ne.s32.totalorder %s517, %s533
    %p535 = scmp.eq.s32.totalorder %s75, 0
    %p536 = por %p534, %p535
    %s537 = ssub.s32 %s76, %s88
    %p538 = scmp.eq.s32.totalorder %s537, 0
    %s540 = sadd.s32 %s539, 1
    %s541 = scalar_select %p538, %s539, %s540
    %p544 = pneg %p538
    %p545 = scmp.eq.s32.totalorder %s69, 9
    %p546 = por %p544, %p545
    %p547 = scmp.ne.s32.totalorder %s539, %s542
    %p548 = scmp.eq.s32.totalorder %s69, 0
    %p549 = por %p547, %p548
    %p550 = scmp.ne.s32.totalorder %s539, %s542
    %p551 = scmp.eq.s32.totalorder %s74, 9
    %p552 = por %p550, %p551
    %p553 = scmp.ne.s32.totalorder %s542, %s543
    %p554 = scmp.eq.s32.totalorder %s74, 0
    %p555 = por %p553, %p554
    %p556 = scmp.ne.s32.totalorder %s542, %s543
    %p557 = scmp.eq.s32.totalorder %s75, 9
    %p558 = por %p556, %p557
    %p560 = scmp.ne.s32.totalorder %s543, %s559
    %p561 = scmp.eq.s32.totalorder %s75, 0
    %p562 = por %p560, %p561
    %s563 = ssub.s32 %s76, %s88
    %p564 = scmp.eq.s32.totalorder %s563, 0
    %s566 = sadd.s32 %s565, 1
    %s567 = scalar_select %p564, %s565, %s566
    %p570 = pneg %p564
    %p571 = scmp.eq.s32.totalorder %s69, 9
    %p572 = por %p570, %p571
    %p573 = scmp.ne.s32.totalorder %s565, %s568
    %p574 = scmp.eq.s32.totalorder %s69, 0
    %p575 = por %p573, %p574
    %p576 = scmp.ne.s32.totalorder %s565, %s568
    %p577 = scmp.eq.s32.totalorder %s74, 9
    %p578 = por %p576, %p577
    %p579 = scmp.ne.s32.totalorder %s568, %s569
    %p580 = scmp.eq.s32.totalorder %s74, 0
    %p581 = por %p579, %p580
    %p582 = scmp.ne.s32.totalorder %s568, %s569
    %p583 = scmp.eq.s32.totalorder %s75, 9
    %p584 = por %p582, %p583
    %p586 = scmp.ne.s32.totalorder %s569, %s585
    %p587 = scmp.eq.s32.totalorder %s75, 0
    %p588 = por %p586, %p587
    %s589 = ssub.s32 %s76, %s88
    %p590 = scmp.eq.s32.totalorder %s589, 0
    %s592 = sadd.s32 %s591, 1
    %s593 = scalar_select %p590, %s591, %s592
    %p596 = pneg %p590
    %p597 = scmp.eq.s32.totalorder %s69, 9
    %p598 = por %p596, %p597
    %p599 = scmp.ne.s32.totalorder %s591, %s594
    %p600 = scmp.eq.s32.totalorder %s69, 0
    %p601 = por %p599, %p600
    %p602 = scmp.ne.s32.totalorder %s591, %s594
    %p603 = scmp.eq.s32.totalorder %s74, 9
    %p604 = por %p602, %p603
    %p605 = scmp.ne.s32.totalorder %s594, %s595
    %p606 = scmp.eq.s32.totalorder %s74, 0
    %p607 = por %p605, %p606
    %p608 = scmp.ne.s32.totalorder %s594, %s595
    %p609 = scmp.eq.s32.totalorder %s75, 9
    %p610 = por %p608, %p609
    %p612 = scmp.ne.s32.totalorder %s595, %s611
    %p613 = scmp.eq.s32.totalorder %s75, 0
    %p614 = por %p612, %p613
    %s615 = ssub.s32 %s76, %s88
    %p616 = scmp.eq.s32.totalorder %s615, 0
    %s618 = sadd.s32 %s617, 1
    %s619 = scalar_select %p616, %s617, %s618
    %p622 = pneg %p616
    %p623 = scmp.eq.s32.totalorder %s69, 9
    %p624 = por %p622, %p623
    %p625 = scmp.ne.s32.totalorder %s617, %s620
    %p626 = scmp.eq.s32.totalorder %s69, 0
    %p627 = por %p625, %p626
    %p628 = scmp.ne.s32.totalorder %s617, %s620
    %p629 = scmp.eq.s32.totalorder %s74, 9
    %p630 = por %p628, %p629
    %p631 = scmp.ne.s32.totalorder %s620, %s621
    %p632 = scmp.eq.s32.totalorder %s74, 0
    %p633 = por %p631, %p632
    %p634 = scmp.ne.s32.totalorder %s620, %s621
    %p635 = scmp.eq.s32.totalorder %s75, 9
    %p636 = por %p634, %p635
    %p638 = scmp.ne.s32.totalorder %s621, %s637
    %p639 = scmp.eq.s32.totalorder %s75, 0
    %p640 = por %p638, %p639
    %s642 = sadd.s32 %s641, 1
    %p645 = scmp.eq.s32.totalorder %s69, 9
    %p646 = scmp.ne.s32.totalorder %s641, %s643
    %p647 = scmp.eq.s32.totalorder %s69, 0
    %p648 = por %p646, %p647
    %p649 = scmp.ne.s32.totalorder %s641, %s643
    %p650 = scmp.eq.s32.totalorder %s74, 9
    %p651 = por %p649, %p650
    %p652 = scmp.ne.s32.totalorder %s643, %s644
    %p653 = scmp.eq.s32.totalorder %s74, 0
    %p654 = por %p652, %p653
    %p655 = scmp.ne.s32.totalorder %s643, %s644
    %p656 = scmp.eq.s32.totalorder %s75, 9
    %p657 = por %p655, %p656
    %p659 = scmp.ne.s32.totalorder %s644, %s658
    %p660 = scmp.eq.s32.totalorder %s75, 0
    %p661 = por %p659, %p660
    %s663 = sadd.s32 %s662, 1
    %p666 = scmp.eq.s32.totalorder %s69, 9
    %p667 = scmp.ne.s32.totalorder %s662, %s664
    %p668 = scmp.eq.s32.totalorder %s69, 0
    %p669 = por %p667, %p668
    %p670 = scmp.ne.s32.totalorder %s662, %s664
    %p671 = scmp.eq.s32.totalorder %s74, 9
    %p672 = por %p670, %p671
    %p673 = scmp.ne.s32.totalorder %s664, %s665
    %p674 = scmp.eq.s32.totalorder %s74, 0
    %p675 = por %p673, %p674
    %p676 = scmp.ne.s32.totalorder %s664, %s665
    %p677 = scmp.eq.s32.totalorder %s75, 9
    %p678 = por %p676, %p677
    %p680 = scmp.ne.s32.totalorder %s665, %s679
    %p681 = scmp.eq.s32.totalorder %s75, 0
    %p682 = por %p680, %p681
    %s684 = sadd.s32 %s683, 1
    %p687 = scmp.eq.s32.totalorder %s69, 9
    %p688 = scmp.ne.s32.totalorder %s683, %s685
    %p689 = scmp.eq.s32.totalorder %s69, 0
    %p690 = por %p688, %p689
    %p691 = scmp.ne.s32.totalorder %s683, %s685
    %p692 = scmp.eq.s32.totalorder %s74, 9
    %p693 = por %p691, %p692
    %p694 = scmp.ne.s32.totalorder %s685, %s686
    %p695 = scmp.eq.s32.totalorder %s74, 0
    %p696 = por %p694, %p695
    %p697 = scmp.ne.s32.totalorder %s685, %s686
    %p698 = scmp.eq.s32.totalorder %s75, 9
    %p699 = por %p697, %p698
    %p701 = scmp.ne.s32.totalorder %s686, %s700
    %p702 = scmp.eq.s32.totalorder %s75, 0
    %p703 = por %p701, %p702
    %s705 = sadd.s32 %s704, 1
    %p708 = scmp.eq.s32.totalorder %s69, 9
    %p709 = scmp.ne.s32.totalorder %s704, %s706
    %p710 = scmp.eq.s32.totalorder %s69, 0
    %p711 = por %p709, %p710
    %p712 = scmp.ne.s32.totalorder %s704, %s706
    %p713 = scmp.eq.s32.totalorder %s74, 9
    %p714 = por %p712, %p713
    %p715 = scmp.ne.s32.totalorder %s706, %s707
    %p716 = scmp.eq.s32.totalorder %s74, 0
    %p717 = por %p715, %p716
    %p718 = scmp.ne.s32.totalorder %s706, %s707
    %p719 = scmp.eq.s32.totalorder %s75, 9
    %p720 = por %p718, %p719
    %p722 = scmp.ne.s32.totalorder %s707, %s721
    %p723 = scmp.eq.s32.totalorder %s75, 0
    %p724 = por %p722, %p723
    %s726 = sadd.s32 %s725, 1
    %p729 = scmp.eq.s32.totalorder %s69, 9
    %p730 = scmp.ne.s32.totalorder %s725, %s727
    %p731 = scmp.eq.s32.totalorder %s69, 0
    %p732 = por %p730, %p731
    %p733 = scmp.ne.s32.totalorder %s725, %s727
    %p734 = scmp.eq.s32.totalorder %s74, 9
    %p735 = por %p733, %p734
    %p736 = scmp.ne.s32.totalorder %s727, %s728
    %p737 = scmp.eq.s32.totalorder %s74, 0
    %p738 = por %p736, %p737
    %p739 = scmp.ne.s32.totalorder %s727, %s728
    %p740 = scmp.eq.s32.totalorder %s75, 9
    %p741 = por %p739, %p740
    %p743 = scmp.ne.s32.totalorder %s728, %s742
    %p744 = scmp.eq.s32.totalorder %s75, 0
    %p745 = por %p743, %p744
    %s747 = sadd.s32 %s746, 1
    %p750 = scmp.eq.s32.totalorder %s69, 9
    %p751 = scmp.ne.s32.totalorder %s746, %s748
    %p752 = scmp.eq.s32.totalorder %s69, 0
    %p753 = por %p751, %p752
    %p754 = scmp.ne.s32.totalorder %s746, %s748
    %p755 = scmp.eq.s32.totalorder %s74, 9
    %p756 = por %p754, %p755
    %p757 = scmp.ne.s32.totalorder %s748, %s749
    %p758 = scmp.eq.s32.totalorder %s74, 0
    %p759 = por %p757, %p758
    %p760 = scmp.ne.s32.totalorder %s748, %s749
    %p761 = scmp.eq.s32.totalorder %s75, 9
    %p762 = por %p760, %p761
    %p764 = scmp.ne.s32.totalorder %s749, %s763
    %p765 = scmp.eq.s32.totalorder %s75, 0
    %p766 = por %p764, %p765
    %s768 = sadd.s32 %s767, 1
    %p771 = scmp.eq.s32.totalorder %s69, 9
    %p772 = scmp.ne.s32.totalorder %s767, %s769
    %p773 = scmp.eq.s32.totalorder %s69, 0
    %p774 = por %p772, %p773
    %p775 = scmp.ne.s32.totalorder %s767, %s769
    %p776 = scmp.eq.s32.totalorder %s74, 9
    %p777 = por %p775, %p776
    %p778 = scmp.ne.s32.totalorder %s769, %s770
    %p779 = scmp.eq.s32.totalorder %s74, 0
    %p780 = por %p778, %p779
    %p781 = scmp.ne.s32.totalorder %s769, %s770
    %p782 = scmp.eq.s32.totalorder %s75, 9
    %p783 = por %p781, %p782
    %p785 = scmp.ne.s32.totalorder %s770, %s784
    %p786 = scmp.eq.s32.totalorder %s75, 0
    %p787 = por %p785, %p786
    %s789 = sadd.s32 %s788, 1
    %p792 = scmp.eq.s32.totalorder %s69, 9
    %p793 = scmp.ne.s32.totalorder %s788, %s790
    %p794 = scmp.eq.s32.totalorder %s69, 0
    %p795 = por %p793, %p794
    %p796 = scmp.ne.s32.totalorder %s788, %s790
    %p797 = scmp.eq.s32.totalorder %s74, 9
    %p798 = por %p796, %p797
    %p799 = scmp.ne.s32.totalorder %s790, %s791
    %p800 = scmp.eq.s32.totalorder %s74, 0
    %p801 = por %p799, %p800
    %p802 = scmp.ne.s32.totalorder %s790, %s791
    %p803 = scmp.eq.s32.totalorder %s75, 9
    %p804 = por %p802, %p803
    %p806 = scmp.ne.s32.totalorder %s791, %s805
    %p807 = scmp.eq.s32.totalorder %s75, 0
    %p808 = por %p806, %p807
    %s810 = sadd.s32 %s809, 1
    %p813 = scmp.eq.s32.totalorder %s69, 9
    %p814 = scmp.ne.s32.totalorder %s809, %s811
    %p815 = scmp.eq.s32.totalorder %s69, 0
    %p816 = por %p814, %p815
    %p817 = scmp.ne.s32.totalorder %s809, %s811
    %p818 = scmp.eq.s32.totalorder %s74, 9
    %p819 = por %p817, %p818
    %p820 = scmp.ne.s32.totalorder %s811, %s812
    %p821 = scmp.eq.s32.totalorder %s74, 0
    %p822 = por %p820, %p821
    %p823 = scmp.ne.s32.totalorder %s811, %s812
    %p824 = scmp.eq.s32.totalorder %s75, 9
    %p825 = por %p823, %p824
    %p827 = scmp.ne.s32.totalorder %s812, %s826
    %p828 = scmp.eq.s32.totalorder %s75, 0
    %p829 = por %p827, %p828
    %p830 = scmp.le.s32.totalorder 1, %s69
    %p831 = scmp.lt.s32.totalorder %s69, 11
    %p832 = pnand %p830, %p831
    %p833 = pneg %p832
    // Predicated region
    $region9: #{egnn_ncp_forward.1} parent=5 // pred_check
      _
    $region10: #{egnn_ncp_forward.1} parent=5 // pred_check_branch
      %835 = sbr.rel (%p832) target = $region12
    $region11: #{egnn_ncp_forward.1} parent=5 // pred_region
      %s836 = ssub.s32 %s69, 1
      // Predicated region
      $region13: #{egnn_ncp_forward.1} parent=11 // pred_check
        %p837 = pneg %p180
      $region14: #{egnn_ncp_forward.1} parent=11 // pred_check_branch
        %839 = sbr.rel (%p837) target = $region16
      $region15: #{egnn_ncp_forward.1} parent=11 // pred_region
        _
      $region16: #{egnn_ncp_forward.1} parent=11 // pred_fallthru
        _
      // Predicated region
      $region17: #{egnn_ncp_forward.1} parent=11 // pred_check
        %p840 = pneg %p201
      $region18: #{egnn_ncp_forward.1} parent=11 // pred_check_branch
        %842 = sbr.rel (%p840) target = $region20
      $region19: #{egnn_ncp_forward.1} parent=11 // pred_region
        _
      $region20: #{egnn_ncp_forward.1} parent=11 // pred_fallthru
        _
      // Predicated region
      $region21: #{egnn_ncp_forward.1} parent=11 // pred_check
        %p843 = pneg %p222
      $region22: #{egnn_ncp_forward.1} parent=11 // pred_check_branch
        %845 = sbr.rel (%p843) target = $region24
      $region23: #{egnn_ncp_forward.1} parent=11 // pred_region
        _
      $region24: #{egnn_ncp_forward.1} parent=11 // pred_fallthru
        _
      // Predicated region
      $region25: #{egnn_ncp_forward.1} parent=11 // pred_check
        %p846 = pneg %p243
      $region26: #{egnn_ncp_forward.1} parent=11 // pred_check_branch
        %848 = sbr.rel (%p846) target = $region28
      $region27: #{egnn_ncp_forward.1} parent=11 // pred_region
        _
      $region28: #{egnn_ncp_forward.1} parent=11 // pred_fallthru
        _
      // Predicated region
      $region29: #{egnn_ncp_forward.1} parent=11 // pred_check
        %p849 = pneg %p654
      $region30: #{egnn_ncp_forward.1} parent=11 // pred_check_branch
        %851 = sbr.rel (%p849) target = $region32
      $region31: #{egnn_ncp_forward.1} parent=11 // pred_region
        _
      $region32: #{egnn_ncp_forward.1} parent=11 // pred_fallthru
        _
      // Predicated region
      $region33: #{egnn_ncp_forward.1} parent=11 // pred_check
        %p852 = pneg %p675
      $region34: #{egnn_ncp_forward.1} parent=11 // pred_check_branch
        %854 = sbr.rel (%p852) target = $region36
      $region35: #{egnn_ncp_forward.1} parent=11 // pred_region
        _
      $region36: #{egnn_ncp_forward.1} parent=11 // pred_fallthru
        _
      // Predicated region
      $region37: #{egnn_ncp_forward.1} parent=11 // pred_check
        %p855 = pneg %p696
      $region38: #{egnn_ncp_forward.1} parent=11 // pred_check_branch
        %857 = sbr.rel (%p855) target = $region40
      $region39: #{egnn_ncp_forward.1} parent=11 // pred_region
        _
      $region40: #{egnn_ncp_forward.1} parent=11 // pred_fallthru
        _
      // Predicated region
      $region41: #{egnn_ncp_forward.1} parent=11 // pred_check
        %p858 = pneg %p717
      $region42: #{egnn_ncp_forward.1} parent=11 // pred_check_branch
        %860 = sbr.rel (%p858) target = $region44
      $region43: #{egnn_ncp_forward.1} parent=11 // pred_region
        _
      $region44: #{egnn_ncp_forward.1} parent=11 // pred_fallthru
        _
      // Predicated region
      $region45: #{egnn_ncp_forward.1} parent=11 // pred_check
        %p861 = pneg %p738
      $region46: #{egnn_ncp_forward.1} parent=11 // pred_check_branch
        %863 = sbr.rel (%p861) target = $region48
      $region47: #{egnn_ncp_forward.1} parent=11 // pred_region
        _
      $region48: #{egnn_ncp_forward.1} parent=11 // pred_fallthru
        _
      // Predicated region
      $region49: #{egnn_ncp_forward.1} parent=11 // pred_check
        %p864 = pneg %p759
      $region50: #{egnn_ncp_forward.1} parent=11 // pred_check_branch
        %866 = sbr.rel (%p864) target = $region52
      $region51: #{egnn_ncp_forward.1} parent=11 // pred_region
        _
      $region52: #{egnn_ncp_forward.1} parent=11 // pred_fallthru
        _
      // Predicated region
      $region53: #{egnn_ncp_forward.1} parent=11 // pred_check
        %p867 = pneg %p780
      $region54: #{egnn_ncp_forward.1} parent=11 // pred_check_branch
        %869 = sbr.rel (%p867) target = $region56
      $region55: #{egnn_ncp_forward.1} parent=11 // pred_region
        _
      $region56: #{egnn_ncp_forward.1} parent=11 // pred_fallthru
        _
      // Predicated region
      $region57: #{egnn_ncp_forward.1} parent=11 // pred_check
        %p870 = pneg %p801
      $region58: #{egnn_ncp_forward.1} parent=11 // pred_check_branch
        %872 = sbr.rel (%p870) target = $region60
      $region59: #{egnn_ncp_forward.1} parent=11 // pred_region
        _
      $region60: #{egnn_ncp_forward.1} parent=11 // pred_fallthru
        _
    $region12: #{egnn_ncp_forward.1} parent=5 // pred_fallthru
      _
    %p873 = scmp.lt.s32.totalorder %s69, 10
    // Predicated region
    $region61: #{egnn_ncp_forward.1} parent=5 // pred_check
      %p874 = pneg %p873
    $region62: #{egnn_ncp_forward.1} parent=5 // pred_check_branch
      %876 = sbr.rel (%p874) target = $region64
    $region63: #{egnn_ncp_forward.1} parent=5 // pred_region
      // Predicated region
      $region65: #{egnn_ncp_forward.1} parent=63 // pred_check
        %p877 = pneg %p101
      $region66: #{egnn_ncp_forward.1} parent=63 // pred_check_branch
        %879 = sbr.rel (%p877) target = $region68
      $region67: #{egnn_ncp_forward.1} parent=63 // pred_region
        %s880 = smul.u32 2, %s77
        %p881 = scmp.lt.s32.totalorder %s880, 3
        %s882 = scalar_select %p881, %s880, 3
        %s883 = smul.addr %s882, 8
        %s884 = scalar_lea.vmem %s1, %s883
        %s885 = smul.u32 2, %s77
      $region68: #{egnn_ncp_forward.1} parent=63 // pred_fallthru
        _
      // Predicated region
      $region69: #{egnn_ncp_forward.1} parent=63 // pred_check
        %p886 = pneg %p127
      $region70: #{egnn_ncp_forward.1} parent=63 // pred_check_branch
        %888 = sbr.rel (%p886) target = $region72
      $region71: #{egnn_ncp_forward.1} parent=63 // pred_region
        %s889 = smul.u32 2, %s77
        %p890 = scmp.lt.s32.totalorder %s889, 3
        %s891 = scalar_select %p890, %s889, 3
        %s892 = smul.addr %s891, 8
        %s893 = scalar_lea.vmem %s3, %s892
        %s894 = smul.u32 2, %s77
      $region72: #{egnn_ncp_forward.1} parent=63 // pred_fallthru
        _
      // Predicated region
      $region73: #{egnn_ncp_forward.1} parent=63 // pred_check
        %p895 = pneg %p153
      $region74: #{egnn_ncp_forward.1} parent=63 // pred_check_branch
        %897 = sbr.rel (%p895) target = $region76
      $region75: #{egnn_ncp_forward.1} parent=63 // pred_region
        %s898 = smul.u32 2, %s77
        %p899 = scmp.lt.s32.totalorder %s898, 3
        %s900 = scalar_select %p899, %s898, 3
        %s901 = smul.addr %s900, 8
        %s902 = scalar_lea.vmem %s5, %s901
        %s903 = smul.u32 2, %s77
      $region76: #{egnn_ncp_forward.1} parent=63 // pred_fallthru
        _
      // Predicated region
      $region77: #{egnn_ncp_forward.1} parent=63 // pred_check
        %p904 = pneg %p263
      $region78: #{egnn_ncp_forward.1} parent=63 // pred_check_branch
        %906 = sbr.rel (%p904) target = $region80
      $region79: #{egnn_ncp_forward.1} parent=63 // pred_region
        %p907 = scmp.lt.s32.totalorder %s76, 4
        %s908 = scalar_select %p907, %s76, 4
        %s909 = smul.addr %s908, 24
        %s910 = smul.addr %s909, 8
        %s911 = scalar_lea.vmem %s15, %s910
      $region80: #{egnn_ncp_forward.1} parent=63 // pred_fallthru
        _
      // Predicated region
      $region81: #{egnn_ncp_forward.1} parent=63 // pred_check
        %p912 = pneg %p289
      $region82: #{egnn_ncp_forward.1} parent=63 // pred_check_branch
        %914 = sbr.rel (%p912) target = $region84
      $region83: #{egnn_ncp_forward.1} parent=63 // pred_region
        %p915 = scmp.lt.s32.totalorder %s76, 4
        %s916 = scalar_select %p915, %s76, 4
        %s917 = smul.addr %s916, 48
        %s918 = smul.addr %s917, 8
        %s919 = scalar_lea.vmem %s17, %s918
      $region84: #{egnn_ncp_forward.1} parent=63 // pred_fallthru
        _
      // Predicated region
      $region85: #{egnn_ncp_forward.1} parent=63 // pred_check
        %p920 = pneg %p315
      $region86: #{egnn_ncp_forward.1} parent=63 // pred_check_branch
        %922 = sbr.rel (%p920) target = $region88
      $region87: #{egnn_ncp_forward.1} parent=63 // pred_region
        %p923 = scmp.lt.s32.totalorder %s76, 4
        %s924 = scalar_select %p923, %s76, 4
        %s925 = smul.addr %s924, 3
        %s926 = scalar_lea.vmem %s19, %s925
      $region88: #{egnn_ncp_forward.1} parent=63 // pred_fallthru
        _
      // Predicated region
      $region89: #{egnn_ncp_forward.1} parent=63 // pred_check
        %p927 = pneg %p341
      $region90: #{egnn_ncp_forward.1} parent=63 // pred_check_branch
        %929 = sbr.rel (%p927) target = $region92
      $region91: #{egnn_ncp_forward.1} parent=63 // pred_region
        %p930 = scmp.lt.s32.totalorder %s76, 4
        %s931 = scalar_select %p930, %s76, 4
        %s932 = smul.addr %s931, 48
        %s933 = smul.addr %s932, 8
        %s934 = scalar_lea.vmem %s21, %s933
      $region92: #{egnn_ncp_forward.1} parent=63 // pred_fallthru
        _
      // Predicated region
      $region93: #{egnn_ncp_forward.1} parent=63 // pred_check
        %p935 = pneg %p367
      $region94: #{egnn_ncp_forward.1} parent=63 // pred_check_branch
        %937 = sbr.rel (%p935) target = $region96
      $region95: #{egnn_ncp_forward.1} parent=63 // pred_region
        %p938 = scmp.lt.s32.totalorder %s76, 4
        %s939 = scalar_select %p938, %s76, 4
        %s940 = scalar_lea.vmem %s23, %s939
      $region96: #{egnn_ncp_forward.1} parent=63 // pred_fallthru
        _
      // Predicated region
      $region97: #{egnn_ncp_forward.1} parent=63 // pred_check
        %p941 = pneg %p393
      $region98: #{egnn_ncp_forward.1} parent=63 // pred_check_branch
        %943 = sbr.rel (%p941) target = $region100
      $region99: #{egnn_ncp_forward.1} parent=63 // pred_region
        %p944 = scmp.lt.s32.totalorder %s76, 4
        %s945 = scalar_select %p944, %s76, 4
        %s946 = scalar_lea.vmem %s25, %s945
      $region100: #{egnn_ncp_forward.1} parent=63 // pred_fallthru
        _
      // Predicated region
      $region101: #{egnn_ncp_forward.1} parent=63 // pred_check
        %p947 = pneg %p419
      $region102: #{egnn_ncp_forward.1} parent=63 // pred_check_branch
        %949 = sbr.rel (%p947) target = $region104
      $region103: #{egnn_ncp_forward.1} parent=63 // pred_region
        %p950 = scmp.lt.s32.totalorder %s76, 4
        %s951 = scalar_select %p950, %s76, 4
        %s952 = scalar_lea.vmem %s27, %s951
      $region104: #{egnn_ncp_forward.1} parent=63 // pred_fallthru
        _
      // Predicated region
      $region105: #{egnn_ncp_forward.1} parent=63 // pred_check
        %p953 = pneg %p445
      $region106: #{egnn_ncp_forward.1} parent=63 // pred_check_branch
        %955 = sbr.rel (%p953) target = $region108
      $region107: #{egnn_ncp_forward.1} parent=63 // pred_region
        %p956 = scmp.lt.s32.totalorder %s76, 4
        %s957 = scalar_select %p956, %s76, 4
        %s958 = scalar_lea.vmem %s29, %s957
      $region108: #{egnn_ncp_forward.1} parent=63 // pred_fallthru
        _
      // Predicated region
      $region109: #{egnn_ncp_forward.1} parent=63 // pred_check
        %p959 = pneg %p471
      $region110: #{egnn_ncp_forward.1} parent=63 // pred_check_branch
        %961 = sbr.rel (%p959) target = $region112
      $region111: #{egnn_ncp_forward.1} parent=63 // pred_region
        %p962 = scmp.lt.s32.totalorder %s76, 4
        %s963 = scalar_select %p962, %s76, 4
        %s964 = scalar_lea.vmem %s31, %s963
      $region112: #{egnn_ncp_forward.1} parent=63 // pred_fallthru
        _
      // Predicated region
      $region113: #{egnn_ncp_forward.1} parent=63 // pred_check
        %p965 = pneg %p497
      $region114: #{egnn_ncp_forward.1} parent=63 // pred_check_branch
        %967 = sbr.rel (%p965) target = $region116
      $region115: #{egnn_ncp_forward.1} parent=63 // pred_region
        %p968 = scmp.lt.s32.totalorder %s76, 4
        %s969 = scalar_select %p968, %s76, 4
        %s970 = scalar_lea.vmem %s33, %s969
      $region116: #{egnn_ncp_forward.1} parent=63 // pred_fallthru
        _
      // Predicated region
      $region117: #{egnn_ncp_forward.1} parent=63 // pred_check
        %p971 = pneg %p523
      $region118: #{egnn_ncp_forward.1} parent=63 // pred_check_branch
        %973 = sbr.rel (%p971) target = $region120
      $region119: #{egnn_ncp_forward.1} parent=63 // pred_region
        %p974 = scmp.lt.s32.totalorder %s76, 4
        %s975 = scalar_select %p974, %s76, 4
        %s976 = scalar_lea.vmem %s35, %s975
      $region120: #{egnn_ncp_forward.1} parent=63 // pred_fallthru
        _
      // Predicated region
      $region121: #{egnn_ncp_forward.1} parent=63 // pred_check
        %p977 = pneg %p549
      $region122: #{egnn_ncp_forward.1} parent=63 // pred_check_branch
        %979 = sbr.rel (%p977) target = $region124
      $region123: #{egnn_ncp_forward.1} parent=63 // pred_region
        %p980 = scmp.lt.s32.totalorder %s76, 4
        %s981 = scalar_select %p980, %s76, 4
        %s982 = smul.addr %s981, 8
        %s983 = smul.addr %s982, 8
        %s984 = scalar_lea.vmem %s37, %s983
      $region124: #{egnn_ncp_forward.1} parent=63 // pred_fallthru
        _
      // Predicated region
      $region125: #{egnn_ncp_forward.1} parent=63 // pred_check
        %p985 = pneg %p575
      $region126: #{egnn_ncp_forward.1} parent=63 // pred_check_branch
        %987 = sbr.rel (%p985) target = $region128
      $region127: #{egnn_ncp_forward.1} parent=63 // pred_region
        %p988 = scmp.lt.s32.totalorder %s76, 4
        %s989 = scalar_select %p988, %s76, 4
        %s990 = scalar_lea.vmem %s39, %s989
      $region128: #{egnn_ncp_forward.1} parent=63 // pred_fallthru
        _
      // Predicated region
      $region129: #{egnn_ncp_forward.1} parent=63 // pred_check
        %p991 = pneg %p601
      $region130: #{egnn_ncp_forward.1} parent=63 // pred_check_branch
        %993 = sbr.rel (%p991) target = $region132
      $region131: #{egnn_ncp_forward.1} parent=63 // pred_region
        %p994 = scmp.lt.s32.totalorder %s76, 4
        %s995 = scalar_select %p994, %s76, 4
        %s996 = smul.addr %s995, 8
        %s997 = smul.addr %s996, 8
        %s998 = scalar_lea.vmem %s41, %s997
      $region132: #{egnn_ncp_forward.1} parent=63 // pred_fallthru
        _
      // Predicated region
      $region133: #{egnn_ncp_forward.1} parent=63 // pred_check
        %p999 = pneg %p627
      $region134: #{egnn_ncp_forward.1} parent=63 // pred_check_branch
        %1001 = sbr.rel (%p999) target = $region136
      $region135: #{egnn_ncp_forward.1} parent=63 // pred_region
        %p1002 = scmp.lt.s32.totalorder %s76, 4
        %s1003 = scalar_select %p1002, %s76, 4
        %s1004 = scalar_lea.vmem %s43, %s1003
      $region136: #{egnn_ncp_forward.1} parent=63 // pred_fallthru
        _
    $region64: #{egnn_ncp_forward.1} parent=5 // pred_fallthru
      _
    %p1005 = scmp.le.s32.totalorder 1, %s69
    %p1006 = scmp.lt.s32.totalorder %s69, 11
    %p1007 = pnand %p1005, %p1006
    %p1008 = pneg %p1007
    // Predicated region
    $region137: #{egnn_ncp_forward.1} parent=5 // pred_check
      _
    $region138: #{egnn_ncp_forward.1} parent=5 // pred_check_branch
      %1010 = sbr.rel (%p1007) target = $region140
    $region139: #{egnn_ncp_forward.1} parent=5 // pred_region
      %s1011 = ssub.s32 %s69, 1
      %s1012 = smul.u32 2, %s79
      %p1013 = scmp.lt.s32.totalorder %s1012, 3
      %s1014 = scalar_select %p1013, %s1012, 3
      %s1015 = smul.addr %s1014, 8
      %s1016 = scalar_lea.vmem %s1, %s1015
      %p1017 = pneg %p107
      %p1018 = pneg %p104
      %s1019 = smul.u32 2, %s79
      %p1020 = scmp.lt.s32.totalorder %s1019, 3
      %s1021 = scalar_select %p1020, %s1019, 3
      %s1022 = smul.addr %s1021, 8
      %s1023 = scalar_lea.vmem %s3, %s1022
      %p1024 = pneg %p133
      %p1025 = pneg %p130
      %s1026 = smul.u32 2, %s79
      %p1027 = scmp.lt.s32.totalorder %s1026, 3
      %s1028 = scalar_select %p1027, %s1026, 3
      %s1029 = smul.addr %s1028, 8
      %s1030 = scalar_lea.vmem %s5, %s1029
      %p1031 = pneg %p159
      %p1032 = pneg %p156
      %p1033 = pneg %p180
      %p1034 = pneg %p177
      %p1035 = pneg %p201
      %p1036 = pneg %p198
      %p1037 = pneg %p222
      %p1038 = pneg %p219
      %p1039 = pneg %p243
      %p1040 = pneg %p240
      %p1041 = scmp.lt.s32.totalorder %s78, 4
      %s1042 = scalar_select %p1041, %s78, 4
      %s1043 = smul.addr %s1042, 24
      %s1044 = smul.addr %s1043, 8
      %s1045 = scalar_lea.vmem %s15, %s1044
      %p1046 = pneg %p269
      %p1047 = pneg %p266
      %p1048 = scmp.lt.s32.totalorder %s78, 4
      %s1049 = scalar_select %p1048, %s78, 4
      %s1050 = smul.addr %s1049, 48
      %s1051 = smul.addr %s1050, 8
      %s1052 = scalar_lea.vmem %s17, %s1051
      %p1053 = pneg %p295
      %p1054 = pneg %p292
      %p1055 = scmp.lt.s32.totalorder %s78, 4
      %s1056 = scalar_select %p1055, %s78, 4
      %s1057 = smul.addr %s1056, 3
      %s1058 = scalar_lea.vmem %s19, %s1057
      %p1059 = pneg %p321
      %p1060 = pneg %p318
      %p1061 = scmp.lt.s32.totalorder %s78, 4
      %s1062 = scalar_select %p1061, %s78, 4
      %s1063 = smul.addr %s1062, 48
      %s1064 = smul.addr %s1063, 8
      %s1065 = scalar_lea.vmem %s21, %s1064
      %p1066 = pneg %p347
      %p1067 = pneg %p344
      %p1068 = scmp.lt.s32.totalorder %s78, 4
      %s1069 = scalar_select %p1068, %s78, 4
      %s1070 = scalar_lea.vmem %s23, %s1069
      %p1071 = pneg %p373
      %p1072 = pneg %p370
      %p1073 = scmp.lt.s32.totalorder %s78, 4
      %s1074 = scalar_select %p1073, %s78, 4
      %s1075 = scalar_lea.vmem %s25, %s1074
      %p1076 = pneg %p399
      %p1077 = pneg %p396
      %p1078 = scmp.lt.s32.totalorder %s78, 4
      %s1079 = scalar_select %p1078, %s78, 4
      %s1080 = scalar_lea.vmem %s27, %s1079
      %p1081 = pneg %p425
      %p1082 = pneg %p422
      %p1083 = scmp.lt.s32.totalorder %s78, 4
      %s1084 = scalar_select %p1083, %s78, 4
      %s1085 = scalar_lea.vmem %s29, %s1084
      %p1086 = pneg %p451
      %p1087 = pneg %p448
      %p1088 = scmp.lt.s32.totalorder %s78, 4
      %s1089 = scalar_select %p1088, %s78, 4
      %s1090 = scalar_lea.vmem %s31, %s1089
      %p1091 = pneg %p477
      %p1092 = pneg %p474
      %p1093 = scmp.lt.s32.totalorder %s78, 4
      %s1094 = scalar_select %p1093, %s78, 4
      %s1095 = scalar_lea.vmem %s33, %s1094
      %p1096 = pneg %p503
      %p1097 = pneg %p500
      %p1098 = scmp.lt.s32.totalorder %s78, 4
      %s1099 = scalar_select %p1098, %s78, 4
      %s1100 = scalar_lea.vmem %s35, %s1099
      %p1101 = pneg %p529
      %p1102 = pneg %p526
      %p1103 = scmp.lt.s32.totalorder %s78, 4
      %s1104 = scalar_select %p1103, %s78, 4
      %s1105 = smul.addr %s1104, 8
      %s1106 = smul.addr %s1105, 8
      %s1107 = scalar_lea.vmem %s37, %s1106
      %p1108 = pneg %p555
      %p1109 = pneg %p552
      %p1110 = scmp.lt.s32.totalorder %s78, 4
      %s1111 = scalar_select %p1110, %s78, 4
      %s1112 = scalar_lea.vmem %s39, %s1111
      %p1113 = pneg %p581
      %p1114 = pneg %p578
      %p1115 = scmp.lt.s32.totalorder %s78, 4
      %s1116 = scalar_select %p1115, %s78, 4
      %s1117 = smul.addr %s1116, 8
      %s1118 = smul.addr %s1117, 8
      %s1119 = scalar_lea.vmem %s41, %s1118
      %p1120 = pneg %p607
      %p1121 = pneg %p604
      %p1122 = scmp.lt.s32.totalorder %s78, 4
      %s1123 = scalar_select %p1122, %s78, 4
      %s1124 = scalar_lea.vmem %s43, %s1123
      %p1125 = pneg %p633
      %p1126 = pneg %p630
      %p1127 = pneg %p654
      %p1128 = pneg %p651
      %p1129 = pneg %p675
      %p1130 = pneg %p672
      %p1131 = pneg %p696
      %p1132 = pneg %p693
      %p1133 = pneg %p717
      %p1134 = pneg %p714
      %p1135 = pneg %p738
      %p1136 = pneg %p735
      %p1137 = pneg %p759
      %p1138 = pneg %p756
      %p1139 = pneg %p780
      %p1140 = pneg %p777
      %p1141 = pneg %p801
      %p1142 = pneg %p798
      %p1143 = pneg %p822
      %p1144 = pneg %p819
      %s1145 = smul.u32 2, %s79
      %p1146 = scmp.lt.s32.totalorder %s1145, 3
      %s1147 = scalar_select %p1146, %s1145, 3
      %s1148 = smul.addr %s1147, 8
      %s1149 = scalar_lea.vmem %s1, %s1148
      %s1150 = smul.u32 2, %s79
      %s1151 = smul.u32 2, %s79
      %p1152 = scmp.lt.s32.totalorder %s1151, 3
      %s1153 = scalar_select %p1152, %s1151, 3
      %s1154 = smul.addr %s1153, 8
      %s1155 = scalar_lea.vmem %s3, %s1154
      %s1156 = smul.u32 2, %s79
      %s1157 = smul.u32 2, %s79
      %p1158 = scmp.lt.s32.totalorder %s1157, 3
      %s1159 = scalar_select %p1158, %s1157, 3
      %s1160 = smul.addr %s1159, 8
      %s1161 = scalar_lea.vmem %s5, %s1160
      %s1162 = smul.u32 2, %s79
      %p1163 = scmp.lt.s32.totalorder %s78, 4
      %s1164 = scalar_select %p1163, %s78, 4
      %s1165 = smul.addr %s1164, 24
      %s1166 = smul.addr %s1165, 8
      %s1167 = scalar_lea.vmem %s15, %s1166
      %p1168 = scmp.lt.s32.totalorder %s78, 4
      %s1169 = scalar_select %p1168, %s78, 4
      %s1170 = smul.addr %s1169, 48
      %s1171 = smul.addr %s1170, 8
      %s1172 = scalar_lea.vmem %s17, %s1171
      %p1173 = scmp.lt.s32.totalorder %s78, 4
      %s1174 = scalar_select %p1173, %s78, 4
      %s1175 = smul.addr %s1174, 3
      %s1176 = scalar_lea.vmem %s19, %s1175
      %p1177 = scmp.lt.s32.totalorder %s78, 4
      %s1178 = scalar_select %p1177, %s78, 4
      %s1179 = smul.addr %s1178, 48
      %s1180 = smul.addr %s1179, 8
      %s1181 = scalar_lea.vmem %s21, %s1180
      %p1182 = scmp.lt.s32.totalorder %s78, 4
      %s1183 = scalar_select %p1182, %s78, 4
      %s1184 = scalar_lea.vmem %s23, %s1183
      %p1185 = scmp.lt.s32.totalorder %s78, 4
      %s1186 = scalar_select %p1185, %s78, 4
      %s1187 = scalar_lea.vmem %s25, %s1186
      %p1188 = scmp.lt.s32.totalorder %s78, 4
      %s1189 = scalar_select %p1188, %s78, 4
      %s1190 = scalar_lea.vmem %s27, %s1189
      %p1191 = scmp.lt.s32.totalorder %s78, 4
      %s1192 = scalar_select %p1191, %s78, 4
      %s1193 = scalar_lea.vmem %s29, %s1192
      %p1194 = scmp.lt.s32.totalorder %s78, 4
      %s1195 = scalar_select %p1194, %s78, 4
      %s1196 = scalar_lea.vmem %s31, %s1195
      %p1197 = scmp.lt.s32.totalorder %s78, 4
      %s1198 = scalar_select %p1197, %s78, 4
      %s1199 = scalar_lea.vmem %s33, %s1198
      %p1200 = scmp.lt.s32.totalorder %s78, 4
      %s1201 = scalar_select %p1200, %s78, 4
      %s1202 = scalar_lea.vmem %s35, %s1201
      %p1203 = scmp.lt.s32.totalorder %s78, 4
      %s1204 = scalar_select %p1203, %s78, 4
      %s1205 = smul.addr %s1204, 8
      %s1206 = smul.addr %s1205, 8
      %s1207 = scalar_lea.vmem %s37, %s1206
      %p1208 = scmp.lt.s32.totalorder %s78, 4
      %s1209 = scalar_select %p1208, %s78, 4
      %s1210 = scalar_lea.vmem %s39, %s1209
      %p1211 = scmp.lt.s32.totalorder %s78, 4
      %s1212 = scalar_select %p1211, %s78, 4
      %s1213 = smul.addr %s1212, 8
      %s1214 = smul.addr %s1213, 8
      %s1215 = scalar_lea.vmem %s41, %s1214
      %p1216 = scmp.lt.s32.totalorder %s78, 4
      %s1217 = scalar_select %p1216, %s78, 4
      %s1218 = scalar_lea.vmem %s43, %s1217
      %p1219 = scmp.eq.s32.totalorder %s78, 0
      %p1220 = scmp.eq.s32.totalorder %s79, 0
      %p1221 = pnand %p1219, %p1220
      %p1222 = pneg %p1221
      // Predicated region
      $region141: #{egnn_ncp_forward.1} parent=139 // pred_check
        _
      $region142: #{egnn_ncp_forward.1} parent=139 // pred_check_branch
        %1224 = sbr.rel (%p1221) target = $region144
      $region143: #{egnn_ncp_forward.1} parent=139 // pred_region
        %v1225 = vld [vmem:[%s7] sm:$0xff]
        %v1226 = vld [vmem:[%s7 + $0x8] sm:$0xff]
        %vm1227 = vcmask 261120
        %1228 = vst.msk [vmem:[#allocation2] sm:$0xff] %vm1227, %v1225
        %1229 = vst.msk [vmem:[#allocation2 + $0x8] sm:$0xff] %vm1227, %v1226
        %v1230 = vld [vmem:[%s7] sm:$0xff]
        %v1231 = vld [vmem:[%s7 + $0x8] sm:$0xff]
        %1232 = vst.msk [vmem:[#allocation4] sm:$0xff] %vm1227, %v1230
        %1233 = vst.msk [vmem:[#allocation4 + $0x8] sm:$0xff] %vm1227, %v1231
      $region144: #{egnn_ncp_forward.1} parent=139 // pred_fallthru
        _
      // Predicated region
      $region145: #{egnn_ncp_forward.1} parent=139 // pred_check
        %p1234 = pneg %p1220
      $region146: #{egnn_ncp_forward.1} parent=139 // pred_check_branch
        %1236 = sbr.rel (%p1234) target = $region148
      $region147: #{egnn_ncp_forward.1} parent=139 // pred_region
        %vm1237 = vcmask 261120
        %1238 = vst.msk [vmem:[#allocation3] sm:$0xff] %vm1237, 0.0
        %1239 = vst.msk [vmem:[#allocation3 + $0x8] sm:$0xff] %vm1237, 0.0
      $region148: #{egnn_ncp_forward.1} parent=139 // pred_fallthru
        _
      %v1240 = vld [vmem:[#allocation2] sm:$0xff]
      %v1241 = vld [vmem:[#allocation2 + $0x8] sm:$0xff]
      %v1242 = vld [vmem:[%s1155] sm:$0xff]
      %v1243 = vld [vmem:[%s1155 + $0x8] sm:$0xff]
      %vm1244 = vcmask 130048
      %v1246 = vsel %vm1244, %v1242, 0
      %v1249 = vsel %vm1244, %v1243, 0
      %1251 = vmatprep.subr.mxu0 0.0
      %1252 = vmatpush1.msra.mxu0 0.0
      %1253 = vmatprep.subr.mxu0 0.0
      %1254 = vmatpush1.msra.mxu0 0.0
      %1255 = vmatprep.subr.mxu0 0.0
      %1256 = vmatpush1.msra.mxu0 0.0
      %1257 = vmatprep.subr.mxu0 0.0
      %1258 = vmatpush1.msra.mxu0 0.0
      %1259 = vmatprep.subr.mxu0 0.0
      %1260 = vmatpush1.msra.mxu0 0.0
      %1261 = vmatprep.subr.mxu0 0.0
      %1262 = vmatpush1.msra.mxu0 0.0
      %1263 = vmatprep.subr.mxu0 0.0
      %1264 = vmatpush1.msra.mxu0 0.0
      %1265 = vmatprep.subr.mxu0 0.0
      %1266 = vmatpush1.msra.mxu0 0.0
      %1267 = vmatprep.subr.mxu0 0.0
      %1268 = vmatpush1.msra.mxu0 0.0
      %1269 = vmatprep.subr.mxu0 0.0
      %1270 = vmatpush1.msra.mxu0 0.0
      %1271 = vmatprep.subr.mxu0 0.0
      %1272 = vmatpush1.msra.mxu0 0.0
      %1273 = vmatprep.subr.mxu0 0.0
      %1274 = vmatpush1.msra.mxu0 0.0
      %1275 = vmatprep.subr.mxu0 0.0
      %1276 = vmatpush1.msra.mxu0 0.0
      %1277 = vmatprep.subr.mxu0 0.0
      %1278 = vmatpush1.msra.mxu0 0.0
      %1279 = vmatprep.subr.mxu0 0.0
      %1280 = vmatpush1.msra.mxu0 %v1241
      %1281 = vmatprep.subr.mxu0 0.0
      %1282 = vmatpush1.msra.mxu0 %v1240
      %1283 = vmatprep.subr.mxu0 0.0
      %1284 = vmatpush2.msra.mxu0 0.0
      %1285 = vmatprep.subr.mxu0 0.0
      %1286 = vmatpush2.msra.mxu0 0.0
      %1287 = vmatprep.subr.mxu0 0.0
      %1288 = vmatpush2.msra.mxu0 0.0
      %1289 = vmatprep.subr.mxu0 0.0
      %1290 = vmatpush2.msra.mxu0 0.0
      %1291 = vmatprep.subr.mxu0 0.0
      %1292 = vmatpush2.msra.mxu0 0.0
      %1293 = vmatprep.subr.mxu0 0.0
      %1294 = vmatpush2.msra.mxu0 0.0
      %1295 = vmatprep.subr.mxu0 0.0
      %1296 = vmatpush2.msra.mxu0 0.0
      %1297 = vmatprep.subr.mxu0 0.0
      %1298 = vmatpush2.msra.mxu0 0.0
      %1299 = vmatprep.subr.mxu0 0.0
      %1300 = vmatpush2.msra.mxu0 0.0
      %1301 = vmatprep.subr.mxu0 0.0
      %1302 = vmatpush2.msra.mxu0 0.0
      %1303 = vmatprep.subr.mxu0 0.0
      %1304 = vmatpush2.msra.mxu0 0.0
      %1305 = vmatprep.subr.mxu0 0.0
      %1306 = vmatpush2.msra.mxu0 0.0
      %1307 = vmatprep.subr.mxu0 0.0
      %1308 = vmatpush2.msra.mxu0 0.0
      %1309 = vmatprep.subr.mxu0 0.0
      %1310 = vmatpush2.msra.mxu0 0.0
      %1311 = vmatprep.subr.mxu0 0.0
      %1312 = vmatpush2.msra.mxu0 0.0
      %1313 = vmatprep.subr.mxu0 0.0
      %1314 = vmatpush2.msra.mxu0 0.0
      %1315 = vmatprep.mubr.f32.mxu0 0.0
      %1316 = vmatmul.mubr.f32.gmra.mxu0 %v1246
      %v1317 = vpop.f32.mrf.mxu0
      %v1318 = vadd.f32 0.0, %v1317
      %v1319 = vpop.f32.mrf.mxu0
      %1320 = vmatprep.mubr.f32.mxu0 0.0
      %1321 = vmatmul.mubr.f32.gmra.mxu0 %v1249
      %v1322 = vpop.f32.mrf.mxu0
      %v1323 = vadd.f32 0.0, %v1322
      %v1324 = vpop.f32.mrf.mxu0
      %1325 = vdwg.mxu0
      %v1326 = vld [vmem:[%s1149] sm:$0xff]
      %v1327 = vld [vmem:[%s1149 + $0x8] sm:$0xff]
      %v1329 = vsel %vm1244, %v1326, 0
      %v1332 = vsel %vm1244, %v1327, 0
      %1334 = vmatprep.subr.mxu0 0.0
      %1335 = vmatpush1.msra.mxu0 0.0
      %1336 = vmatprep.subr.mxu0 0.0
      %1337 = vmatpush1.msra.mxu0 0.0
      %1338 = vmatprep.subr.mxu0 0.0
      %1339 = vmatpush1.msra.mxu0 0.0
      %1340 = vmatprep.subr.mxu0 0.0
      %1341 = vmatpush1.msra.mxu0 0.0
      %1342 = vmatprep.subr.mxu0 0.0
      %1343 = vmatpush1.msra.mxu0 0.0
      %1344 = vmatprep.subr.mxu0 0.0
      %1345 = vmatpush1.msra.mxu0 0.0
      %1346 = vmatprep.subr.mxu0 0.0
      %1347 = vmatpush1.msra.mxu0 0.0
      %1348 = vmatprep.subr.mxu0 0.0
      %1349 = vmatpush1.msra.mxu0 0.0
      %1350 = vmatprep.subr.mxu0 0.0
      %1351 = vmatpush1.msra.mxu0 0.0
      %1352 = vmatprep.subr.mxu0 0.0
      %1353 = vmatpush1.msra.mxu0 0.0
      %1354 = vmatprep.subr.mxu0 0.0
      %1355 = vmatpush1.msra.mxu0 0.0
      %1356 = vmatprep.subr.mxu0 0.0
      %1357 = vmatpush1.msra.mxu0 0.0
      %1358 = vmatprep.subr.mxu0 0.0
      %1359 = vmatpush1.msra.mxu0 0.0
      %1360 = vmatprep.subr.mxu0 0.0
      %1361 = vmatpush1.msra.mxu0 0.0
      %1362 = vmatprep.subr.mxu0 0.0
      %1363 = vmatpush1.msra.mxu0 %v1241
      %1364 = vmatprep.subr.mxu0 0.0
      %1365 = vmatpush1.msra.mxu0 %v1240
      %1366 = vmatprep.subr.mxu0 0.0
      %1367 = vmatpush2.msra.mxu0 0.0
      %1368 = vmatprep.subr.mxu0 0.0
      %1369 = vmatpush2.msra.mxu0 0.0
      %1370 = vmatprep.subr.mxu0 0.0
      %1371 = vmatpush2.msra.mxu0 0.0
      %1372 = vmatprep.subr.mxu0 0.0
      %1373 = vmatpush2.msra.mxu0 0.0
      %1374 = vmatprep.subr.mxu0 0.0
      %1375 = vmatpush2.msra.mxu0 0.0
      %1376 = vmatprep.subr.mxu0 0.0
      %1377 = vmatpush2.msra.mxu0 0.0
      %1378 = vmatprep.subr.mxu0 0.0
      %1379 = vmatpush2.msra.mxu0 0.0
      %1380 = vmatprep.subr.mxu0 0.0
      %1381 = vmatpush2.msra.mxu0 0.0
      %1382 = vmatprep.subr.mxu0 0.0
      %1383 = vmatpush2.msra.mxu0 0.0
      %1384 = vmatprep.subr.mxu0 0.0
      %1385 = vmatpush2.msra.mxu0 0.0
      %1386 = vmatprep.subr.mxu0 0.0
      %1387 = vmatpush2.msra.mxu0 0.0
      %1388 = vmatprep.subr.mxu0 0.0
      %1389 = vmatpush2.msra.mxu0 0.0
      %1390 = vmatprep.subr.mxu0 0.0
      %1391 = vmatpush2.msra.mxu0 0.0
      %1392 = vmatprep.subr.mxu0 0.0
      %1393 = vmatpush2.msra.mxu0 0.0
      %1394 = vmatprep.subr.mxu0 0.0
      %1395 = vmatpush2.msra.mxu0 0.0
      %1396 = vmatprep.subr.mxu0 0.0
      %1397 = vmatpush2.msra.mxu0 0.0
      %1398 = vmatprep.mubr.f32.mxu0 0.0
      %1399 = vmatmul.mubr.f32.gmra.mxu0 %v1329
      %v1400 = vpop.f32.mrf.mxu0
      %v1401 = vadd.f32 0.0, %v1400
      %v1402 = vpop.f32.mrf.mxu0
      %1403 = vmatprep.mubr.f32.mxu0 0.0
      %1404 = vmatmul.mubr.f32.gmra.mxu0 %v1332
      %v1405 = vpop.f32.mrf.mxu0
      %v1406 = vadd.f32 0.0, %v1405
      %v1407 = vpop.f32.mrf.mxu0
      %1408 = vdwg.mxu0
      %1411 = vrot.lane.b32.xlu0 %v1401, 32
      %v1412 = vpop.permute.xlu0 %1411
      %1413 = vrot.lane.b32.xlu0 %v1406, 32
      %v1414 = vpop.permute.xlu0 %1413
      %vm1417 = vcmask 261120
      %v1418 = vsel %vm1417, %v1318, %v1412
      %v1419 = vsel %vm1417, %v1323, %v1414
      %v1420 = vld [vmem:[%s1167] sm:$0xff]
      %v1421 = vld [vmem:[%s1167 + $0x8] sm:$0xff]
      %v1422 = vld [vmem:[%s1167 + $0x10] sm:$0xff]
      %v1423 = vld [vmem:[%s1167 + $0x18] sm:$0xff]
      %v1424 = vld [vmem:[%s1167 + $0x20] sm:$0xff]
      %v1425 = vld [vmem:[%s1167 + $0x28] sm:$0xff]
      %v1426 = vld [vmem:[%s1167 + $0x30] sm:$0xff]
      %v1427 = vld [vmem:[%s1167 + $0x38] sm:$0xff]
      %v1428 = vld [vmem:[%s1167 + $0x40] sm:$0xff]
      %v1429 = vld [vmem:[%s1167 + $0x48] sm:$0xff]
      %v1430 = vld [vmem:[%s1167 + $0x50] sm:$0xff]
      %v1431 = vld [vmem:[%s1167 + $0x58] sm:$0xff]
      %v1432 = vld [vmem:[%s1167 + $0x60] sm:$0xff]
      %v1433 = vld [vmem:[%s1167 + $0x68] sm:$0xff]
      %v1434 = vld [vmem:[%s1167 + $0x70] sm:$0xff]
      %v1435 = vld [vmem:[%s1167 + $0x78] sm:$0xff]
      %v1436 = vld [vmem:[%s1167 + $0x80] sm:$0xff]
      %v1437 = vld [vmem:[%s1167 + $0x88] sm:$0xff]
      %v1438 = vld [vmem:[%s1167 + $0x90] sm:$0xff]
      %v1439 = vld [vmem:[%s1167 + $0x98] sm:$0xff]
      %v1440 = vld [vmem:[%s1167 + $0xa0] sm:$0xff]
      %v1441 = vld [vmem:[%s1167 + $0xa8] sm:$0xff]
      %v1442 = vld [vmem:[%s1167 + $0xb0] sm:$0xff]
      %v1443 = vld [vmem:[%s1167 + $0xb8] sm:$0xff]
      %v1444 = vld [vmem:[%s1161] sm:$0xff]
      %v1445 = vld [vmem:[%s1161 + $0x8] sm:$0xff]
      %v1446 = vld [vmem:[%s1172] sm:$0xff]
      %v1447 = vld [vmem:[%s1172 + $0x8] sm:$0xff]
      %v1448 = vld [vmem:[%s1172 + $0x10] sm:$0xff]
      %v1449 = vld [vmem:[%s1172 + $0x18] sm:$0xff]
      %v1450 = vld [vmem:[%s1172 + $0x20] sm:$0xff]
      %v1451 = vld [vmem:[%s1172 + $0x28] sm:$0xff]
      %v1452 = vld [vmem:[%s1172 + $0x30] sm:$0xff]
      %v1453 = vld [vmem:[%s1172 + $0x38] sm:$0xff]
      %v1454 = vld [vmem:[%s1172 + $0x40] sm:$0xff]
      %v1455 = vld [vmem:[%s1172 + $0x48] sm:$0xff]
      %v1456 = vld [vmem:[%s1172 + $0x50] sm:$0xff]
      %v1457 = vld [vmem:[%s1172 + $0x58] sm:$0xff]
      %v1458 = vld [vmem:[%s1172 + $0x60] sm:$0xff]
      %v1459 = vld [vmem:[%s1172 + $0x68] sm:$0xff]
      %v1460 = vld [vmem:[%s1172 + $0x70] sm:$0xff]
      %v1461 = vld [vmem:[%s1172 + $0x78] sm:$0xff]
      %v1462 = vld [vmem:[%s1172 + $0x80] sm:$0xff]
      %v1463 = vld [vmem:[%s1172 + $0x88] sm:$0xff]
      %v1464 = vld [vmem:[%s1172 + $0x90] sm:$0xff]
      %v1465 = vld [vmem:[%s1172 + $0x98] sm:$0xff]
      %v1466 = vld [vmem:[%s1172 + $0xa0] sm:$0xff]
      %v1467 = vld [vmem:[%s1172 + $0xa8] sm:$0xff]
      %v1468 = vld [vmem:[%s1172 + $0xb0] sm:$0xff]
      %v1469 = vld [vmem:[%s1172 + $0xb8] sm:$0xff]
      %v1470 = vld [vmem:[%s1172 + $0xc0] sm:$0xff]
      %v1471 = vld [vmem:[%s1172 + $0xc8] sm:$0xff]
      %v1472 = vld [vmem:[%s1172 + $0xd0] sm:$0xff]
      %v1473 = vld [vmem:[%s1172 + $0xd8] sm:$0xff]
      %v1474 = vld [vmem:[%s1172 + $0xe0] sm:$0xff]
      %v1475 = vld [vmem:[%s1172 + $0xe8] sm:$0xff]
      %v1476 = vld [vmem:[%s1172 + $0xf0] sm:$0xff]
      %v1477 = vld [vmem:[%s1172 + $0xf8] sm:$0xff]
      %v1478 = vld [vmem:[%s1172 + $0x100] sm:$0xff]
      %v1479 = vld [vmem:[%s1172 + $0x108] sm:$0xff]
      %v1480 = vld [vmem:[%s1172 + $0x110] sm:$0xff]
      %v1481 = vld [vmem:[%s1172 + $0x118] sm:$0xff]
      %v1482 = vld [vmem:[%s1172 + $0x120] sm:$0xff]
      %v1483 = vld [vmem:[%s1172 + $0x128] sm:$0xff]
      %v1484 = vld [vmem:[%s1172 + $0x130] sm:$0xff]
      %v1485 = vld [vmem:[%s1172 + $0x138] sm:$0xff]
      %v1486 = vld [vmem:[%s1172 + $0x140] sm:$0xff]
      %v1487 = vld [vmem:[%s1172 + $0x148] sm:$0xff]
      %v1488 = vld [vmem:[%s1172 + $0x150] sm:$0xff]
      %v1489 = vld [vmem:[%s1172 + $0x158] sm:$0xff]
      %v1490 = vld [vmem:[%s1172 + $0x160] sm:$0xff]
      %v1491 = vld [vmem:[%s1172 + $0x168] sm:$0xff]
      %v1492 = vld [vmem:[%s1172 + $0x170] sm:$0xff]
      %v1493 = vld [vmem:[%s1172 + $0x178] sm:$0xff]
      %1494 = vmatprep.subr.mxu0 %v1492
      %1495 = vmatpush1.msra.mxu0 %v1491
      %1496 = vmatprep.subr.mxu0 %v1489
      %1497 = vmatpush1.msra.mxu0 %v1488
      %1498 = vmatprep.subr.mxu0 %v1486
      %1499 = vmatpush1.msra.mxu0 %v1485
      %1500 = vmatprep.subr.mxu0 %v1483
      %1501 = vmatpush1.msra.mxu0 %v1482
      %1502 = vmatprep.subr.mxu0 %v1480
      %1503 = vmatpush1.msra.mxu0 %v1479
      %1504 = vmatprep.subr.mxu0 %v1477
      %1505 = vmatpush1.msra.mxu0 %v1476
      %1506 = vmatprep.subr.mxu0 %v1474
      %1507 = vmatpush1.msra.mxu0 %v1473
      %1508 = vmatprep.subr.mxu0 %v1471
      %1509 = vmatpush1.msra.mxu0 %v1470
      %1510 = vmatprep.subr.mxu0 %v1468
      %1511 = vmatpush1.msra.mxu0 %v1467
      %1512 = vmatprep.subr.mxu0 %v1465
      %1513 = vmatpush1.msra.mxu0 %v1464
      %1514 = vmatprep.subr.mxu0 %v1462
      %1515 = vmatpush1.msra.mxu0 %v1461
      %1516 = vmatprep.subr.mxu0 %v1459
      %1517 = vmatpush1.msra.mxu0 %v1458
      %1518 = vmatprep.subr.mxu0 %v1456
      %1519 = vmatpush1.msra.mxu0 %v1455
      %1520 = vmatprep.subr.mxu0 %v1453
      %1521 = vmatpush1.msra.mxu0 %v1452
      %1522 = vmatprep.subr.mxu0 %v1450
      %1523 = vmatpush1.msra.mxu0 %v1449
      %1524 = vmatprep.subr.mxu0 %v1447
      %1525 = vmatpush1.msra.mxu0 %v1446
      %1526 = vmatprep.subr.mxu0 0.0
      %1527 = vmatpush2.msra.mxu0 0.0
      %1528 = vmatprep.subr.mxu0 0.0
      %1529 = vmatpush2.msra.mxu0 0.0
      %1530 = vmatprep.subr.mxu0 0.0
      %1531 = vmatpush2.msra.mxu0 0.0
      %1532 = vmatprep.subr.mxu0 0.0
      %1533 = vmatpush2.msra.mxu0 0.0
      %1534 = vmatprep.subr.mxu0 0.0
      %1535 = vmatpush2.msra.mxu0 0.0
      %1536 = vmatprep.subr.mxu0 0.0
      %1537 = vmatpush2.msra.mxu0 0.0
      %1538 = vmatprep.subr.mxu0 0.0
      %1539 = vmatpush2.msra.mxu0 0.0
      %1540 = vmatprep.subr.mxu0 0.0
      %1541 = vmatpush2.msra.mxu0 0.0
      %1542 = vmatprep.subr.mxu0 0.0
      %1543 = vmatpush2.msra.mxu0 0.0
      %1544 = vmatprep.subr.mxu0 0.0
      %1545 = vmatpush2.msra.mxu0 0.0
      %1546 = vmatprep.subr.mxu0 0.0
      %1547 = vmatpush2.msra.mxu0 0.0
      %1548 = vmatprep.subr.mxu0 0.0
      %1549 = vmatpush2.msra.mxu0 0.0
      %1550 = vmatprep.subr.mxu0 0.0
      %1551 = vmatpush2.msra.mxu0 0.0
      %1552 = vmatprep.subr.mxu0 0.0
      %1553 = vmatpush2.msra.mxu0 0.0
      %1554 = vmatprep.subr.mxu0 0.0
      %1555 = vmatpush2.msra.mxu0 0.0
      %1556 = vmatprep.subr.mxu0 0.0
      %1557 = vmatpush2.msra.mxu0 0.0
      %1558 = vmatprep.mubr.f32.mxu0 0.0
      %1559 = vmatmul.mubr.f32.gmra.mxu0 %v1444
      %v1560 = vpop.f32.mrf.mxu0
      %v1561 = vadd.f32 0.0, %v1560
      %v1562 = vpop.f32.mrf.mxu0
      %v1563 = vadd.f32 0.0, %v1562
      %1564 = vmatprep.mubr.f32.mxu0 0.0
      %1565 = vmatmul.mubr.f32.gmra.mxu0 %v1445
      %v1566 = vpop.f32.mrf.mxu0
      %v1567 = vadd.f32 0.0, %v1566
      %v1568 = vpop.f32.mrf.mxu0
      %v1569 = vadd.f32 0.0, %v1568
      %1570 = vdwg.mxu0
      %1571 = vmatprep.subr.mxu0 0.0
      %1572 = vmatpush1.msra.mxu0 %v1493
      %1573 = vmatprep.subr.mxu0 0.0
      %1574 = vmatpush1.msra.mxu0 %v1490
      %1575 = vmatprep.subr.mxu0 0.0
      %1576 = vmatpush1.msra.mxu0 %v1487
      %1577 = vmatprep.subr.mxu0 0.0
      %1578 = vmatpush1.msra.mxu0 %v1484
      %1579 = vmatprep.subr.mxu0 0.0
      %1580 = vmatpush1.msra.mxu0 %v1481
      %1581 = vmatprep.subr.mxu0 0.0
      %1582 = vmatpush1.msra.mxu0 %v1478
      %1583 = vmatprep.subr.mxu0 0.0
      %1584 = vmatpush1.msra.mxu0 %v1475
      %1585 = vmatprep.subr.mxu0 0.0
      %1586 = vmatpush1.msra.mxu0 %v1472
      %1587 = vmatprep.subr.mxu0 0.0
      %1588 = vmatpush1.msra.mxu0 %v1469
      %1589 = vmatprep.subr.mxu0 0.0
      %1590 = vmatpush1.msra.mxu0 %v1466
      %1591 = vmatprep.subr.mxu0 0.0
      %1592 = vmatpush1.msra.mxu0 %v1463
      %1593 = vmatprep.subr.mxu0 0.0
      %1594 = vmatpush1.msra.mxu0 %v1460
      %1595 = vmatprep.subr.mxu0 0.0
      %1596 = vmatpush1.msra.mxu0 %v1457
      %1597 = vmatprep.subr.mxu0 0.0
      %1598 = vmatpush1.msra.mxu0 %v1454
      %1599 = vmatprep.subr.mxu0 0.0
      %1600 = vmatpush1.msra.mxu0 %v1451
      %1601 = vmatprep.subr.mxu0 0.0
      %1602 = vmatpush1.msra.mxu0 %v1448
      %1603 = vmatprep.subr.mxu0 0.0
      %1604 = vmatpush2.msra.mxu0 0.0
      %1605 = vmatprep.subr.mxu0 0.0
      %1606 = vmatpush2.msra.mxu0 0.0
      %1607 = vmatprep.subr.mxu0 0.0
      %1608 = vmatpush2.msra.mxu0 0.0
      %1609 = vmatprep.subr.mxu0 0.0
      %1610 = vmatpush2.msra.mxu0 0.0
      %1611 = vmatprep.subr.mxu0 0.0
      %1612 = vmatpush2.msra.mxu0 0.0
      %1613 = vmatprep.subr.mxu0 0.0
      %1614 = vmatpush2.msra.mxu0 0.0
      %1615 = vmatprep.subr.mxu0 0.0
      %1616 = vmatpush2.msra.mxu0 0.0
      %1617 = vmatprep.subr.mxu0 0.0
      %1618 = vmatpush2.msra.mxu0 0.0
      %1619 = vmatprep.subr.mxu0 0.0
      %1620 = vmatpush2.msra.mxu0 0.0
      %1621 = vmatprep.subr.mxu0 0.0
      %1622 = vmatpush2.msra.mxu0 0.0
      %1623 = vmatprep.subr.mxu0 0.0
      %1624 = vmatpush2.msra.mxu0 0.0
      %1625 = vmatprep.subr.mxu0 0.0
      %1626 = vmatpush2.msra.mxu0 0.0
      %1627 = vmatprep.subr.mxu0 0.0
      %1628 = vmatpush2.msra.mxu0 0.0
      %1629 = vmatprep.subr.mxu0 0.0
      %1630 = vmatpush2.msra.mxu0 0.0
      %1631 = vmatprep.subr.mxu0 0.0
      %1632 = vmatpush2.msra.mxu0 0.0
      %1633 = vmatprep.subr.mxu0 0.0
      %1634 = vmatpush2.msra.mxu0 0.0
      %1635 = vmatprep.mubr.f32.mxu0 0.0
      %1636 = vmatmul.mubr.f32.gmra.mxu0 %v1444
      %v1637 = vpop.f32.mrf.mxu0
      %v1638 = vadd.f32 0.0, %v1637
      %v1639 = vpop.f32.mrf.mxu0
      %1640 = vmatprep.mubr.f32.mxu0 0.0
      %1641 = vmatmul.mubr.f32.gmra.mxu0 %v1445
      %v1642 = vpop.f32.mrf.mxu0
      %v1643 = vadd.f32 0.0, %v1642
      %v1644 = vpop.f32.mrf.mxu0
      %1645 = vdwg.mxu0
      %vm1646 = vcmask 523264
      %v1648 = vsel %vm1646, %v1418, 0
      %v1651 = vsel %vm1646, %v1419, 0
      %1653 = vmatprep.subr.mxu0 0.0
      %1654 = vmatpush1.msra.mxu0 0.0
      %1655 = vmatprep.subr.mxu0 0.0
      %1656 = vmatpush1.msra.mxu0 0.0
      %1657 = vmatprep.subr.mxu0 0.0
      %1658 = vmatpush1.msra.mxu0 0.0
      %1659 = vmatprep.subr.mxu0 0.0
      %1660 = vmatpush1.msra.mxu0 0.0
      %1661 = vmatprep.subr.mxu0 0.0
      %1662 = vmatpush1.msra.mxu0 0.0
      %1663 = vmatprep.subr.mxu0 0.0
      %1664 = vmatpush1.msra.mxu0 0.0
      %1665 = vmatprep.subr.mxu0 0.0
      %1666 = vmatpush1.msra.mxu0 0.0
      %1667 = vmatprep.subr.mxu0 0.0
      %1668 = vmatpush1.msra.mxu0 0.0
      %1669 = vmatprep.subr.mxu0 %v1442
      %1670 = vmatpush1.msra.mxu0 %v1441
      %1671 = vmatprep.subr.mxu0 %v1439
      %1672 = vmatpush1.msra.mxu0 %v1438
      %1673 = vmatprep.subr.mxu0 %v1436
      %1674 = vmatpush1.msra.mxu0 %v1435
      %1675 = vmatprep.subr.mxu0 %v1433
      %1676 = vmatpush1.msra.mxu0 %v1432
      %1677 = vmatprep.subr.mxu0 %v1430
      %1678 = vmatpush1.msra.mxu0 %v1429
      %1679 = vmatprep.subr.mxu0 %v1427
      %1680 = vmatpush1.msra.mxu0 %v1426
      %1681 = vmatprep.subr.mxu0 %v1424
      %1682 = vmatpush1.msra.mxu0 %v1423
      %1683 = vmatprep.subr.mxu0 %v1421
      %1684 = vmatpush1.msra.mxu0 %v1420
      %1685 = vmatprep.subr.mxu0 0.0
      %1686 = vmatpush2.msra.mxu0 0.0
      %1687 = vmatprep.subr.mxu0 0.0
      %1688 = vmatpush2.msra.mxu0 0.0
      %1689 = vmatprep.subr.mxu0 0.0
      %1690 = vmatpush2.msra.mxu0 0.0
      %1691 = vmatprep.subr.mxu0 0.0
      %1692 = vmatpush2.msra.mxu0 0.0
      %1693 = vmatprep.subr.mxu0 0.0
      %1694 = vmatpush2.msra.mxu0 0.0
      %1695 = vmatprep.subr.mxu0 0.0
      %1696 = vmatpush2.msra.mxu0 0.0
      %1697 = vmatprep.subr.mxu0 0.0
      %1698 = vmatpush2.msra.mxu0 0.0
      %1699 = vmatprep.subr.mxu0 0.0
      %1700 = vmatpush2.msra.mxu0 0.0
      %1701 = vmatprep.subr.mxu0 0.0
      %1702 = vmatpush2.msra.mxu0 0.0
      %1703 = vmatprep.subr.mxu0 0.0
      %1704 = vmatpush2.msra.mxu0 0.0
      %1705 = vmatprep.subr.mxu0 0.0
      %1706 = vmatpush2.msra.mxu0 0.0
      %1707 = vmatprep.subr.mxu0 0.0
      %1708 = vmatpush2.msra.mxu0 0.0
      %1709 = vmatprep.subr.mxu0 0.0
      %1710 = vmatpush2.msra.mxu0 0.0
      %1711 = vmatprep.subr.mxu0 0.0
      %1712 = vmatpush2.msra.mxu0 0.0
      %1713 = vmatprep.subr.mxu0 0.0
      %1714 = vmatpush2.msra.mxu0 0.0
      %1715 = vmatprep.subr.mxu0 0.0
      %1716 = vmatpush2.msra.mxu0 0.0
      %1717 = vmatprep.mubr.f32.mxu0 0.0
      %1718 = vmatmul.mubr.f32.gmra.mxu0 %v1648
      %v1719 = vpop.f32.mrf.mxu0
      %v1720 = vadd.f32 %v1561, %v1719
      %v1721 = vpop.f32.mrf.mxu0
      %v1722 = vadd.f32 %v1563, %v1721
      %1723 = vmatprep.mubr.f32.mxu0 0.0
      %1724 = vmatmul.mubr.f32.gmra.mxu0 %v1651
      %v1725 = vpop.f32.mrf.mxu0
      %v1726 = vadd.f32 %v1567, %v1725
      %v1727 = vpop.f32.mrf.mxu0
      %v1728 = vadd.f32 %v1569, %v1727
      %1729 = vdwg.mxu0
      %1730 = vmatprep.subr.mxu0 0.0
      %1731 = vmatpush1.msra.mxu0 0.0
      %1732 = vmatprep.subr.mxu0 0.0
      %1733 = vmatpush1.msra.mxu0 0.0
      %1734 = vmatprep.subr.mxu0 0.0
      %1735 = vmatpush1.msra.mxu0 0.0
      %1736 = vmatprep.subr.mxu0 0.0
      %1737 = vmatpush1.msra.mxu0 0.0
      %1738 = vmatprep.subr.mxu0 0.0
      %1739 = vmatpush1.msra.mxu0 0.0
      %1740 = vmatprep.subr.mxu0 0.0
      %1741 = vmatpush1.msra.mxu0 0.0
      %1742 = vmatprep.subr.mxu0 0.0
      %1743 = vmatpush1.msra.mxu0 0.0
      %1744 = vmatprep.subr.mxu0 0.0
      %1745 = vmatpush1.msra.mxu0 0.0
      %1746 = vmatprep.subr.mxu0 0.0
      %1747 = vmatpush1.msra.mxu0 %v1443
      %1748 = vmatprep.subr.mxu0 0.0
      %1749 = vmatpush1.msra.mxu0 %v1440
      %1750 = vmatprep.subr.mxu0 0.0
      %1751 = vmatpush1.msra.mxu0 %v1437
      %1752 = vmatprep.subr.mxu0 0.0
      %1753 = vmatpush1.msra.mxu0 %v1434
      %1754 = vmatprep.subr.mxu0 0.0
      %1755 = vmatpush1.msra.mxu0 %v1431
      %1756 = vmatprep.subr.mxu0 0.0
      %1757 = vmatpush1.msra.mxu0 %v1428
      %1758 = vmatprep.subr.mxu0 0.0
      %1759 = vmatpush1.msra.mxu0 %v1425
      %1760 = vmatprep.subr.mxu0 0.0
      %1761 = vmatpush1.msra.mxu0 %v1422
      %1762 = vmatprep.subr.mxu0 0.0
      %1763 = vmatpush2.msra.mxu0 0.0
      %1764 = vmatprep.subr.mxu0 0.0
      %1765 = vmatpush2.msra.mxu0 0.0
      %1766 = vmatprep.subr.mxu0 0.0
      %1767 = vmatpush2.msra.mxu0 0.0
      %1768 = vmatprep.subr.mxu0 0.0
      %1769 = vmatpush2.msra.mxu0 0.0
      %1770 = vmatprep.subr.mxu0 0.0
      %1771 = vmatpush2.msra.mxu0 0.0
      %1772 = vmatprep.subr.mxu0 0.0
      %1773 = vmatpush2.msra.mxu0 0.0
      %1774 = vmatprep.subr.mxu0 0.0
      %1775 = vmatpush2.msra.mxu0 0.0
      %1776 = vmatprep.subr.mxu0 0.0
      %1777 = vmatpush2.msra.mxu0 0.0
      %1778 = vmatprep.subr.mxu0 0.0
      %1779 = vmatpush2.msra.mxu0 0.0
      %1780 = vmatprep.subr.mxu0 0.0
      %1781 = vmatpush2.msra.mxu0 0.0
      %1782 = vmatprep.subr.mxu0 0.0
      %1783 = vmatpush2.msra.mxu0 0.0
      %1784 = vmatprep.subr.mxu0 0.0
      %1785 = vmatpush2.msra.mxu0 0.0
      %1786 = vmatprep.subr.mxu0 0.0
      %1787 = vmatpush2.msra.mxu0 0.0
      %1788 = vmatprep.subr.mxu0 0.0
      %1789 = vmatpush2.msra.mxu0 0.0
      %1790 = vmatprep.subr.mxu0 0.0
      %1791 = vmatpush2.msra.mxu0 0.0
      %1792 = vmatprep.subr.mxu0 0.0
      %1793 = vmatpush2.msra.mxu0 0.0
      %1794 = vmatprep.mubr.f32.mxu0 0.0
      %1795 = vmatmul.mubr.f32.gmra.mxu0 %v1648
      %v1796 = vpop.f32.mrf.mxu0
      %v1797 = vadd.f32 %v1638, %v1796
      %v1798 = vpop.f32.mrf.mxu0
      %1799 = vmatprep.mubr.f32.mxu0 0.0
      %1800 = vmatmul.mubr.f32.gmra.mxu0 %v1651
      %v1801 = vpop.f32.mrf.mxu0
      %v1802 = vadd.f32 %v1643, %v1801
      %v1803 = vpop.f32.mrf.mxu0
      %1804 = vdwg.mxu0
      %v1805 = vld [vmem:[%s1176] sm:$0x7]
      %v1807 = vlaneseq
      %v1808 = vshrl.u32 %v1807, 7
      %v1809 = vsub.s32 0, %v1808
      %v1810 = vrot.slane %v1805, %v1809
      %v1811 = vlaneseq
      %v1812 = vshrl.u32 %v1811, 7
      %v1813 = vsub.s32 1, %v1812
      %v1814 = vrot.slane %v1805, %v1813
      %v1815 = vlaneseq
      %v1816 = vshrl.u32 %v1815, 7
      %v1817 = vsub.s32 2, %v1816
      %v1818 = vrot.slane %v1805, %v1817
      %v1822 = vadd.f32 %v1720, %v1810
      %v1823 = vadd.f32 %v1722, %v1814
      %v1824 = vadd.f32 %v1797, %v1818
      %v1825 = vadd.f32 %v1726, %v1810
      %v1826 = vadd.f32 %v1728, %v1814
      %v1827 = vadd.f32 %v1802, %v1818
      %v1828 = vxor.u32 %v1822, 2147483648
      %v1829 = vxor.u32 %v1823, 2147483648
      %v1830 = vxor.u32 %v1824, 2147483648
      %v1831 = vxor.u32 %v1825, 2147483648
      %v1832 = vxor.u32 %v1826, 2147483648
      %v1833 = vxor.u32 %v1827, 2147483648
      %v1834 = vmul.f32 %v1828, 1.442695
      %v1835 = vpow.pop %v1834
      %v1836 = vmul.f32 %v1829, 1.442695
      %v1837 = vpow.pop %v1836
      %v1838 = vmul.f32 %v1830, 1.442695
      %v1839 = vpow.pop %v1838
      %v1840 = vmul.f32 %v1831, 1.442695
      %v1841 = vpow.pop %v1840
      %v1842 = vmul.f32 %v1832, 1.442695
      %v1843 = vpow.pop %v1842
      %v1844 = vmul.f32 %v1833, 1.442695
      %v1845 = vpow.pop %v1844
      %v1846 = vadd.f32 %v1835, 1.0
      %v1847 = vadd.f32 %v1837, 1.0
      %v1848 = vadd.f32 %v1839, 1.0
      %v1849 = vadd.f32 %v1841, 1.0
      %v1850 = vadd.f32 %v1843, 1.0
      %v1851 = vadd.f32 %v1845, 1.0
      %v1852 = vrcp.pop %v1846
      %v1853 = vmul.f32 1.0, %v1852
      %v1854 = vrcp.pop %v1847
      %v1855 = vmul.f32 1.0, %v1854
      %v1856 = vrcp.pop %v1848
      %v1857 = vmul.f32 1.0, %v1856
      %v1858 = vrcp.pop %v1849
      %v1859 = vmul.f32 1.0, %v1858
      %v1860 = vrcp.pop %v1850
      %v1861 = vmul.f32 1.0, %v1860
      %v1862 = vrcp.pop %v1851
      %v1863 = vmul.f32 1.0, %v1862
      %v1864 = vmul.f32 %v1822, %v1853
      %v1865 = vmul.f32 %v1823, %v1855
      %v1866 = vmul.f32 %v1824, %v1857
      %v1867 = vmul.f32 %v1825, %v1859
      %v1868 = vmul.f32 %v1826, %v1861
      %v1869 = vmul.f32 %v1827, %v1863
      %v1870 = vld [vmem:[%s1181] sm:$0xff]
      %v1871 = vld [vmem:[%s1181 + $0x8] sm:$0xff]
      %v1872 = vld [vmem:[%s1181 + $0x10] sm:$0xff]
      %v1873 = vld [vmem:[%s1181 + $0x18] sm:$0xff]
      %v1874 = vld [vmem:[%s1181 + $0x20] sm:$0xff]
      %v1875 = vld [vmem:[%s1181 + $0x28] sm:$0xff]
      %v1876 = vld [vmem:[%s1181 + $0x30] sm:$0xff]
      %v1877 = vld [vmem:[%s1181 + $0x38] sm:$0xff]
      %v1878 = vld [vmem:[%s1181 + $0x40] sm:$0xff]
      %v1879 = vld [vmem:[%s1181 + $0x48] sm:$0xff]
      %v1880 = vld [vmem:[%s1181 + $0x50] sm:$0xff]
      %v1881 = vld [vmem:[%s1181 + $0x58] sm:$0xff]
      %v1882 = vld [vmem:[%s1181 + $0x60] sm:$0xff]
      %v1883 = vld [vmem:[%s1181 + $0x68] sm:$0xff]
      %v1884 = vld [vmem:[%s1181 + $0x70] sm:$0xff]
      %v1885 = vld [vmem:[%s1181 + $0x78] sm:$0xff]
      %v1886 = vld [vmem:[%s1181 + $0x80] sm:$0xff]
      %v1887 = vld [vmem:[%s1181 + $0x88] sm:$0xff]
      %v1888 = vld [vmem:[%s1181 + $0x90] sm:$0xff]
      %v1889 = vld [vmem:[%s1181 + $0x98] sm:$0xff]
      %v1890 = vld [vmem:[%s1181 + $0xa0] sm:$0xff]
      %v1891 = vld [vmem:[%s1181 + $0xa8] sm:$0xff]
      %v1892 = vld [vmem:[%s1181 + $0xb0] sm:$0xff]
      %v1893 = vld [vmem:[%s1181 + $0xb8] sm:$0xff]
      %v1894 = vld [vmem:[%s1181 + $0xc0] sm:$0xff]
      %v1895 = vld [vmem:[%s1181 + $0xc8] sm:$0xff]
      %v1896 = vld [vmem:[%s1181 + $0xd0] sm:$0xff]
      %v1897 = vld [vmem:[%s1181 + $0xd8] sm:$0xff]
      %v1898 = vld [vmem:[%s1181 + $0xe0] sm:$0xff]
      %v1899 = vld [vmem:[%s1181 + $0xe8] sm:$0xff]
      %v1900 = vld [vmem:[%s1181 + $0xf0] sm:$0xff]
      %v1901 = vld [vmem:[%s1181 + $0xf8] sm:$0xff]
      %v1902 = vld [vmem:[%s1181 + $0x100] sm:$0xff]
      %v1903 = vld [vmem:[%s1181 + $0x108] sm:$0xff]
      %v1904 = vld [vmem:[%s1181 + $0x110] sm:$0xff]
      %v1905 = vld [vmem:[%s1181 + $0x118] sm:$0xff]
      %v1906 = vld [vmem:[%s1181 + $0x120] sm:$0xff]
      %v1907 = vld [vmem:[%s1181 + $0x128] sm:$0xff]
      %v1908 = vld [vmem:[%s1181 + $0x130] sm:$0xff]
      %v1909 = vld [vmem:[%s1181 + $0x138] sm:$0xff]
      %v1910 = vld [vmem:[%s1181 + $0x140] sm:$0xff]
      %v1911 = vld [vmem:[%s1181 + $0x148] sm:$0xff]
      %v1912 = vld [vmem:[%s1181 + $0x150] sm:$0xff]
      %v1913 = vld [vmem:[%s1181 + $0x158] sm:$0xff]
      %v1914 = vld [vmem:[%s1181 + $0x160] sm:$0xff]
      %v1915 = vld [vmem:[%s1181 + $0x168] sm:$0xff]
      %v1916 = vld [vmem:[%s1181 + $0x170] sm:$0xff]
      %v1917 = vld [vmem:[%s1181 + $0x178] sm:$0xff]
      %v1918 = vld [vmem:[%s1184] sm:$0x1]
      %v1920 = vlaneseq
      %v1921 = vshrl.u32 %v1920, 7
      %v1922 = vsub.s32 0, %v1921
      %v1923 = vrot.slane %v1918, %v1922
      %1925 = vmatprep.subr.mxu0 0.0
      %1926 = vmatpush1.msra.mxu0 %v1885
      %1927 = vmatprep.subr.mxu0 0.0
      %1928 = vmatpush1.msra.mxu0 %v1884
      %1929 = vmatprep.subr.mxu0 0.0
      %1930 = vmatpush1.msra.mxu0 %v1883
      %1931 = vmatprep.subr.mxu0 0.0
      %1932 = vmatpush1.msra.mxu0 %v1882
      %1933 = vmatprep.subr.mxu0 0.0
      %1934 = vmatpush1.msra.mxu0 %v1881
      %1935 = vmatprep.subr.mxu0 0.0
      %1936 = vmatpush1.msra.mxu0 %v1880
      %1937 = vmatprep.subr.mxu0 0.0
      %1938 = vmatpush1.msra.mxu0 %v1879
      %1939 = vmatprep.subr.mxu0 0.0
      %1940 = vmatpush1.msra.mxu0 %v1878
      %1941 = vmatprep.subr.mxu0 0.0
      %1942 = vmatpush1.msra.mxu0 %v1877
      %1943 = vmatprep.subr.mxu0 0.0
      %1944 = vmatpush1.msra.mxu0 %v1876
      %1945 = vmatprep.subr.mxu0 0.0
      %1946 = vmatpush1.msra.mxu0 %v1875
      %1947 = vmatprep.subr.mxu0 0.0
      %1948 = vmatpush1.msra.mxu0 %v1874
      %1949 = vmatprep.subr.mxu0 0.0
      %1950 = vmatpush1.msra.mxu0 %v1873
      %1951 = vmatprep.subr.mxu0 0.0
      %1952 = vmatpush1.msra.mxu0 %v1872
      %1953 = vmatprep.subr.mxu0 0.0
      %1954 = vmatpush1.msra.mxu0 %v1871
      %1955 = vmatprep.subr.mxu0 0.0
      %1956 = vmatpush1.msra.mxu0 %v1870
      %1957 = vmatprep.subr.mxu0 0.0
      %1958 = vmatpush2.msra.mxu0 %v1901
      %1959 = vmatprep.subr.mxu0 0.0
      %1960 = vmatpush2.msra.mxu0 %v1900
      %1961 = vmatprep.subr.mxu0 0.0
      %1962 = vmatpush2.msra.mxu0 %v1899
      %1963 = vmatprep.subr.mxu0 0.0
      %1964 = vmatpush2.msra.mxu0 %v1898
      %1965 = vmatprep.subr.mxu0 0.0
      %1966 = vmatpush2.msra.mxu0 %v1897
      %1967 = vmatprep.subr.mxu0 0.0
      %1968 = vmatpush2.msra.mxu0 %v1896
      %1969 = vmatprep.subr.mxu0 0.0
      %1970 = vmatpush2.msra.mxu0 %v1895
      %1971 = vmatprep.subr.mxu0 0.0
      %1972 = vmatpush2.msra.mxu0 %v1894
      %1973 = vmatprep.subr.mxu0 0.0
      %1974 = vmatpush2.msra.mxu0 %v1893
      %1975 = vmatprep.subr.mxu0 0.0
      %1976 = vmatpush2.msra.mxu0 %v1892
      %1977 = vmatprep.subr.mxu0 0.0
      %1978 = vmatpush2.msra.mxu0 %v1891
      %1979 = vmatprep.subr.mxu0 0.0
      %1980 = vmatpush2.msra.mxu0 %v1890
      %1981 = vmatprep.subr.mxu0 0.0
      %1982 = vmatpush2.msra.mxu0 %v1889
      %1983 = vmatprep.subr.mxu0 0.0
      %1984 = vmatpush2.msra.mxu0 %v1888
      %1985 = vmatprep.subr.mxu0 0.0
      %1986 = vmatpush2.msra.mxu0 %v1887
      %1987 = vmatprep.subr.mxu0 0.0
      %1988 = vmatpush2.msra.mxu0 %v1886
      %1989 = vmatprep.mubr.f32.mxu0 %v1865
      %1990 = vmatmul.mubr.f32.gmra.mxu0 %v1864
      %v1991 = vpop.f32.mrf.mxu0
      %v1992 = vadd.f32 %v1923, %v1991
      %v1993 = vpop.f32.mrf.mxu0
      %1994 = vmatprep.mubr.f32.mxu0 %v1868
      %1995 = vmatmul.mubr.f32.gmra.mxu0 %v1867
      %v1996 = vpop.f32.mrf.mxu0
      %v1997 = vadd.f32 %v1923, %v1996
      %v1998 = vpop.f32.mrf.mxu0
      %1999 = vdwg.mxu0
      %2000 = vmatprep.subr.mxu0 0.0
      %2001 = vmatpush1.msra.mxu0 %v1917
      %2002 = vmatprep.subr.mxu0 0.0
      %2003 = vmatpush1.msra.mxu0 %v1916
      %2004 = vmatprep.subr.mxu0 0.0
      %2005 = vmatpush1.msra.mxu0 %v1915
      %2006 = vmatprep.subr.mxu0 0.0
      %2007 = vmatpush1.msra.mxu0 %v1914
      %2008 = vmatprep.subr.mxu0 0.0
      %2009 = vmatpush1.msra.mxu0 %v1913
      %2010 = vmatprep.subr.mxu0 0.0
      %2011 = vmatpush1.msra.mxu0 %v1912
      %2012 = vmatprep.subr.mxu0 0.0
      %2013 = vmatpush1.msra.mxu0 %v1911
      %2014 = vmatprep.subr.mxu0 0.0
      %2015 = vmatpush1.msra.mxu0 %v1910
      %2016 = vmatprep.subr.mxu0 0.0
      %2017 = vmatpush1.msra.mxu0 %v1909
      %2018 = vmatprep.subr.mxu0 0.0
      %2019 = vmatpush1.msra.mxu0 %v1908
      %2020 = vmatprep.subr.mxu0 0.0
      %2021 = vmatpush1.msra.mxu0 %v1907
      %2022 = vmatprep.subr.mxu0 0.0
      %2023 = vmatpush1.msra.mxu0 %v1906
      %2024 = vmatprep.subr.mxu0 0.0
      %2025 = vmatpush1.msra.mxu0 %v1905
      %2026 = vmatprep.subr.mxu0 0.0
      %2027 = vmatpush1.msra.mxu0 %v1904
      %2028 = vmatprep.subr.mxu0 0.0
      %2029 = vmatpush1.msra.mxu0 %v1903
      %2030 = vmatprep.subr.mxu0 0.0
      %2031 = vmatpush1.msra.mxu0 %v1902
      %2032 = vmatprep.subr.mxu0 0.0
      %2033 = vmatpush2.msra.mxu0 0.0
      %2034 = vmatprep.subr.mxu0 0.0
      %2035 = vmatpush2.msra.mxu0 0.0
      %2036 = vmatprep.subr.mxu0 0.0
      %2037 = vmatpush2.msra.mxu0 0.0
      %2038 = vmatprep.subr.mxu0 0.0
      %2039 = vmatpush2.msra.mxu0 0.0
      %2040 = vmatprep.subr.mxu0 0.0
      %2041 = vmatpush2.msra.mxu0 0.0
      %2042 = vmatprep.subr.mxu0 0.0
      %2043 = vmatpush2.msra.mxu0 0.0
      %2044 = vmatprep.subr.mxu0 0.0
      %2045 = vmatpush2.msra.mxu0 0.0
      %2046 = vmatprep.subr.mxu0 0.0
      %2047 = vmatpush2.msra.mxu0 0.0
      %2048 = vmatprep.subr.mxu0 0.0
      %2049 = vmatpush2.msra.mxu0 0.0
      %2050 = vmatprep.subr.mxu0 0.0
      %2051 = vmatpush2.msra.mxu0 0.0
      %2052 = vmatprep.subr.mxu0 0.0
      %2053 = vmatpush2.msra.mxu0 0.0
      %2054 = vmatprep.subr.mxu0 0.0
      %2055 = vmatpush2.msra.mxu0 0.0
      %2056 = vmatprep.subr.mxu0 0.0
      %2057 = vmatpush2.msra.mxu0 0.0
      %2058 = vmatprep.subr.mxu0 0.0
      %2059 = vmatpush2.msra.mxu0 0.0
      %2060 = vmatprep.subr.mxu0 0.0
      %2061 = vmatpush2.msra.mxu0 0.0
      %2062 = vmatprep.subr.mxu0 0.0
      %2063 = vmatpush2.msra.mxu0 0.0
      %2064 = vmatprep.mubr.f32.mxu0 0.0
      %2065 = vmatmul.mubr.f32.gmra.mxu0 %v1866
      %v2066 = vpop.f32.mrf.mxu0
      %v2067 = vadd.f32 %v1992, %v2066
      %v2068 = vpop.f32.mrf.mxu0
      %2069 = vmatprep.mubr.f32.mxu0 0.0
      %2070 = vmatmul.mubr.f32.gmra.mxu0 %v1869
      %v2071 = vpop.f32.mrf.mxu0
      %v2072 = vadd.f32 %v1997, %v2071
      %v2073 = vpop.f32.mrf.mxu0
      %2074 = vdwg.mxu0
      %v2075 = vxor.u32 %v2067, 2147483648
      %v2076 = vxor.u32 %v2072, 2147483648
      %v2077 = vmul.f32 %v2075, 1.442695
      %v2078 = vpow.pop %v2077
      %v2079 = vmul.f32 %v2076, 1.442695
      %v2080 = vpow.pop %v2079
      %v2081 = vadd.f32 %v2078, 1.0
      %v2082 = vadd.f32 %v2080, 1.0
      %v2083 = vrcp.pop %v2081
      %v2084 = vmul.f32 1.0, %v2083
      %v2085 = vrcp.pop %v2082
      %v2086 = vmul.f32 1.0, %v2085
      %v2087 = vmul.f32 %v2067, %v2084
      %v2088 = vmul.f32 %v2072, %v2086
      %v2089 = vld [vmem:[%s1187] sm:$0x1]
      %v2090 = vld [vmem:[%s1190] sm:$0x1]
      %v2091 = vsel %vm1417, %v2087, 0.0
      %2092 = vadd.xlane.f32.xlu0 %v2091
      %v2093 = vpop.xlane.xlu0 %2092
      %v2094 = vsel %vm1417, %v2088, 0.0
      %2095 = vadd.xlane.f32.xlu0 %v2094
      %v2096 = vpop.xlane.xlu0 %2095
      %v2097 = vrcp.pop 32.0
      %v2098 = vmul.f32 %v2093, %v2097
      %v2099 = vmul.f32 %v2096, %v2097
      %v2100 = vsub.f32 %v2087, %v2098
      %v2101 = vsub.f32 %v2088, %v2099
      %v2102 = vmul.f32 %v2100, %v2100
      %v2103 = vmul.f32 %v2101, %v2101
      %v2104 = vsel %vm1417, %v2102, 0.0
      %2105 = vadd.xlane.f32.xlu0 %v2104
      %v2106 = vpop.xlane.xlu0 %2105
      %v2107 = vsel %vm1417, %v2103, 0.0
      %2108 = vadd.xlane.f32.xlu0 %v2107
      %v2109 = vpop.xlane.xlu0 %2108
      %v2110 = vmul.f32 %v2106, %v2097
      %v2111 = vmul.f32 %v2109, %v2097
      %v2112 = vadd.f32 %v2110, 1e-05
      %v2113 = vadd.f32 %v2111, 1e-05
      %v2114 = vrsqrt.pop %v2112
      %v2115 = vrsqrt.pop %v2113
      %v2116 = vmul.f32 %v2100, %v2114
      %v2117 = vmul.f32 %v2101, %v2115
      %v2119 = vlaneseq
      %v2120 = vshrl.u32 %v2119, 7
      %v2121 = vsub.s32 0, %v2120
      %v2122 = vrot.slane %v2089, %v2121
      %v2124 = vmul.f32 %v2116, %v2122
      %v2125 = vmul.f32 %v2117, %v2122
      %v2127 = vlaneseq
      %v2128 = vshrl.u32 %v2127, 7
      %v2129 = vsub.s32 0, %v2128
      %v2130 = vrot.slane %v2090, %v2129
      %v2132 = vadd.f32 %v2124, %v2130
      %v2133 = vadd.f32 %v2125, %v2130
      %v2134 = vld [vmem:[#allocation3] sm:$0xff]
      %v2135 = vld [vmem:[#allocation3 + $0x8] sm:$0xff]
      %2136 = vxpose.xlu0.b32.start [1/16] %v1242, 128
      %2137 = vxpose.xlu0.b32.cont [2/16] %v1243, 128
      %2138 = vxpose.xlu0.b32.cont [3/16] 0.0, 128
      %2139 = vxpose.xlu0.b32.cont [4/16] 0.0, 128
      %2140 = vxpose.xlu0.b32.cont [5/16] 0.0, 128
      %2141 = vxpose.xlu0.b32.cont [6/16] 0.0, 128
      %2142 = vxpose.xlu0.b32.cont [7/16] 0.0, 128
      %2143 = vxpose.xlu0.b32.cont [8/16] 0.0, 128
      %2144 = vxpose.xlu0.b32.cont [9/16] 0.0, 128
      %2145 = vxpose.xlu0.b32.cont [10/16] 0.0, 128
      %2146 = vxpose.xlu0.b32.cont [11/16] 0.0, 128
      %2147 = vxpose.xlu0.b32.cont [12/16] 0.0, 128
      %2148 = vxpose.xlu0.b32.cont [13/16] 0.0, 128
      %2149 = vxpose.xlu0.b32.cont [14/16] 0.0, 128
      %2150 = vxpose.xlu0.b32.cont [15/16] 0.0, 128
      %2151 = vxpose.xlu0.b32.end [16/16] 0.0, 128
      %v2152 = vpop.trf.xlu0
      %v2153 = vpop.trf.xlu0
      %v2154 = vpop.trf.xlu0
      %v2155 = vpop.trf.xlu0
      %v2156 = vpop.trf.xlu0
      %v2157 = vpop.trf.xlu0
      %v2158 = vpop.trf.xlu0
      %v2159 = vpop.trf.xlu0
      %v2160 = vpop.trf.xlu0
      %v2161 = vpop.trf.xlu0
      %v2162 = vpop.trf.xlu0
      %v2163 = vpop.trf.xlu0
      %v2164 = vpop.trf.xlu0
      %v2165 = vpop.trf.xlu0
      %v2166 = vpop.trf.xlu0
      %v2167 = vpop.trf.xlu0
      %v2169 = vsel %vm1244, %v2152, 0
      %v2172 = vsel %vm1244, %v2153, 0
      %2174 = vmatprep.subr.mxu0 0.0
      %2175 = vmatpush1.msra.mxu0 0.0
      %2176 = vmatprep.subr.mxu0 0.0
      %2177 = vmatpush1.msra.mxu0 0.0
      %2178 = vmatprep.subr.mxu0 0.0
      %2179 = vmatpush1.msra.mxu0 0.0
      %2180 = vmatprep.subr.mxu0 0.0
      %2181 = vmatpush1.msra.mxu0 0.0
      %2182 = vmatprep.subr.mxu0 0.0
      %2183 = vmatpush1.msra.mxu0 0.0
      %2184 = vmatprep.subr.mxu0 0.0
      %2185 = vmatpush1.msra.mxu0 0.0
      %2186 = vmatprep.subr.mxu0 0.0
      %2187 = vmatpush1.msra.mxu0 0.0
      %2188 = vmatprep.subr.mxu0 0.0
      %2189 = vmatpush1.msra.mxu0 0.0
      %2190 = vmatprep.subr.mxu0 0.0
      %2191 = vmatpush1.msra.mxu0 0.0
      %2192 = vmatprep.subr.mxu0 0.0
      %2193 = vmatpush1.msra.mxu0 0.0
      %2194 = vmatprep.subr.mxu0 0.0
      %2195 = vmatpush1.msra.mxu0 0.0
      %2196 = vmatprep.subr.mxu0 0.0
      %2197 = vmatpush1.msra.mxu0 0.0
      %2198 = vmatprep.subr.mxu0 0.0
      %2199 = vmatpush1.msra.mxu0 0.0
      %2200 = vmatprep.subr.mxu0 0.0
      %2201 = vmatpush1.msra.mxu0 0.0
      %2202 = vmatprep.subr.mxu0 0.0
      %2203 = vmatpush1.msra.mxu0 %v2133
      %2204 = vmatprep.subr.mxu0 0.0
      %2205 = vmatpush1.msra.mxu0 %v2132
      %2206 = vmatprep.subr.mxu0 0.0
      %2207 = vmatpush2.msra.mxu0 0.0
      %2208 = vmatprep.subr.mxu0 0.0
      %2209 = vmatpush2.msra.mxu0 0.0
      %2210 = vmatprep.subr.mxu0 0.0
      %2211 = vmatpush2.msra.mxu0 0.0
      %2212 = vmatprep.subr.mxu0 0.0
      %2213 = vmatpush2.msra.mxu0 0.0
      %2214 = vmatprep.subr.mxu0 0.0
      %2215 = vmatpush2.msra.mxu0 0.0
      %2216 = vmatprep.subr.mxu0 0.0
      %2217 = vmatpush2.msra.mxu0 0.0
      %2218 = vmatprep.subr.mxu0 0.0
      %2219 = vmatpush2.msra.mxu0 0.0
      %2220 = vmatprep.subr.mxu0 0.0
      %2221 = vmatpush2.msra.mxu0 0.0
      %2222 = vmatprep.subr.mxu0 0.0
      %2223 = vmatpush2.msra.mxu0 0.0
      %2224 = vmatprep.subr.mxu0 0.0
      %2225 = vmatpush2.msra.mxu0 0.0
      %2226 = vmatprep.subr.mxu0 0.0
      %2227 = vmatpush2.msra.mxu0 0.0
      %2228 = vmatprep.subr.mxu0 0.0
      %2229 = vmatpush2.msra.mxu0 0.0
      %2230 = vmatprep.subr.mxu0 0.0
      %2231 = vmatpush2.msra.mxu0 0.0
      %2232 = vmatprep.subr.mxu0 0.0
      %2233 = vmatpush2.msra.mxu0 0.0
      %2234 = vmatprep.subr.mxu0 0.0
      %2235 = vmatpush2.msra.mxu0 0.0
      %2236 = vmatprep.subr.mxu0 0.0
      %2237 = vmatpush2.msra.mxu0 0.0
      %2238 = vmatprep.mubr.f32.mxu0 0.0
      %2239 = vmatmul.mubr.f32.gmra.mxu0 %v2169
      %v2240 = vpop.f32.mrf.mxu0
      %v2241 = vadd.f32 0.0, %v2240
      %v2242 = vpop.f32.mrf.mxu0
      %2243 = vmatprep.mubr.f32.mxu0 0.0
      %2244 = vmatmul.mubr.f32.gmra.mxu0 %v2172
      %v2245 = vpop.f32.mrf.mxu0
      %v2246 = vadd.f32 0.0, %v2245
      %v2247 = vpop.f32.mrf.mxu0
      %2248 = vdwg.mxu0
      %v2249 = vadd.f32 %v2134, %v2241
      %v2250 = vadd.f32 %v2135, %v2246
      %2251 = vst.msk [vmem:[#allocation3] sm:$0xff] %vm1417, %v2249
      %2252 = vst.msk [vmem:[#allocation3 + $0x8] sm:$0xff] %vm1417, %v2250
      %p2253 = scmp.eq.s32.totalorder %s79, 1
      // Predicated region
      $region149: #{egnn_ncp_forward.1} parent=139 // pred_check
        %p2254 = pneg %p2253
      $region150: #{egnn_ncp_forward.1} parent=139 // pred_check_branch
        %2256 = sbr.rel (%p2254) target = $region152
      $region151: #{egnn_ncp_forward.1} parent=139 // pred_region
        %v2257 = vld [vmem:[#allocation3] sm:$0xff]
        %v2258 = vld [vmem:[#allocation3 + $0x8] sm:$0xff]
        %v2259 = vld [vmem:[%s9] sm:$0xff]
        %v2260 = vld [vmem:[%s9 + $0x8] sm:$0xff]
        %2262 = vset.pattern.permute.xlu0 0
        %2263 = vperm.xlu0 %2262, %v2259
        %v2264 = vpop.permute.xlu0 %2263
        %2267 = vset.pattern.permute.xlu0 0
        %2268 = vperm.xlu0 %2267, %v2260
        %v2269 = vpop.permute.xlu0 %2268
        %v2271 = vmul.f32 %v2257, %v2264
        %v2272 = vmul.f32 %v2258, %v2269
        %v2273 = vld [vmem:[%s1187] sm:$0x1]
        %v2274 = vld [vmem:[%s1190] sm:$0x1]
        %v2275 = vsel %vm1417, %v2271, 0.0
        %2276 = vadd.xlane.f32.xlu0 %v2275
        %v2277 = vpop.xlane.xlu0 %2276
        %v2278 = vsel %vm1417, %v2272, 0.0
        %2279 = vadd.xlane.f32.xlu0 %v2278
        %v2280 = vpop.xlane.xlu0 %2279
        %v2281 = vmul.f32 %v2277, %v2097
        %v2282 = vmul.f32 %v2280, %v2097
        %v2283 = vsub.f32 %v2271, %v2281
        %v2284 = vsub.f32 %v2272, %v2282
        %v2285 = vmul.f32 %v2283, %v2283
        %v2286 = vmul.f32 %v2284, %v2284
        %v2287 = vsel %vm1417, %v2285, 0.0
        %2288 = vadd.xlane.f32.xlu0 %v2287
        %v2289 = vpop.xlane.xlu0 %2288
        %v2290 = vsel %vm1417, %v2286, 0.0
        %2291 = vadd.xlane.f32.xlu0 %v2290
        %v2292 = vpop.xlane.xlu0 %2291
        %v2293 = vmul.f32 %v2289, %v2097
        %v2294 = vmul.f32 %v2292, %v2097
        %v2295 = vadd.f32 %v2293, 1e-05
        %v2296 = vadd.f32 %v2294, 1e-05
        %v2297 = vrsqrt.pop %v2295
        %v2298 = vrsqrt.pop %v2296
        %v2299 = vmul.f32 %v2283, %v2297
        %v2300 = vmul.f32 %v2284, %v2298
        %v2302 = vlaneseq
        %v2303 = vshrl.u32 %v2302, 7
        %v2304 = vsub.s32 0, %v2303
        %v2305 = vrot.slane %v2273, %v2304
        %v2307 = vmul.f32 %v2299, %v2305
        %v2308 = vmul.f32 %v2300, %v2305
        %v2310 = vlaneseq
        %v2311 = vshrl.u32 %v2310, 7
        %v2312 = vsub.s32 0, %v2311
        %v2313 = vrot.slane %v2274, %v2312
        %v2315 = vadd.f32 %v2307, %v2313
        %v2316 = vadd.f32 %v2308, %v2313
        %v2317 = vld [vmem:[%s1193] sm:$0x1]
        %v2318 = vld [vmem:[%s1196] sm:$0x1]
        %v2319 = vsel %vm1417, %v1240, 0.0
        %2320 = vadd.xlane.f32.xlu0 %v2319
        %v2321 = vpop.xlane.xlu0 %2320
        %v2322 = vsel %vm1417, %v1241, 0.0
        %2323 = vadd.xlane.f32.xlu0 %v2322
        %v2324 = vpop.xlane.xlu0 %2323
        %v2325 = vmul.f32 %v2321, %v2097
        %v2326 = vmul.f32 %v2324, %v2097
        %v2327 = vsub.f32 %v1240, %v2325
        %v2328 = vsub.f32 %v1241, %v2326
        %v2329 = vmul.f32 %v2327, %v2327
        %v2330 = vmul.f32 %v2328, %v2328
        %v2331 = vsel %vm1417, %v2329, 0.0
        %2332 = vadd.xlane.f32.xlu0 %v2331
        %v2333 = vpop.xlane.xlu0 %2332
        %v2334 = vsel %vm1417, %v2330, 0.0
        %2335 = vadd.xlane.f32.xlu0 %v2334
        %v2336 = vpop.xlane.xlu0 %2335
        %v2337 = vmul.f32 %v2333, %v2097
        %v2338 = vmul.f32 %v2336, %v2097
        %v2339 = vadd.f32 %v2337, 1e-05
        %v2340 = vadd.f32 %v2338, 1e-05
        %v2341 = vrsqrt.pop %v2339
        %v2342 = vrsqrt.pop %v2340
        %v2343 = vmul.f32 %v2327, %v2341
        %v2344 = vmul.f32 %v2328, %v2342
        %v2346 = vlaneseq
        %v2347 = vshrl.u32 %v2346, 7
        %v2348 = vsub.s32 0, %v2347
        %v2349 = vrot.slane %v2317, %v2348
        %v2351 = vmul.f32 %v2343, %v2349
        %v2352 = vmul.f32 %v2344, %v2349
        %v2354 = vlaneseq
        %v2355 = vshrl.u32 %v2354, 7
        %v2356 = vsub.s32 0, %v2355
        %v2357 = vrot.slane %v2318, %v2356
        %v2359 = vadd.f32 %v2351, %v2357
        %v2360 = vadd.f32 %v2352, %v2357
        %2363 = vrot.lane.b32.xlu0 %v2315, 32
        %v2364 = vpop.permute.xlu0 %2363
        %2365 = vrot.lane.b32.xlu0 %v2316, 32
        %v2366 = vpop.permute.xlu0 %2365
        %v2369 = vsel %vm1417, %v2359, %v2364
        %v2370 = vsel %vm1417, %v2360, %v2366
        %v2371 = vld [vmem:[%s1207] sm:$0xff]
        %v2372 = vld [vmem:[%s1207 + $0x8] sm:$0xff]
        %v2373 = vld [vmem:[%s1207 + $0x10] sm:$0xff]
        %v2374 = vld [vmem:[%s1207 + $0x18] sm:$0xff]
        %v2375 = vld [vmem:[%s1207 + $0x20] sm:$0xff]
        %v2376 = vld [vmem:[%s1207 + $0x28] sm:$0xff]
        %v2377 = vld [vmem:[%s1207 + $0x30] sm:$0xff]
        %v2378 = vld [vmem:[%s1207 + $0x38] sm:$0xff]
        %v2379 = vld [vmem:[%s1210] sm:$0x1]
        %v2381 = vlaneseq
        %v2382 = vshrl.u32 %v2381, 7
        %v2383 = vsub.s32 0, %v2382
        %v2384 = vrot.slane %v2379, %v2383
        %v2387 = vsel %vm1646, %v2369, 0
        %v2390 = vsel %vm1646, %v2370, 0
        %2392 = vmatprep.subr.mxu0 0.0
        %2393 = vmatpush1.msra.mxu0 0.0
        %2394 = vmatprep.subr.mxu0 0.0
        %2395 = vmatpush1.msra.mxu0 0.0
        %2396 = vmatprep.subr.mxu0 0.0
        %2397 = vmatpush1.msra.mxu0 0.0
        %2398 = vmatprep.subr.mxu0 0.0
        %2399 = vmatpush1.msra.mxu0 0.0
        %2400 = vmatprep.subr.mxu0 0.0
        %2401 = vmatpush1.msra.mxu0 0.0
        %2402 = vmatprep.subr.mxu0 0.0
        %2403 = vmatpush1.msra.mxu0 0.0
        %2404 = vmatprep.subr.mxu0 0.0
        %2405 = vmatpush1.msra.mxu0 0.0
        %2406 = vmatprep.subr.mxu0 0.0
        %2407 = vmatpush1.msra.mxu0 0.0
        %2408 = vmatprep.subr.mxu0 0.0
        %2409 = vmatpush1.msra.mxu0 %v2378
        %2410 = vmatprep.subr.mxu0 0.0
        %2411 = vmatpush1.msra.mxu0 %v2377
        %2412 = vmatprep.subr.mxu0 0.0
        %2413 = vmatpush1.msra.mxu0 %v2376
        %2414 = vmatprep.subr.mxu0 0.0
        %2415 = vmatpush1.msra.mxu0 %v2375
        %2416 = vmatprep.subr.mxu0 0.0
        %2417 = vmatpush1.msra.mxu0 %v2374
        %2418 = vmatprep.subr.mxu0 0.0
        %2419 = vmatpush1.msra.mxu0 %v2373
        %2420 = vmatprep.subr.mxu0 0.0
        %2421 = vmatpush1.msra.mxu0 %v2372
        %2422 = vmatprep.subr.mxu0 0.0
        %2423 = vmatpush1.msra.mxu0 %v2371
        %2424 = vmatprep.subr.mxu0 0.0
        %2425 = vmatpush2.msra.mxu0 0.0
        %2426 = vmatprep.subr.mxu0 0.0
        %2427 = vmatpush2.msra.mxu0 0.0
        %2428 = vmatprep.subr.mxu0 0.0
        %2429 = vmatpush2.msra.mxu0 0.0
        %2430 = vmatprep.subr.mxu0 0.0
        %2431 = vmatpush2.msra.mxu0 0.0
        %2432 = vmatprep.subr.mxu0 0.0
        %2433 = vmatpush2.msra.mxu0 0.0
        %2434 = vmatprep.subr.mxu0 0.0
        %2435 = vmatpush2.msra.mxu0 0.0
        %2436 = vmatprep.subr.mxu0 0.0
        %2437 = vmatpush2.msra.mxu0 0.0
        %2438 = vmatprep.subr.mxu0 0.0
        %2439 = vmatpush2.msra.mxu0 0.0
        %2440 = vmatprep.subr.mxu0 0.0
        %2441 = vmatpush2.msra.mxu0 0.0
        %2442 = vmatprep.subr.mxu0 0.0
        %2443 = vmatpush2.msra.mxu0 0.0
        %2444 = vmatprep.subr.mxu0 0.0
        %2445 = vmatpush2.msra.mxu0 0.0
        %2446 = vmatprep.subr.mxu0 0.0
        %2447 = vmatpush2.msra.mxu0 0.0
        %2448 = vmatprep.subr.mxu0 0.0
        %2449 = vmatpush2.msra.mxu0 0.0
        %2450 = vmatprep.subr.mxu0 0.0
        %2451 = vmatpush2.msra.mxu0 0.0
        %2452 = vmatprep.subr.mxu0 0.0
        %2453 = vmatpush2.msra.mxu0 0.0
        %2454 = vmatprep.subr.mxu0 0.0
        %2455 = vmatpush2.msra.mxu0 0.0
        %2456 = vmatprep.mubr.f32.mxu0 0.0
        %2457 = vmatmul.mubr.f32.gmra.mxu0 %v2387
        %v2458 = vpop.f32.mrf.mxu0
        %v2459 = vadd.f32 %v2384, %v2458
        %v2460 = vpop.f32.mrf.mxu0
        %2461 = vmatprep.mubr.f32.mxu0 0.0
        %2462 = vmatmul.mubr.f32.gmra.mxu0 %v2390
        %v2463 = vpop.f32.mrf.mxu0
        %v2464 = vadd.f32 %v2384, %v2463
        %v2465 = vpop.f32.mrf.mxu0
        %2466 = vdwg.mxu0
        %v2467 = vxor.u32 %v2459, 2147483648
        %v2468 = vxor.u32 %v2464, 2147483648
        %v2469 = vmul.f32 %v2467, 1.442695
        %v2470 = vpow.pop %v2469
        %v2471 = vmul.f32 %v2468, 1.442695
        %v2472 = vpow.pop %v2471
        %v2473 = vadd.f32 %v2470, 1.0
        %v2474 = vadd.f32 %v2472, 1.0
        %v2475 = vrcp.pop %v2473
        %v2476 = vmul.f32 1.0, %v2475
        %v2477 = vrcp.pop %v2474
        %v2478 = vmul.f32 1.0, %v2477
        %v2479 = vmul.f32 %v2459, %v2476
        %v2480 = vmul.f32 %v2464, %v2478
        %v2481 = vld [vmem:[%s1215] sm:$0xff]
        %v2482 = vld [vmem:[%s1215 + $0x8] sm:$0xff]
        %v2483 = vld [vmem:[%s1215 + $0x10] sm:$0xff]
        %v2484 = vld [vmem:[%s1215 + $0x18] sm:$0xff]
        %v2485 = vld [vmem:[%s1215 + $0x20] sm:$0xff]
        %v2486 = vld [vmem:[%s1215 + $0x28] sm:$0xff]
        %v2487 = vld [vmem:[%s1215 + $0x30] sm:$0xff]
        %v2488 = vld [vmem:[%s1215 + $0x38] sm:$0xff]
        %v2489 = vld [vmem:[%s1218] sm:$0x1]
        %v2491 = vlaneseq
        %v2492 = vshrl.u32 %v2491, 7
        %v2493 = vsub.s32 0, %v2492
        %v2494 = vrot.slane %v2489, %v2493
        %v2497 = vsel %vm1646, %v2479, 0
        %v2500 = vsel %vm1646, %v2480, 0
        %2502 = vmatprep.subr.mxu0 0.0
        %2503 = vmatpush1.msra.mxu0 0.0
        %2504 = vmatprep.subr.mxu0 0.0
        %2505 = vmatpush1.msra.mxu0 0.0
        %2506 = vmatprep.subr.mxu0 0.0
        %2507 = vmatpush1.msra.mxu0 0.0
        %2508 = vmatprep.subr.mxu0 0.0
        %2509 = vmatpush1.msra.mxu0 0.0
        %2510 = vmatprep.subr.mxu0 0.0
        %2511 = vmatpush1.msra.mxu0 0.0
        %2512 = vmatprep.subr.mxu0 0.0
        %2513 = vmatpush1.msra.mxu0 0.0
        %2514 = vmatprep.subr.mxu0 0.0
        %2515 = vmatpush1.msra.mxu0 0.0
        %2516 = vmatprep.subr.mxu0 0.0
        %2517 = vmatpush1.msra.mxu0 0.0
        %2518 = vmatprep.subr.mxu0 0.0
        %2519 = vmatpush1.msra.mxu0 %v2488
        %2520 = vmatprep.subr.mxu0 0.0
        %2521 = vmatpush1.msra.mxu0 %v2487
        %2522 = vmatprep.subr.mxu0 0.0
        %2523 = vmatpush1.msra.mxu0 %v2486
        %2524 = vmatprep.subr.mxu0 0.0
        %2525 = vmatpush1.msra.mxu0 %v2485
        %2526 = vmatprep.subr.mxu0 0.0
        %2527 = vmatpush1.msra.mxu0 %v2484
        %2528 = vmatprep.subr.mxu0 0.0
        %2529 = vmatpush1.msra.mxu0 %v2483
        %2530 = vmatprep.subr.mxu0 0.0
        %2531 = vmatpush1.msra.mxu0 %v2482
        %2532 = vmatprep.subr.mxu0 0.0
        %2533 = vmatpush1.msra.mxu0 %v2481
        %2534 = vmatprep.subr.mxu0 0.0
        %2535 = vmatpush2.msra.mxu0 0.0
        %2536 = vmatprep.subr.mxu0 0.0
        %2537 = vmatpush2.msra.mxu0 0.0
        %2538 = vmatprep.subr.mxu0 0.0
        %2539 = vmatpush2.msra.mxu0 0.0
        %2540 = vmatprep.subr.mxu0 0.0
        %2541 = vmatpush2.msra.mxu0 0.0
        %2542 = vmatprep.subr.mxu0 0.0
        %2543 = vmatpush2.msra.mxu0 0.0
        %2544 = vmatprep.subr.mxu0 0.0
        %2545 = vmatpush2.msra.mxu0 0.0
        %2546 = vmatprep.subr.mxu0 0.0
        %2547 = vmatpush2.msra.mxu0 0.0
        %2548 = vmatprep.subr.mxu0 0.0
        %2549 = vmatpush2.msra.mxu0 0.0
        %2550 = vmatprep.subr.mxu0 0.0
        %2551 = vmatpush2.msra.mxu0 0.0
        %2552 = vmatprep.subr.mxu0 0.0
        %2553 = vmatpush2.msra.mxu0 0.0
        %2554 = vmatprep.subr.mxu0 0.0
        %2555 = vmatpush2.msra.mxu0 0.0
        %2556 = vmatprep.subr.mxu0 0.0
        %2557 = vmatpush2.msra.mxu0 0.0
        %2558 = vmatprep.subr.mxu0 0.0
        %2559 = vmatpush2.msra.mxu0 0.0
        %2560 = vmatprep.subr.mxu0 0.0
        %2561 = vmatpush2.msra.mxu0 0.0
        %2562 = vmatprep.subr.mxu0 0.0
        %2563 = vmatpush2.msra.mxu0 0.0
        %2564 = vmatprep.subr.mxu0 0.0
        %2565 = vmatpush2.msra.mxu0 0.0
        %2566 = vmatprep.mubr.f32.mxu0 0.0
        %2567 = vmatmul.mubr.f32.gmra.mxu0 %v2497
        %v2568 = vpop.f32.mrf.mxu0
        %v2569 = vadd.f32 %v2494, %v2568
        %v2570 = vpop.f32.mrf.mxu0
        %2571 = vmatprep.mubr.f32.mxu0 0.0
        %2572 = vmatmul.mubr.f32.gmra.mxu0 %v2500
        %v2573 = vpop.f32.mrf.mxu0
        %v2574 = vadd.f32 %v2494, %v2573
        %v2575 = vpop.f32.mrf.mxu0
        %2576 = vdwg.mxu0
        %v2577 = vld [vmem:[%s1199] sm:$0x1]
        %v2578 = vld [vmem:[%s1202] sm:$0x1]
        %v2579 = vsel %vm1417, %v2569, 0.0
        %2580 = vadd.xlane.f32.xlu0 %v2579
        %v2581 = vpop.xlane.xlu0 %2580
        %v2582 = vsel %vm1417, %v2574, 0.0
        %2583 = vadd.xlane.f32.xlu0 %v2582
        %v2584 = vpop.xlane.xlu0 %2583
        %v2585 = vmul.f32 %v2581, %v2097
        %v2586 = vmul.f32 %v2584, %v2097
        %v2587 = vsub.f32 %v2569, %v2585
        %v2588 = vsub.f32 %v2574, %v2586
        %v2589 = vmul.f32 %v2587, %v2587
        %v2590 = vmul.f32 %v2588, %v2588
        %v2591 = vsel %vm1417, %v2589, 0.0
        %2592 = vadd.xlane.f32.xlu0 %v2591
        %v2593 = vpop.xlane.xlu0 %2592
        %v2594 = vsel %vm1417, %v2590, 0.0
        %2595 = vadd.xlane.f32.xlu0 %v2594
        %v2596 = vpop.xlane.xlu0 %2595
        %v2597 = vmul.f32 %v2593, %v2097
        %v2598 = vmul.f32 %v2596, %v2097
        %v2599 = vadd.f32 %v2597, 1e-05
        %v2600 = vadd.f32 %v2598, 1e-05
        %v2601 = vrsqrt.pop %v2599
        %v2602 = vrsqrt.pop %v2600
        %v2603 = vmul.f32 %v2587, %v2601
        %v2604 = vmul.f32 %v2588, %v2602
        %v2606 = vlaneseq
        %v2607 = vshrl.u32 %v2606, 7
        %v2608 = vsub.s32 0, %v2607
        %v2609 = vrot.slane %v2577, %v2608
        %v2611 = vmul.f32 %v2603, %v2609
        %v2612 = vmul.f32 %v2604, %v2609
        %v2614 = vlaneseq
        %v2615 = vshrl.u32 %v2614, 7
        %v2616 = vsub.s32 0, %v2615
        %v2617 = vrot.slane %v2578, %v2616
        %v2619 = vadd.f32 %v2611, %v2617
        %v2620 = vadd.f32 %v2612, %v2617
        %v2621 = vadd.f32 %v1240, %v2619
        %v2622 = vadd.f32 %v1241, %v2620
        %2623 = vst.msk [vmem:[#allocation2] sm:$0xff] %vm1417, %v2621
        %2624 = vst.msk [vmem:[#allocation2 + $0x8] sm:$0xff] %vm1417, %v2622
        %s2625 = sadd.s32 %s78, 1
        %s2626 = smul.u32 %s2625, 16
        %s2627 = scalar_lea.vmem [#allocation4], %s2626
        %2628 = vst.msk [vmem:[%s2627] sm:$0xff] %vm1417, %v2621
        %2629 = vst.msk [vmem:[%s2627 + $0x8] sm:$0xff] %vm1417, %v2622
        %p2630 = scmp.eq.s32.totalorder %s78, 4
        // Predicated region
        $region153: #{egnn_ncp_forward.1} parent=151 // pred_check
          %p2631 = pneg %p2630
        $region154: #{egnn_ncp_forward.1} parent=151 // pred_check_branch
          %2633 = sbr.rel (%p2631) target = $region156
        $region155: #{egnn_ncp_forward.1} parent=151 // pred_region
          %v2634 = vld [vmem:[#allocation4] sm:$0xff]
          %v2635 = vld [vmem:[#allocation4 + $0x8] sm:$0xff]
          %s2636 = scalar_lea.vmem [#allocation4], 16
          %v2637 = vld [vmem:[%s2636] sm:$0xff]
          %v2638 = vld [vmem:[%s2636 + $0x8] sm:$0xff]
          %s2639 = scalar_lea.vmem [#allocation4], 32
          %v2640 = vld [vmem:[%s2639] sm:$0xff]
          %v2641 = vld [vmem:[%s2639 + $0x8] sm:$0xff]
          %s2642 = scalar_lea.vmem [#allocation4], 48
          %v2643 = vld [vmem:[%s2642] sm:$0xff]
          %v2644 = vld [vmem:[%s2642 + $0x8] sm:$0xff]
          %s2645 = scalar_lea.vmem [#allocation4], 64
          %v2646 = vld [vmem:[%s2645] sm:$0xff]
          %v2647 = vld [vmem:[%s2645 + $0x8] sm:$0xff]
          %s2648 = scalar_lea.vmem [#allocation4], 80
          %v2649 = vld [vmem:[%s2648] sm:$0xff]
          %v2650 = vld [vmem:[%s2648 + $0x8] sm:$0xff]
          %2653 = vrot.lane.b32.xlu0 %v2637, 32
          %v2654 = vpop.permute.xlu0 %2653
          %2655 = vrot.lane.b32.xlu0 %v2638, 32
          %v2656 = vpop.permute.xlu0 %2655
          %2661 = vrot.lane.b32.xlu0 %v2640, 64
          %v2662 = vpop.permute.xlu0 %2661
          %2663 = vrot.lane.b32.xlu0 %v2641, 64
          %v2664 = vpop.permute.xlu0 %2663
          %2669 = vrot.lane.b32.xlu0 %v2643, 96
          %v2670 = vpop.permute.xlu0 %2669
          %2671 = vrot.lane.b32.xlu0 %v2644, 96
          %v2672 = vpop.permute.xlu0 %2671
          %2677 = vrot.lane.b32.xlu0 %v2649, 32
          %v2678 = vpop.permute.xlu0 %2677
          %2679 = vrot.lane.b32.xlu0 %v2650, 32
          %v2680 = vpop.permute.xlu0 %2679
          %v2683 = vsel %vm1417, %v2634, %v2654
          %v2684 = vsel %vm1417, %v2635, %v2656
          %v2685 = vsel %vm1646, %v2683, %v2662
          %v2686 = vsel %vm1646, %v2684, %v2664
          %vm2687 = vcmask 785408
          %v2688 = vsel %vm2687, %v2685, %v2670
          %v2689 = vsel %vm2687, %v2686, %v2672
          %v2690 = vsel %vm1417, %v2646, %v2678
          %v2691 = vsel %vm1417, %v2647, %v2680
          %v2692 = vxor.u32 %v2688, 2147483648
          %v2693 = vxor.u32 %v2690, 2147483648
          %v2694 = vxor.u32 %v2689, 2147483648
          %v2695 = vxor.u32 %v2691, 2147483648
          %v2696 = vmul.f32 %v2692, 1.442695
          %v2697 = vpow.pop %v2696
          %v2698 = vmul.f32 %v2693, 1.442695
          %v2699 = vpow.pop %v2698
          %v2700 = vmul.f32 %v2694, 1.442695
          %v2701 = vpow.pop %v2700
          %v2702 = vmul.f32 %v2695, 1.442695
          %v2703 = vpow.pop %v2702
          %v2704 = vadd.f32 %v2697, 1.0
          %v2705 = vadd.f32 %v2699, 1.0
          %v2706 = vadd.f32 %v2701, 1.0
          %v2707 = vadd.f32 %v2703, 1.0
          %v2708 = vrcp.pop %v2704
          %v2709 = vmul.f32 1.0, %v2708
          %v2710 = vrcp.pop %v2705
          %v2711 = vmul.f32 1.0, %v2710
          %v2712 = vrcp.pop %v2706
          %v2713 = vmul.f32 1.0, %v2712
          %v2714 = vrcp.pop %v2707
          %v2715 = vmul.f32 1.0, %v2714
          %v2716 = vmul.f32 %v2688, %v2709
          %v2717 = vmul.f32 %v2690, %v2711
          %v2718 = vmul.f32 %v2689, %v2713
          %v2719 = vmul.f32 %v2691, %v2715
          %v2720 = vld [vmem:[%s45] sm:$0xff]
          %v2721 = vld [vmem:[%s45 + $0x8] sm:$0xff]
          %v2722 = vld [vmem:[%s45 + $0x10] sm:$0xff]
          %v2723 = vld [vmem:[%s45 + $0x18] sm:$0xff]
          %v2724 = vld [vmem:[%s45 + $0x20] sm:$0xff]
          %v2725 = vld [vmem:[%s45 + $0x28] sm:$0xff]
          %v2726 = vld [vmem:[%s45 + $0x30] sm:$0xff]
          %v2727 = vld [vmem:[%s45 + $0x38] sm:$0xff]
          %v2728 = vld [vmem:[%s45 + $0x40] sm:$0xff]
          %v2729 = vld [vmem:[%s45 + $0x48] sm:$0xff]
          %v2730 = vld [vmem:[%s45 + $0x50] sm:$0xff]
          %v2731 = vld [vmem:[%s45 + $0x58] sm:$0xff]
          %v2732 = vld [vmem:[%s45 + $0x60] sm:$0xff]
          %v2733 = vld [vmem:[%s45 + $0x68] sm:$0xff]
          %v2734 = vld [vmem:[%s45 + $0x70] sm:$0xff]
          %v2735 = vld [vmem:[%s45 + $0x78] sm:$0xff]
          %v2736 = vld [vmem:[%s45 + $0x80] sm:$0xff]
          %v2737 = vld [vmem:[%s45 + $0x88] sm:$0xff]
          %v2738 = vld [vmem:[%s45 + $0x90] sm:$0xff]
          %v2739 = vld [vmem:[%s45 + $0x98] sm:$0xff]
          %v2740 = vld [vmem:[%s45 + $0xa0] sm:$0xff]
          %v2741 = vld [vmem:[%s45 + $0xa8] sm:$0xff]
          %v2742 = vld [vmem:[%s45 + $0xb0] sm:$0xff]
          %v2743 = vld [vmem:[%s45 + $0xb8] sm:$0xff]
          %v2744 = vld [vmem:[%s45 + $0xc0] sm:$0xff]
          %v2745 = vld [vmem:[%s45 + $0xc8] sm:$0xff]
          %v2746 = vld [vmem:[%s45 + $0xd0] sm:$0xff]
          %v2747 = vld [vmem:[%s45 + $0xd8] sm:$0xff]
          %v2748 = vld [vmem:[%s45 + $0xe0] sm:$0xff]
          %v2749 = vld [vmem:[%s45 + $0xe8] sm:$0xff]
          %v2750 = vld [vmem:[%s45 + $0xf0] sm:$0xff]
          %v2751 = vld [vmem:[%s45 + $0xf8] sm:$0xff]
          %v2752 = vld [vmem:[%s45 + $0x100] sm:$0xff]
          %v2753 = vld [vmem:[%s45 + $0x108] sm:$0xff]
          %v2754 = vld [vmem:[%s45 + $0x110] sm:$0xff]
          %v2755 = vld [vmem:[%s45 + $0x118] sm:$0xff]
          %v2756 = vld [vmem:[%s45 + $0x120] sm:$0xff]
          %v2757 = vld [vmem:[%s45 + $0x128] sm:$0xff]
          %v2758 = vld [vmem:[%s45 + $0x130] sm:$0xff]
          %v2759 = vld [vmem:[%s45 + $0x138] sm:$0xff]
          %v2760 = vld [vmem:[%s45 + $0x140] sm:$0xff]
          %v2761 = vld [vmem:[%s45 + $0x148] sm:$0xff]
          %v2762 = vld [vmem:[%s45 + $0x150] sm:$0xff]
          %v2763 = vld [vmem:[%s45 + $0x158] sm:$0xff]
          %v2764 = vld [vmem:[%s45 + $0x160] sm:$0xff]
          %v2765 = vld [vmem:[%s45 + $0x168] sm:$0xff]
          %v2766 = vld [vmem:[%s45 + $0x170] sm:$0xff]
          %v2767 = vld [vmem:[%s45 + $0x178] sm:$0xff]
          %v2768 = vld [vmem:[%s47] sm:$0x3]
          %v2770 = vlaneseq
          %v2771 = vshrl.u32 %v2770, 7
          %v2772 = vsub.s32 0, %v2771
          %v2773 = vrot.slane %v2768, %v2772
          %v2774 = vlaneseq
          %v2775 = vshrl.u32 %v2774, 7
          %v2776 = vsub.s32 1, %v2775
          %v2777 = vrot.slane %v2768, %v2776
          %v2781 = vsel %vm1646, %v2717, 0
          %v2784 = vsel %vm1646, %v2719, 0
          %2786 = vmatprep.subr.mxu0 %v2751
          %2787 = vmatpush1.msra.mxu0 %v2750
          %2788 = vmatprep.subr.mxu0 %v2749
          %2789 = vmatpush1.msra.mxu0 %v2748
          %2790 = vmatprep.subr.mxu0 %v2747
          %2791 = vmatpush1.msra.mxu0 %v2746
          %2792 = vmatprep.subr.mxu0 %v2745
          %2793 = vmatpush1.msra.mxu0 %v2744
          %2794 = vmatprep.subr.mxu0 %v2743
          %2795 = vmatpush1.msra.mxu0 %v2742
          %2796 = vmatprep.subr.mxu0 %v2741
          %2797 = vmatpush1.msra.mxu0 %v2740
          %2798 = vmatprep.subr.mxu0 %v2739
          %2799 = vmatpush1.msra.mxu0 %v2738
          %2800 = vmatprep.subr.mxu0 %v2737
          %2801 = vmatpush1.msra.mxu0 %v2736
          %2802 = vmatprep.subr.mxu0 %v2735
          %2803 = vmatpush1.msra.mxu0 %v2734
          %2804 = vmatprep.subr.mxu0 %v2733
          %2805 = vmatpush1.msra.mxu0 %v2732
          %2806 = vmatprep.subr.mxu0 %v2731
          %2807 = vmatpush1.msra.mxu0 %v2730
          %2808 = vmatprep.subr.mxu0 %v2729
          %2809 = vmatpush1.msra.mxu0 %v2728
          %2810 = vmatprep.subr.mxu0 %v2727
          %2811 = vmatpush1.msra.mxu0 %v2726
          %2812 = vmatprep.subr.mxu0 %v2725
          %2813 = vmatpush1.msra.mxu0 %v2724
          %2814 = vmatprep.subr.mxu0 %v2723
          %2815 = vmatpush1.msra.mxu0 %v2722
          %2816 = vmatprep.subr.mxu0 %v2721
          %2817 = vmatpush1.msra.mxu0 %v2720
          %2818 = vmatprep.subr.mxu0 0.0
          %2819 = vmatpush2.msra.mxu0 0.0
          %2820 = vmatprep.subr.mxu0 0.0
          %2821 = vmatpush2.msra.mxu0 0.0
          %2822 = vmatprep.subr.mxu0 0.0
          %2823 = vmatpush2.msra.mxu0 0.0
          %2824 = vmatprep.subr.mxu0 0.0
          %2825 = vmatpush2.msra.mxu0 0.0
          %2826 = vmatprep.subr.mxu0 0.0
          %2827 = vmatpush2.msra.mxu0 0.0
          %2828 = vmatprep.subr.mxu0 0.0
          %2829 = vmatpush2.msra.mxu0 0.0
          %2830 = vmatprep.subr.mxu0 0.0
          %2831 = vmatpush2.msra.mxu0 0.0
          %2832 = vmatprep.subr.mxu0 0.0
          %2833 = vmatpush2.msra.mxu0 0.0
          %2834 = vmatprep.subr.mxu0 %v2767
          %2835 = vmatpush2.msra.mxu0 %v2766
          %2836 = vmatprep.subr.mxu0 %v2765
          %2837 = vmatpush2.msra.mxu0 %v2764
          %2838 = vmatprep.subr.mxu0 %v2763
          %2839 = vmatpush2.msra.mxu0 %v2762
          %2840 = vmatprep.subr.mxu0 %v2761
          %2841 = vmatpush2.msra.mxu0 %v2760
          %2842 = vmatprep.subr.mxu0 %v2759
          %2843 = vmatpush2.msra.mxu0 %v2758
          %2844 = vmatprep.subr.mxu0 %v2757
          %2845 = vmatpush2.msra.mxu0 %v2756
          %2846 = vmatprep.subr.mxu0 %v2755
          %2847 = vmatpush2.msra.mxu0 %v2754
          %2848 = vmatprep.subr.mxu0 %v2753
          %2849 = vmatpush2.msra.mxu0 %v2752
          %2850 = vmatprep.mubr.f32.mxu0 %v2781
          %2851 = vmatmul.mubr.f32.gmra.mxu0 %v2716
          %v2852 = vpop.f32.mrf.mxu0
          %v2853 = vadd.f32 %v2773, %v2852
          %v2854 = vpop.f32.mrf.mxu0
          %v2855 = vadd.f32 %v2777, %v2854
          %2856 = vmatprep.mubr.f32.mxu0 %v2784
          %2857 = vmatmul.mubr.f32.gmra.mxu0 %v2718
          %v2858 = vpop.f32.mrf.mxu0
          %v2859 = vadd.f32 %v2773, %v2858
          %v2860 = vpop.f32.mrf.mxu0
          %v2861 = vadd.f32 %v2777, %v2860
          %2862 = vdwg.mxu0
          %v2863 = vxor.u32 %v2853, 2147483648
          %v2864 = vxor.u32 %v2855, 2147483648
          %v2865 = vxor.u32 %v2859, 2147483648
          %v2866 = vxor.u32 %v2861, 2147483648
          %v2867 = vmul.f32 %v2863, 1.442695
          %v2868 = vpow.pop %v2867
          %v2869 = vmul.f32 %v2864, 1.442695
          %v2870 = vpow.pop %v2869
          %v2871 = vmul.f32 %v2865, 1.442695
          %v2872 = vpow.pop %v2871
          %v2873 = vmul.f32 %v2866, 1.442695
          %v2874 = vpow.pop %v2873
          %v2875 = vadd.f32 %v2868, 1.0
          %v2876 = vadd.f32 %v2870, 1.0
          %v2877 = vadd.f32 %v2872, 1.0
          %v2878 = vadd.f32 %v2874, 1.0
          %v2879 = vrcp.pop %v2875
          %v2880 = vmul.f32 1.0, %v2879
          %v2881 = vrcp.pop %v2876
          %v2882 = vmul.f32 1.0, %v2881
          %v2883 = vrcp.pop %v2877
          %v2884 = vmul.f32 1.0, %v2883
          %v2885 = vrcp.pop %v2878
          %v2886 = vmul.f32 1.0, %v2885
          %v2887 = vmul.f32 %v2853, %v2880
          %v2888 = vmul.f32 %v2855, %v2882
          %v2889 = vmul.f32 %v2859, %v2884
          %v2890 = vmul.f32 %v2861, %v2886
          %v2891 = vld [vmem:[%s49] sm:$0xff]
          %v2892 = vld [vmem:[%s49 + $0x8] sm:$0xff]
          %v2893 = vld [vmem:[%s49 + $0x10] sm:$0xff]
          %v2894 = vld [vmem:[%s49 + $0x18] sm:$0xff]
          %v2895 = vld [vmem:[%s49 + $0x20] sm:$0xff]
          %v2896 = vld [vmem:[%s49 + $0x28] sm:$0xff]
          %v2897 = vld [vmem:[%s49 + $0x30] sm:$0xff]
          %v2898 = vld [vmem:[%s49 + $0x38] sm:$0xff]
          %v2899 = vld [vmem:[%s49 + $0x40] sm:$0xff]
          %v2900 = vld [vmem:[%s49 + $0x48] sm:$0xff]
          %v2901 = vld [vmem:[%s49 + $0x50] sm:$0xff]
          %v2902 = vld [vmem:[%s49 + $0x58] sm:$0xff]
          %v2903 = vld [vmem:[%s49 + $0x60] sm:$0xff]
          %v2904 = vld [vmem:[%s49 + $0x68] sm:$0xff]
          %v2905 = vld [vmem:[%s49 + $0x70] sm:$0xff]
          %v2906 = vld [vmem:[%s49 + $0x78] sm:$0xff]
          %v2907 = vld [vmem:[%s49 + $0x80] sm:$0xff]
          %v2908 = vld [vmem:[%s49 + $0x88] sm:$0xff]
          %v2909 = vld [vmem:[%s49 + $0x90] sm:$0xff]
          %v2910 = vld [vmem:[%s49 + $0x98] sm:$0xff]
          %v2911 = vld [vmem:[%s49 + $0xa0] sm:$0xff]
          %v2912 = vld [vmem:[%s49 + $0xa8] sm:$0xff]
          %v2913 = vld [vmem:[%s49 + $0xb0] sm:$0xff]
          %v2914 = vld [vmem:[%s49 + $0xb8] sm:$0xff]
          %v2915 = vld [vmem:[%s49 + $0xc0] sm:$0xff]
          %v2916 = vld [vmem:[%s49 + $0xc8] sm:$0xff]
          %v2917 = vld [vmem:[%s49 + $0xd0] sm:$0xff]
          %v2918 = vld [vmem:[%s49 + $0xd8] sm:$0xff]
          %v2919 = vld [vmem:[%s49 + $0xe0] sm:$0xff]
          %v2920 = vld [vmem:[%s49 + $0xe8] sm:$0xff]
          %v2921 = vld [vmem:[%s49 + $0xf0] sm:$0xff]
          %v2922 = vld [vmem:[%s49 + $0xf8] sm:$0xff]
          %v2923 = vld [vmem:[%s49 + $0x100] sm:$0xff]
          %v2924 = vld [vmem:[%s49 + $0x108] sm:$0xff]
          %v2925 = vld [vmem:[%s49 + $0x110] sm:$0xff]
          %v2926 = vld [vmem:[%s49 + $0x118] sm:$0xff]
          %v2927 = vld [vmem:[%s49 + $0x120] sm:$0xff]
          %v2928 = vld [vmem:[%s49 + $0x128] sm:$0xff]
          %v2929 = vld [vmem:[%s49 + $0x130] sm:$0xff]
          %v2930 = vld [vmem:[%s49 + $0x138] sm:$0xff]
          %v2931 = vld [vmem:[%s49 + $0x140] sm:$0xff]
          %v2932 = vld [vmem:[%s49 + $0x148] sm:$0xff]
          %v2933 = vld [vmem:[%s49 + $0x150] sm:$0xff]
          %v2934 = vld [vmem:[%s49 + $0x158] sm:$0xff]
          %v2935 = vld [vmem:[%s49 + $0x160] sm:$0xff]
          %v2936 = vld [vmem:[%s49 + $0x168] sm:$0xff]
          %v2937 = vld [vmem:[%s49 + $0x170] sm:$0xff]
          %v2938 = vld [vmem:[%s49 + $0x178] sm:$0xff]
          %v2939 = vld [vmem:[%s49 + $0x180] sm:$0xff]
          %v2940 = vld [vmem:[%s49 + $0x188] sm:$0xff]
          %v2941 = vld [vmem:[%s49 + $0x190] sm:$0xff]
          %v2942 = vld [vmem:[%s49 + $0x198] sm:$0xff]
          %v2943 = vld [vmem:[%s49 + $0x1a0] sm:$0xff]
          %v2944 = vld [vmem:[%s49 + $0x1a8] sm:$0xff]
          %v2945 = vld [vmem:[%s49 + $0x1b0] sm:$0xff]
          %v2946 = vld [vmem:[%s49 + $0x1b8] sm:$0xff]
          %v2947 = vld [vmem:[%s49 + $0x1c0] sm:$0xff]
          %v2948 = vld [vmem:[%s49 + $0x1c8] sm:$0xff]
          %v2949 = vld [vmem:[%s49 + $0x1d0] sm:$0xff]
          %v2950 = vld [vmem:[%s49 + $0x1d8] sm:$0xff]
          %v2951 = vld [vmem:[%s49 + $0x1e0] sm:$0xff]
          %v2952 = vld [vmem:[%s49 + $0x1e8] sm:$0xff]
          %v2953 = vld [vmem:[%s49 + $0x1f0] sm:$0xff]
          %v2954 = vld [vmem:[%s49 + $0x1f8] sm:$0xff]
          %v2955 = vld [vmem:[%s51] sm:$0x3]
          %v2957 = vlaneseq
          %v2958 = vshrl.u32 %v2957, 7
          %v2959 = vsub.s32 0, %v2958
          %v2960 = vrot.slane %v2955, %v2959
          %v2961 = vlaneseq
          %v2962 = vshrl.u32 %v2961, 7
          %v2963 = vsub.s32 1, %v2962
          %v2964 = vrot.slane %v2955, %v2963
          %2967 = vmatprep.subr.mxu0 %v2922
          %2968 = vmatpush1.msra.mxu0 %v2921
          %2969 = vmatprep.subr.mxu0 %v2920
          %2970 = vmatpush1.msra.mxu0 %v2919
          %2971 = vmatprep.subr.mxu0 %v2918
          %2972 = vmatpush1.msra.mxu0 %v2917
          %2973 = vmatprep.subr.mxu0 %v2916
          %2974 = vmatpush1.msra.mxu0 %v2915
          %2975 = vmatprep.subr.mxu0 %v2914
          %2976 = vmatpush1.msra.mxu0 %v2913
          %2977 = vmatprep.subr.mxu0 %v2912
          %2978 = vmatpush1.msra.mxu0 %v2911
          %2979 = vmatprep.subr.mxu0 %v2910
          %2980 = vmatpush1.msra.mxu0 %v2909
          %2981 = vmatprep.subr.mxu0 %v2908
          %2982 = vmatpush1.msra.mxu0 %v2907
          %2983 = vmatprep.subr.mxu0 %v2906
          %2984 = vmatpush1.msra.mxu0 %v2905
          %2985 = vmatprep.subr.mxu0 %v2904
          %2986 = vmatpush1.msra.mxu0 %v2903
          %2987 = vmatprep.subr.mxu0 %v2902
          %2988 = vmatpush1.msra.mxu0 %v2901
          %2989 = vmatprep.subr.mxu0 %v2900
          %2990 = vmatpush1.msra.mxu0 %v2899
          %2991 = vmatprep.subr.mxu0 %v2898
          %2992 = vmatpush1.msra.mxu0 %v2897
          %2993 = vmatprep.subr.mxu0 %v2896
          %2994 = vmatpush1.msra.mxu0 %v2895
          %2995 = vmatprep.subr.mxu0 %v2894
          %2996 = vmatpush1.msra.mxu0 %v2893
          %2997 = vmatprep.subr.mxu0 %v2892
          %2998 = vmatpush1.msra.mxu0 %v2891
          %2999 = vmatprep.subr.mxu0 %v2954
          %3000 = vmatpush2.msra.mxu0 %v2953
          %3001 = vmatprep.subr.mxu0 %v2952
          %3002 = vmatpush2.msra.mxu0 %v2951
          %3003 = vmatprep.subr.mxu0 %v2950
          %3004 = vmatpush2.msra.mxu0 %v2949
          %3005 = vmatprep.subr.mxu0 %v2948
          %3006 = vmatpush2.msra.mxu0 %v2947
          %3007 = vmatprep.subr.mxu0 %v2946
          %3008 = vmatpush2.msra.mxu0 %v2945
          %3009 = vmatprep.subr.mxu0 %v2944
          %3010 = vmatpush2.msra.mxu0 %v2943
          %3011 = vmatprep.subr.mxu0 %v2942
          %3012 = vmatpush2.msra.mxu0 %v2941
          %3013 = vmatprep.subr.mxu0 %v2940
          %3014 = vmatpush2.msra.mxu0 %v2939
          %3015 = vmatprep.subr.mxu0 %v2938
          %3016 = vmatpush2.msra.mxu0 %v2937
          %3017 = vmatprep.subr.mxu0 %v2936
          %3018 = vmatpush2.msra.mxu0 %v2935
          %3019 = vmatprep.subr.mxu0 %v2934
          %3020 = vmatpush2.msra.mxu0 %v2933
          %3021 = vmatprep.subr.mxu0 %v2932
          %3022 = vmatpush2.msra.mxu0 %v2931
          %3023 = vmatprep.subr.mxu0 %v2930
          %3024 = vmatpush2.msra.mxu0 %v2929
          %3025 = vmatprep.subr.mxu0 %v2928
          %3026 = vmatpush2.msra.mxu0 %v2927
          %3027 = vmatprep.subr.mxu0 %v2926
          %3028 = vmatpush2.msra.mxu0 %v2925
          %3029 = vmatprep.subr.mxu0 %v2924
          %3030 = vmatpush2.msra.mxu0 %v2923
          %3031 = vmatprep.mubr.f32.mxu0 %v2888
          %3032 = vmatmul.mubr.f32.gmra.mxu0 %v2887
          %v3033 = vpop.f32.mrf.mxu0
          %v3034 = vadd.f32 %v2960, %v3033
          %v3035 = vpop.f32.mrf.mxu0
          %v3036 = vadd.f32 %v2964, %v3035
          %3037 = vmatprep.mubr.f32.mxu0 %v2890
          %3038 = vmatmul.mubr.f32.gmra.mxu0 %v2889
          %v3039 = vpop.f32.mrf.mxu0
          %v3040 = vadd.f32 %v2960, %v3039
          %v3041 = vpop.f32.mrf.mxu0
          %v3042 = vadd.f32 %v2964, %v3041
          %3043 = vdwg.mxu0
          %v3044 = vxor.u32 %v3034, 2147483648
          %v3045 = vxor.u32 %v3036, 2147483648
          %v3046 = vxor.u32 %v3040, 2147483648
          %v3047 = vxor.u32 %v3042, 2147483648
          %v3048 = vmul.f32 %v3044, 1.442695
          %v3049 = vpow.pop %v3048
          %v3050 = vmul.f32 %v3045, 1.442695
          %v3051 = vpow.pop %v3050
          %v3052 = vmul.f32 %v3046, 1.442695
          %v3053 = vpow.pop %v3052
          %v3054 = vmul.f32 %v3047, 1.442695
          %v3055 = vpow.pop %v3054
          %v3056 = vadd.f32 %v3049, 1.0
          %v3057 = vadd.f32 %v3051, 1.0
          %v3058 = vadd.f32 %v3053, 1.0
          %v3059 = vadd.f32 %v3055, 1.0
          %v3060 = vrcp.pop %v3056
          %v3061 = vmul.f32 1.0, %v3060
          %v3062 = vrcp.pop %v3057
          %v3063 = vmul.f32 1.0, %v3062
          %v3064 = vrcp.pop %v3058
          %v3065 = vmul.f32 1.0, %v3064
          %v3066 = vrcp.pop %v3059
          %v3067 = vmul.f32 1.0, %v3066
          %v3068 = vmul.f32 %v3034, %v3061
          %v3069 = vmul.f32 %v3036, %v3063
          %v3070 = vmul.f32 %v3040, %v3065
          %v3071 = vmul.f32 %v3042, %v3067
          %v3072 = vld [vmem:[%s53] sm:$0xff]
          %v3073 = vld [vmem:[%s53 + $0x8] sm:$0xff]
          %v3074 = vld [vmem:[%s53 + $0x10] sm:$0xff]
          %v3075 = vld [vmem:[%s53 + $0x18] sm:$0xff]
          %v3076 = vld [vmem:[%s53 + $0x20] sm:$0xff]
          %v3077 = vld [vmem:[%s53 + $0x28] sm:$0xff]
          %v3078 = vld [vmem:[%s53 + $0x30] sm:$0xff]
          %v3079 = vld [vmem:[%s53 + $0x38] sm:$0xff]
          %v3080 = vld [vmem:[%s53 + $0x40] sm:$0xff]
          %v3081 = vld [vmem:[%s53 + $0x48] sm:$0xff]
          %v3082 = vld [vmem:[%s53 + $0x50] sm:$0xff]
          %v3083 = vld [vmem:[%s53 + $0x58] sm:$0xff]
          %v3084 = vld [vmem:[%s53 + $0x60] sm:$0xff]
          %v3085 = vld [vmem:[%s53 + $0x68] sm:$0xff]
          %v3086 = vld [vmem:[%s53 + $0x70] sm:$0xff]
          %v3087 = vld [vmem:[%s53 + $0x78] sm:$0xff]
          %v3088 = vld [vmem:[%s53 + $0x80] sm:$0xff]
          %v3089 = vld [vmem:[%s53 + $0x88] sm:$0xff]
          %v3090 = vld [vmem:[%s53 + $0x90] sm:$0xff]
          %v3091 = vld [vmem:[%s53 + $0x98] sm:$0xff]
          %v3092 = vld [vmem:[%s53 + $0xa0] sm:$0xff]
          %v3093 = vld [vmem:[%s53 + $0xa8] sm:$0xff]
          %v3094 = vld [vmem:[%s53 + $0xb0] sm:$0xff]
          %v3095 = vld [vmem:[%s53 + $0xb8] sm:$0xff]
          %v3096 = vld [vmem:[%s53 + $0xc0] sm:$0xff]
          %v3097 = vld [vmem:[%s53 + $0xc8] sm:$0xff]
          %v3098 = vld [vmem:[%s53 + $0xd0] sm:$0xff]
          %v3099 = vld [vmem:[%s53 + $0xd8] sm:$0xff]
          %v3100 = vld [vmem:[%s53 + $0xe0] sm:$0xff]
          %v3101 = vld [vmem:[%s53 + $0xe8] sm:$0xff]
          %v3102 = vld [vmem:[%s53 + $0xf0] sm:$0xff]
          %v3103 = vld [vmem:[%s53 + $0xf8] sm:$0xff]
          %v3104 = vld [vmem:[%s53 + $0x100] sm:$0xff]
          %v3105 = vld [vmem:[%s53 + $0x108] sm:$0xff]
          %v3106 = vld [vmem:[%s53 + $0x110] sm:$0xff]
          %v3107 = vld [vmem:[%s53 + $0x118] sm:$0xff]
          %v3108 = vld [vmem:[%s53 + $0x120] sm:$0xff]
          %v3109 = vld [vmem:[%s53 + $0x128] sm:$0xff]
          %v3110 = vld [vmem:[%s53 + $0x130] sm:$0xff]
          %v3111 = vld [vmem:[%s53 + $0x138] sm:$0xff]
          %v3112 = vld [vmem:[%s53 + $0x140] sm:$0xff]
          %v3113 = vld [vmem:[%s53 + $0x148] sm:$0xff]
          %v3114 = vld [vmem:[%s53 + $0x150] sm:$0xff]
          %v3115 = vld [vmem:[%s53 + $0x158] sm:$0xff]
          %v3116 = vld [vmem:[%s53 + $0x160] sm:$0xff]
          %v3117 = vld [vmem:[%s53 + $0x168] sm:$0xff]
          %v3118 = vld [vmem:[%s53 + $0x170] sm:$0xff]
          %v3119 = vld [vmem:[%s53 + $0x178] sm:$0xff]
          %v3120 = vld [vmem:[%s53 + $0x180] sm:$0xff]
          %v3121 = vld [vmem:[%s53 + $0x188] sm:$0xff]
          %v3122 = vld [vmem:[%s53 + $0x190] sm:$0xff]
          %v3123 = vld [vmem:[%s53 + $0x198] sm:$0xff]
          %v3124 = vld [vmem:[%s53 + $0x1a0] sm:$0xff]
          %v3125 = vld [vmem:[%s53 + $0x1a8] sm:$0xff]
          %v3126 = vld [vmem:[%s53 + $0x1b0] sm:$0xff]
          %v3127 = vld [vmem:[%s53 + $0x1b8] sm:$0xff]
          %v3128 = vld [vmem:[%s53 + $0x1c0] sm:$0xff]
          %v3129 = vld [vmem:[%s53 + $0x1c8] sm:$0xff]
          %v3130 = vld [vmem:[%s53 + $0x1d0] sm:$0xff]
          %v3131 = vld [vmem:[%s53 + $0x1d8] sm:$0xff]
          %v3132 = vld [vmem:[%s53 + $0x1e0] sm:$0xff]
          %v3133 = vld [vmem:[%s53 + $0x1e8] sm:$0xff]
          %v3134 = vld [vmem:[%s53 + $0x1f0] sm:$0xff]
          %v3135 = vld [vmem:[%s53 + $0x1f8] sm:$0xff]
          %v3136 = vld [vmem:[%s55] sm:$0x3]
          %v3138 = vlaneseq
          %v3139 = vshrl.u32 %v3138, 7
          %v3140 = vsub.s32 0, %v3139
          %v3141 = vrot.slane %v3136, %v3140
          %v3142 = vlaneseq
          %v3143 = vshrl.u32 %v3142, 7
          %v3144 = vsub.s32 1, %v3143
          %v3145 = vrot.slane %v3136, %v3144
          %3148 = vmatprep.subr.mxu0 %v3103
          %3149 = vmatpush1.msra.mxu0 %v3102
          %3150 = vmatprep.subr.mxu0 %v3101
          %3151 = vmatpush1.msra.mxu0 %v3100
          %3152 = vmatprep.subr.mxu0 %v3099
          %3153 = vmatpush1.msra.mxu0 %v3098
          %3154 = vmatprep.subr.mxu0 %v3097
          %3155 = vmatpush1.msra.mxu0 %v3096
          %3156 = vmatprep.subr.mxu0 %v3095
          %3157 = vmatpush1.msra.mxu0 %v3094
          %3158 = vmatprep.subr.mxu0 %v3093
          %3159 = vmatpush1.msra.mxu0 %v3092
          %3160 = vmatprep.subr.mxu0 %v3091
          %3161 = vmatpush1.msra.mxu0 %v3090
          %3162 = vmatprep.subr.mxu0 %v3089
          %3163 = vmatpush1.msra.mxu0 %v3088
          %3164 = vmatprep.subr.mxu0 %v3087
          %3165 = vmatpush1.msra.mxu0 %v3086
          %3166 = vmatprep.subr.mxu0 %v3085
          %3167 = vmatpush1.msra.mxu0 %v3084
          %3168 = vmatprep.subr.mxu0 %v3083
          %3169 = vmatpush1.msra.mxu0 %v3082
          %3170 = vmatprep.subr.mxu0 %v3081
          %3171 = vmatpush1.msra.mxu0 %v3080
          %3172 = vmatprep.subr.mxu0 %v3079
          %3173 = vmatpush1.msra.mxu0 %v3078
          %3174 = vmatprep.subr.mxu0 %v3077
          %3175 = vmatpush1.msra.mxu0 %v3076
          %3176 = vmatprep.subr.mxu0 %v3075
          %3177 = vmatpush1.msra.mxu0 %v3074
          %3178 = vmatprep.subr.mxu0 %v3073
          %3179 = vmatpush1.msra.mxu0 %v3072
          %3180 = vmatprep.subr.mxu0 %v3135
          %3181 = vmatpush2.msra.mxu0 %v3134
          %3182 = vmatprep.subr.mxu0 %v3133
          %3183 = vmatpush2.msra.mxu0 %v3132
          %3184 = vmatprep.subr.mxu0 %v3131
          %3185 = vmatpush2.msra.mxu0 %v3130
          %3186 = vmatprep.subr.mxu0 %v3129
          %3187 = vmatpush2.msra.mxu0 %v3128
          %3188 = vmatprep.subr.mxu0 %v3127
          %3189 = vmatpush2.msra.mxu0 %v3126
          %3190 = vmatprep.subr.mxu0 %v3125
          %3191 = vmatpush2.msra.mxu0 %v3124
          %3192 = vmatprep.subr.mxu0 %v3123
          %3193 = vmatpush2.msra.mxu0 %v3122
          %3194 = vmatprep.subr.mxu0 %v3121
          %3195 = vmatpush2.msra.mxu0 %v3120
          %3196 = vmatprep.subr.mxu0 %v3119
          %3197 = vmatpush2.msra.mxu0 %v3118
          %3198 = vmatprep.subr.mxu0 %v3117
          %3199 = vmatpush2.msra.mxu0 %v3116
          %3200 = vmatprep.subr.mxu0 %v3115
          %3201 = vmatpush2.msra.mxu0 %v3114
          %3202 = vmatprep.subr.mxu0 %v3113
          %3203 = vmatpush2.msra.mxu0 %v3112
          %3204 = vmatprep.subr.mxu0 %v3111
          %3205 = vmatpush2.msra.mxu0 %v3110
          %3206 = vmatprep.subr.mxu0 %v3109
          %3207 = vmatpush2.msra.mxu0 %v3108
          %3208 = vmatprep.subr.mxu0 %v3107
          %3209 = vmatpush2.msra.mxu0 %v3106
          %3210 = vmatprep.subr.mxu0 %v3105
          %3211 = vmatpush2.msra.mxu0 %v3104
          %3212 = vmatprep.mubr.f32.mxu0 %v3069
          %3213 = vmatmul.mubr.f32.gmra.mxu0 %v3068
          %v3214 = vpop.f32.mrf.mxu0
          %v3215 = vadd.f32 %v3141, %v3214
          %v3216 = vpop.f32.mrf.mxu0
          %v3217 = vadd.f32 %v3145, %v3216
          %3218 = vmatprep.mubr.f32.mxu0 %v3071
          %3219 = vmatmul.mubr.f32.gmra.mxu0 %v3070
          %v3220 = vpop.f32.mrf.mxu0
          %v3221 = vadd.f32 %v3141, %v3220
          %v3222 = vpop.f32.mrf.mxu0
          %v3223 = vadd.f32 %v3145, %v3222
          %3224 = vdwg.mxu0
          %v3225 = vxor.u32 %v3215, 2147483648
          %v3226 = vxor.u32 %v3217, 2147483648
          %v3227 = vxor.u32 %v3221, 2147483648
          %v3228 = vxor.u32 %v3223, 2147483648
          %v3229 = vmul.f32 %v3225, 1.442695
          %v3230 = vpow.pop %v3229
          %v3231 = vmul.f32 %v3226, 1.442695
          %v3232 = vpow.pop %v3231
          %v3233 = vmul.f32 %v3227, 1.442695
          %v3234 = vpow.pop %v3233
          %v3235 = vmul.f32 %v3228, 1.442695
          %v3236 = vpow.pop %v3235
          %v3237 = vadd.f32 %v3230, 1.0
          %v3238 = vadd.f32 %v3232, 1.0
          %v3239 = vadd.f32 %v3234, 1.0
          %v3240 = vadd.f32 %v3236, 1.0
          %v3241 = vrcp.pop %v3237
          %v3242 = vmul.f32 1.0, %v3241
          %v3243 = vrcp.pop %v3238
          %v3244 = vmul.f32 1.0, %v3243
          %v3245 = vrcp.pop %v3239
          %v3246 = vmul.f32 1.0, %v3245
          %v3247 = vrcp.pop %v3240
          %v3248 = vmul.f32 1.0, %v3247
          %v3249 = vmul.f32 %v3215, %v3242
          %v3250 = vmul.f32 %v3217, %v3244
          %v3251 = vmul.f32 %v3221, %v3246
          %v3252 = vmul.f32 %v3223, %v3248
          %v3253 = vld [vmem:[%s11] sm:$0x3]
          %v3255 = vsel %vm1244, %v3253, 0
          %3257 = vmatprep.subr.mxu0 0.0
          %3258 = vmatpush1.msra.mxu0 0.0
          %3259 = vmatprep.subr.mxu0 0.0
          %3260 = vmatpush1.msra.mxu0 0.0
          %3261 = vmatprep.subr.mxu0 0.0
          %3262 = vmatpush1.msra.mxu0 0.0
          %3263 = vmatprep.subr.mxu0 0.0
          %3264 = vmatpush1.msra.mxu0 0.0
          %3265 = vmatprep.subr.mxu0 0.0
          %3266 = vmatpush1.msra.mxu0 0.0
          %3267 = vmatprep.subr.mxu0 0.0
          %3268 = vmatpush1.msra.mxu0 0.0
          %3269 = vmatprep.subr.mxu0 0.0
          %3270 = vmatpush1.msra.mxu0 0.0
          %3271 = vmatprep.subr.mxu0 0.0
          %3272 = vmatpush1.msra.mxu0 0.0
          %3273 = vmatprep.subr.mxu0 0.0
          %3274 = vmatpush1.msra.mxu0 0.0
          %3275 = vmatprep.subr.mxu0 0.0
          %3276 = vmatpush1.msra.mxu0 0.0
          %3277 = vmatprep.subr.mxu0 0.0
          %3278 = vmatpush1.msra.mxu0 0.0
          %3279 = vmatprep.subr.mxu0 0.0
          %3280 = vmatpush1.msra.mxu0 0.0
          %3281 = vmatprep.subr.mxu0 0.0
          %3282 = vmatpush1.msra.mxu0 0.0
          %3283 = vmatprep.subr.mxu0 0.0
          %3284 = vmatpush1.msra.mxu0 0.0
          %3285 = vmatprep.subr.mxu0 %v3252
          %3286 = vmatpush1.msra.mxu0 %v3251
          %3287 = vmatprep.subr.mxu0 %v3250
          %3288 = vmatpush1.msra.mxu0 %v3249
          %3289 = vmatprep.subr.mxu0 0.0
          %3290 = vmatpush2.msra.mxu0 0.0
          %3291 = vmatprep.subr.mxu0 0.0
          %3292 = vmatpush2.msra.mxu0 0.0
          %3293 = vmatprep.subr.mxu0 0.0
          %3294 = vmatpush2.msra.mxu0 0.0
          %3295 = vmatprep.subr.mxu0 0.0
          %3296 = vmatpush2.msra.mxu0 0.0
          %3297 = vmatprep.subr.mxu0 0.0
          %3298 = vmatpush2.msra.mxu0 0.0
          %3299 = vmatprep.subr.mxu0 0.0
          %3300 = vmatpush2.msra.mxu0 0.0
          %3301 = vmatprep.subr.mxu0 0.0
          %3302 = vmatpush2.msra.mxu0 0.0
          %3303 = vmatprep.subr.mxu0 0.0
          %3304 = vmatpush2.msra.mxu0 0.0
          %3305 = vmatprep.subr.mxu0 0.0
          %3306 = vmatpush2.msra.mxu0 0.0
          %3307 = vmatprep.subr.mxu0 0.0
          %3308 = vmatpush2.msra.mxu0 0.0
          %3309 = vmatprep.subr.mxu0 0.0
          %3310 = vmatpush2.msra.mxu0 0.0
          %3311 = vmatprep.subr.mxu0 0.0
          %3312 = vmatpush2.msra.mxu0 0.0
          %3313 = vmatprep.subr.mxu0 0.0
          %3314 = vmatpush2.msra.mxu0 0.0
          %3315 = vmatprep.subr.mxu0 0.0
          %3316 = vmatpush2.msra.mxu0 0.0
          %3317 = vmatprep.subr.mxu0 0.0
          %3318 = vmatpush2.msra.mxu0 0.0
          %3319 = vmatprep.subr.mxu0 0.0
          %3320 = vmatpush2.msra.mxu0 0.0
          %3321 = vmatprep.mubr.f32.mxu0 0.0
          %3322 = vmatmul.mubr.f32.gmra.mxu0 %v3255
          %v3323 = vpop.f32.mrf.mxu0
          %v3324 = vadd.f32 0.0, %v3323
          %v3325 = vpop.f32.mrf.mxu0
          %v3326 = vadd.f32 0.0, %v3325
          %3327 = vdwg.mxu0
          %v3328 = vld [vmem:[%s13] sm:$0x3]
          %3330 = vset.pattern.permute.xlu0 0
          %3331 = vperm.xlu0 %3330, %v3328
          %v3332 = vpop.permute.xlu0 %3331
          %v3334 = vmul.f32 %v3324, %v3332
          %v3335 = vmul.f32 %v3326, %v3332
          %v3336 = vld [vmem:[%s57] sm:$0xff]
          %v3337 = vld [vmem:[%s57 + $0x8] sm:$0xff]
          %v3338 = vld [vmem:[%s57 + $0x10] sm:$0xff]
          %v3339 = vld [vmem:[%s57 + $0x18] sm:$0xff]
          %v3340 = vld [vmem:[%s57 + $0x20] sm:$0xff]
          %v3341 = vld [vmem:[%s57 + $0x28] sm:$0xff]
          %v3342 = vld [vmem:[%s57 + $0x30] sm:$0xff]
          %v3343 = vld [vmem:[%s57 + $0x38] sm:$0xff]
          %v3344 = vld [vmem:[%s57 + $0x40] sm:$0xff]
          %v3345 = vld [vmem:[%s57 + $0x48] sm:$0xff]
          %v3346 = vld [vmem:[%s57 + $0x50] sm:$0xff]
          %v3347 = vld [vmem:[%s57 + $0x58] sm:$0xff]
          %v3348 = vld [vmem:[%s57 + $0x60] sm:$0xff]
          %v3349 = vld [vmem:[%s57 + $0x68] sm:$0xff]
          %v3350 = vld [vmem:[%s57 + $0x70] sm:$0xff]
          %v3351 = vld [vmem:[%s57 + $0x78] sm:$0xff]
          %v3352 = vld [vmem:[%s57 + $0x80] sm:$0xff]
          %v3353 = vld [vmem:[%s57 + $0x88] sm:$0xff]
          %v3354 = vld [vmem:[%s57 + $0x90] sm:$0xff]
          %v3355 = vld [vmem:[%s57 + $0x98] sm:$0xff]
          %v3356 = vld [vmem:[%s57 + $0xa0] sm:$0xff]
          %v3357 = vld [vmem:[%s57 + $0xa8] sm:$0xff]
          %v3358 = vld [vmem:[%s57 + $0xb0] sm:$0xff]
          %v3359 = vld [vmem:[%s57 + $0xb8] sm:$0xff]
          %v3360 = vld [vmem:[%s57 + $0xc0] sm:$0xff]
          %v3361 = vld [vmem:[%s57 + $0xc8] sm:$0xff]
          %v3362 = vld [vmem:[%s57 + $0xd0] sm:$0xff]
          %v3363 = vld [vmem:[%s57 + $0xd8] sm:$0xff]
          %v3364 = vld [vmem:[%s57 + $0xe0] sm:$0xff]
          %v3365 = vld [vmem:[%s57 + $0xe8] sm:$0xff]
          %v3366 = vld [vmem:[%s57 + $0xf0] sm:$0xff]
          %v3367 = vld [vmem:[%s57 + $0xf8] sm:$0xff]
          %v3368 = vld [vmem:[#allocation5] sm:$0x1]
          %v3370 = vlaneseq
          %v3371 = vshrl.u32 %v3370, 7
          %v3372 = vsub.s32 0, %v3371
          %v3373 = vrot.slane %v3368, %v3372
          %3375 = vmatprep.subr.mxu0 0.0
          %3376 = vmatpush1.msra.mxu0 %v3351
          %3377 = vmatprep.subr.mxu0 0.0
          %3378 = vmatpush1.msra.mxu0 %v3350
          %3379 = vmatprep.subr.mxu0 0.0
          %3380 = vmatpush1.msra.mxu0 %v3349
          %3381 = vmatprep.subr.mxu0 0.0
          %3382 = vmatpush1.msra.mxu0 %v3348
          %3383 = vmatprep.subr.mxu0 0.0
          %3384 = vmatpush1.msra.mxu0 %v3347
          %3385 = vmatprep.subr.mxu0 0.0
          %3386 = vmatpush1.msra.mxu0 %v3346
          %3387 = vmatprep.subr.mxu0 0.0
          %3388 = vmatpush1.msra.mxu0 %v3345
          %3389 = vmatprep.subr.mxu0 0.0
          %3390 = vmatpush1.msra.mxu0 %v3344
          %3391 = vmatprep.subr.mxu0 0.0
          %3392 = vmatpush1.msra.mxu0 %v3343
          %3393 = vmatprep.subr.mxu0 0.0
          %3394 = vmatpush1.msra.mxu0 %v3342
          %3395 = vmatprep.subr.mxu0 0.0
          %3396 = vmatpush1.msra.mxu0 %v3341
          %3397 = vmatprep.subr.mxu0 0.0
          %3398 = vmatpush1.msra.mxu0 %v3340
          %3399 = vmatprep.subr.mxu0 0.0
          %3400 = vmatpush1.msra.mxu0 %v3339
          %3401 = vmatprep.subr.mxu0 0.0
          %3402 = vmatpush1.msra.mxu0 %v3338
          %3403 = vmatprep.subr.mxu0 0.0
          %3404 = vmatpush1.msra.mxu0 %v3337
          %3405 = vmatprep.subr.mxu0 0.0
          %3406 = vmatpush1.msra.mxu0 %v3336
          %3407 = vmatprep.subr.mxu0 0.0
          %3408 = vmatpush2.msra.mxu0 %v3367
          %3409 = vmatprep.subr.mxu0 0.0
          %3410 = vmatpush2.msra.mxu0 %v3366
          %3411 = vmatprep.subr.mxu0 0.0
          %3412 = vmatpush2.msra.mxu0 %v3365
          %3413 = vmatprep.subr.mxu0 0.0
          %3414 = vmatpush2.msra.mxu0 %v3364
          %3415 = vmatprep.subr.mxu0 0.0
          %3416 = vmatpush2.msra.mxu0 %v3363
          %3417 = vmatprep.subr.mxu0 0.0
          %3418 = vmatpush2.msra.mxu0 %v3362
          %3419 = vmatprep.subr.mxu0 0.0
          %3420 = vmatpush2.msra.mxu0 %v3361
          %3421 = vmatprep.subr.mxu0 0.0
          %3422 = vmatpush2.msra.mxu0 %v3360
          %3423 = vmatprep.subr.mxu0 0.0
          %3424 = vmatpush2.msra.mxu0 %v3359
          %3425 = vmatprep.subr.mxu0 0.0
          %3426 = vmatpush2.msra.mxu0 %v3358
          %3427 = vmatprep.subr.mxu0 0.0
          %3428 = vmatpush2.msra.mxu0 %v3357
          %3429 = vmatprep.subr.mxu0 0.0
          %3430 = vmatpush2.msra.mxu0 %v3356
          %3431 = vmatprep.subr.mxu0 0.0
          %3432 = vmatpush2.msra.mxu0 %v3355
          %3433 = vmatprep.subr.mxu0 0.0
          %3434 = vmatpush2.msra.mxu0 %v3354
          %3435 = vmatprep.subr.mxu0 0.0
          %3436 = vmatpush2.msra.mxu0 %v3353
          %3437 = vmatprep.subr.mxu0 0.0
          %3438 = vmatpush2.msra.mxu0 %v3352
          %3439 = vmatprep.mubr.f32.mxu0 %v3335
          %3440 = vmatmul.mubr.f32.gmra.mxu0 %v3334
          %v3441 = vpop.f32.mrf.mxu0
          %v3442 = vadd.f32 %v3373, %v3441
          %v3443 = vpop.f32.mrf.mxu0
          %3444 = vdwg.mxu0
          %vm3445 = vcmask 1024
          %3446 = vst.msk [vmem:[%s61] sm:$0x3] %vm3445, %v3442
        $region156: #{egnn_ncp_forward.1} parent=151 // pred_fallthru
          _
      $region152: #{egnn_ncp_forward.1} parent=139 // pred_fallthru
        _
      // Predicated region
      $region157: #{egnn_ncp_forward.1} parent=139 // pred_check
        %p3447 = pneg %p819
      $region158: #{egnn_ncp_forward.1} parent=139 // pred_check_branch
        %3449 = sbr.rel (%p3447) target = $region160
      $region159: #{egnn_ncp_forward.1} parent=139 // pred_region
        _
      $region160: #{egnn_ncp_forward.1} parent=139 // pred_fallthru
        _
      // Predicated region
      $region161: #{egnn_ncp_forward.1} parent=139 // pred_check
        %p3450 = pneg %p819
      $region162: #{egnn_ncp_forward.1} parent=139 // pred_check_branch
        %3452 = sbr.rel (%p3450) target = $region164
      $region163: #{egnn_ncp_forward.1} parent=139 // pred_region
        _
      $region164: #{egnn_ncp_forward.1} parent=139 // pred_fallthru
        _
    $region140: #{egnn_ncp_forward.1} parent=5 // pred_fallthru
      _
    %p3453 = scmp.le.s32.totalorder 2, %s69
    // Predicated region
    $region165: #{egnn_ncp_forward.1} parent=5 // pred_check
      %p3454 = pneg %p3453
    $region166: #{egnn_ncp_forward.1} parent=5 // pred_check_branch
      %3456 = sbr.rel (%p3454) target = $region168
    $region167: #{egnn_ncp_forward.1} parent=5 // pred_region
      %s3457 = ssub.s32 %s69, 2
    $region168: #{egnn_ncp_forward.1} parent=5 // pred_fallthru
      _
  $region6: #{egnn_ncp_forward.1} parent=0 // loop_footer
    %s73 = sadd.s32 1, %s69
  $region7: #{egnn_ncp_forward.1} parent=0 // loop_footer_branch
    %68 = sbr.rel target = $region3
  $region8: #{egnn_ncp_forward.1} parent=0 // loop_exit
    _

</llo_original>
